<compile_context>
chip_gen: v7x
topology: tpu7x:2x2x1
jax: 0.10.0
libtpu: 0.0.40
codegen_flags: <defaults>
</compile_context>

<pallas_src>
import functools

import jax
import jax.numpy as jnp
from jax.experimental import pallas as pl
from jax.experimental.pallas import tpu as pltpu


# ---------------------------------------------------------------------------
# Kernel
# ---------------------------------------------------------------------------

def _conv_block_kernel(x_ref, m_ref, w1_ref, b1_ref, w2_ref, b2_ref, out_ref,
                       pad_ref, *, H, W, PAD):
    """Fused (conv3x3 + BN + sigmoid) x 2 for one image.

    x_ref   : (C_in, H*W)          flattened input image (lane-dense)
    m_ref   : (2, H*W)             column-validity masks for dx = -1 / +1 taps
    w1_ref  : (C_out, 9*C_in)      BN-folded conv1 weights (tap-major, ch-minor)
    b1_ref  : (C_out, 1)           BN-folded conv1 bias
    w2_ref  : (C_out, 9*C_out)     BN-folded conv2 weights
    b2_ref  : (C_out, 1)           BN-folded conv2 bias
    out_ref : (C_out, H*W)         sigmoid(BN(conv2(sigmoid(BN(conv1(x))))))
    pad_ref : (Cmax, H*W + 2*PAD)  zero-margin staging buffer in VMEM
    """
    HW = H * W

    # Column-validity masks, loaded once (aligned full-width loads).
    m_left = m_ref[0:1, :]    # valid where the dx = -1 tap stays in the row
    m_right = m_ref[1:2, :]   # valid where the dx = +1 tap stays in the row

    # Zero the staging buffer so the margins (row-out-of-bounds taps) read 0.
    pad_ref[...] = jnp.zeros_like(pad_ref)

    def conv3x3_bn_sigmoid(x2d, w_ref, b_ref):
        cin = x2d.shape[0]
        cout, _ = w_ref.shape

        # Stage activation at a 128-aligned lane offset: fully aligned store.
        pad_ref[0:cin, PAD:PAD + HW] = x2d

        w = w_ref[...]                                       # (cout, 9*cin)
        z = jnp.zeros((cout, HW), jnp.float32) + b_ref[...]  # bias broadcast

        for k in range(9):
            dy, dx = k // 3 - 1, k % 3 - 1
            s = dy * W + dx                    # flattened-index shift of tap k
            # Shifted load: xs[ci, p] = x[ci, p + s], zero past the row bounds.
            xs = pad_ref[0:cin, PAD + s:PAD + s + HW]
            if dx == -1:
                xs = xs * m_left
            elif dx == 1:
                xs = xs * m_right
            # Tiny-K contraction on the VPU (exact f32 broadcast MACs).
            for ci in range(cin):
                j = k * cin + ci
                z = z + w[:, j:j + 1] * xs[ci:ci + 1, :]

        return jax.nn.sigmoid(z)

    x = x_ref[...].astype(jnp.float32)                 # (C_in, HW)
    y1 = conv3x3_bn_sigmoid(x, w1_ref, b1_ref)         # (C_out, HW)
    y2 = conv3x3_bn_sigmoid(y1, w2_ref, b2_ref)        # (C_out, HW)
    out_ref[...] = y2.astype(out_ref.dtype)


def conv_block_pallas(x_flat, masks, w1_mat, b1_col, w2_mat, b2_col, *, H, W):
    """x_flat: (N, C_in, H*W) -> (N, C_out, H*W), one image per grid step."""
    N, C_in, HW = x_flat.shape
    C_out = w1_mat.shape[0]
    PAD = 128                               # aligned margin, >= W + 1
    assert PAD >= W + 1 and HW % 128 == 0, "expects lane-dense H*W and W+1<=128"
    C_max = max(C_in, C_out)

    kernel = functools.partial(_conv_block_kernel, H=H, W=W, PAD=PAD)

    return pl.pallas_call(
        kernel,
        out_shape=jax.ShapeDtypeStruct((N, C_out, HW), x_flat.dtype),
        grid_spec=pltpu.PrefetchScalarGridSpec(
            num_scalar_prefetch=0,
            grid=(N,),
            in_specs=[
                pl.BlockSpec((None, C_in, HW), lambda i: (i, 0, 0)),   # image i
                pl.BlockSpec((2, HW), lambda i: (0, 0)),               # col masks
                pl.BlockSpec((C_out, 9 * C_in), lambda i: (0, 0)),     # w1 (folded)
                pl.BlockSpec((C_out, 1), lambda i: (0, 0)),            # b1
                pl.BlockSpec((C_out, 9 * C_out), lambda i: (0, 0)),    # w2 (folded)
                pl.BlockSpec((C_out, 1), lambda i: (0, 0)),            # b2
            ],
            out_specs=pl.BlockSpec((None, C_out, HW), lambda i: (i, 0, 0)),
            scratch_shapes=[
                pltpu.VMEM((C_max, HW + 2 * PAD), jnp.float32),  # padded staging buf
            ],
        ),
        compiler_params=pltpu.CompilerParams(
            dimension_semantics=("parallel",)),
    )(x_flat, masks, w1_mat, b1_col, w2_mat, b2_col)


# ---------------------------------------------------------------------------
# Parameters, BN folding, wrapper and reference (plain-JAX glue)
# ---------------------------------------------------------------------------

def make_params(key, c_in, c_out):
    """Deterministic params matching the PyTorch module's shapes."""
    ks = jax.random.split(key, 4)
    p = {
        "w1": jax.random.normal(ks[0], (c_out, c_in, 3, 3), jnp.float32) * 0.1,
        "b1": jax.random.normal(ks[1], (c_out,), jnp.float32) * 0.1,
        "w2": jax.random.normal(ks[2], (c_out, c_out, 3, 3), jnp.float32) * 0.1,
        "b2": jax.random.normal(ks[3], (c_out,), jnp.float32) * 0.1,
    }

    def bn(c, base):  # deterministic, non-trivial eval-mode BN stats
        r = jnp.arange(c, dtype=jnp.float32)
        return dict(gamma=1.0 + 0.05 * r, beta=0.02 * r - 0.01,
                    mean=0.03 * r + base, var=1.0 + 0.1 * r)

    p["bn1"] = bn(c_out, 0.01)
    p["bn2"] = bn(c_out, -0.02)
    return p


def fold_bn(w, b, bn, eps=1e-5):
    """Fold eval-mode BatchNorm2d into the preceding conv."""
    scale = bn["gamma"] / jnp.sqrt(bn["var"] + eps)     # (C_out,)
    w_eff = w * scale[:, None, None, None]              # (C_out, C_in, 3, 3)
    b_eff = (b - bn["mean"]) * scale + bn["beta"]       # (C_out,)
    return w_eff, b_eff


def _col_masks(H, W):
    """(2, H*W) masks: row 0 valid for dx=-1 taps, row 1 valid for dx=+1."""
    cols = jnp.arange(H * W, dtype=jnp.int32) % W
    return jnp.stack([(cols >= 1).astype(jnp.float32),
                      (cols <= W - 2).astype(jnp.float32)], axis=0)


@jax.jit
def conv_block(x_nchw, params):
    """Full forward: NCHW in -> NCHW out; all compute in the Pallas kernel."""
    N, C_in, H, W = x_nchw.shape
    w1_eff, b1_eff = fold_bn(params["w1"], params["b1"], params["bn1"])
    w2_eff, b2_eff = fold_bn(params["w2"], params["b2"], params["bn2"])
    C_out = w1_eff.shape[0]

    # (C_out, C_in, 3, 3) -> (C_out, 9*C_in) with tap-major / channel-minor
    # column order, matching the shifted-tap loop in-kernel.
    w1_mat = jnp.transpose(w1_eff, (0, 2, 3, 1)).reshape(C_out, 9 * C_in)
    w2_mat = jnp.transpose(w2_eff, (0, 2, 3, 1)).reshape(C_out, 9 * C_out)

    out_flat = conv_block_pallas(
        x_nchw.reshape(N, C_in, H * W),       # free reshape, no transpose
        _col_masks(H, W),
        w1_mat, b1_eff[:, None], w2_mat, b2_eff[:, None],
        H=H, W=W)
    return out_flat.reshape(N, C_out, H, W)


def conv_block_ref(x_nchw, params):
    """Pure-JAX reference with identical (eval-mode) semantics."""
    w1_eff, b1_eff = fold_bn(params["w1"], params["b1"], params["bn1"])
    w2_eff, b2_eff = fold_bn(params["w2"], params["b2"], params["bn2"])

    def conv(x, w, b):
        y = jax.lax.conv_general_dilated(
            x, w, window_strides=(1, 1), padding=((1, 1), (1, 1)),
            dimension_numbers=("NCHW", "OIHW", "NCHW"),
            precision=jax.lax.Precision.HIGHEST)
        return y + b[None, :, None, None]

    y = jax.nn.sigmoid(conv(x_nchw, w1_eff, b1_eff))
    return jax.nn.sigmoid(conv(y, w2_eff, b2_eff))


if __name__ == "__main__":
    # Small shapes consistent with the module: batch=2, in_channels=4,
    # out_channels=8, spatial 16x16 (H*W = 256, a lane-dense multiple of 128).
    N, C_in, C_out, H, W = 2, 4, 8, 16, 16

    key = jax.random.PRNGKey(0)
    kx, kp = jax.random.split(key)
    x = jax.random.normal(kx, (N, C_in, H, W), jnp.float32)
    params = make_params(kp, C_in, C_out)

    out = conv_block(x, params)
    out = jax.block_until_ready(out)

    ref = conv_block_ref(x, params)
    assert out.shape == (N, C_out, H, W)
    assert jnp.allclose(out, ref, atol=1e-5, rtol=1e-5), "mismatch vs reference"

    print("KERNEL_OK")
</pallas_src>

<mosaic_0001>
module attributes {stable_mosaic.version = 11 : i64} {
  func.func @_conv_block_kernel(%arg0: i32, %arg1: memref<1x4x256xf32, #tpu.memory_space<vmem>>, %arg2: memref<2x256xf32, #tpu.memory_space<vmem>>, %arg3: memref<8x36xf32, #tpu.memory_space<vmem>>, %arg4: memref<8x1xf32, #tpu.memory_space<vmem>>, %arg5: memref<8x72xf32, #tpu.memory_space<vmem>>, %arg6: memref<8x1xf32, #tpu.memory_space<vmem>>, %arg7: memref<1x8x256xf32, #tpu.memory_space<vmem>>, %arg8: memref<8x512xf32, #tpu.memory_space<vmem>>) attributes {dimension_semantics = [#tpu.dimension_semantics<parallel>], iteration_bounds = array<i64: 2>, scalar_prefetch = 0 : i64, scratch_operands = 1 : i64, tpu.core_type = #tpu.core_type<tc>, window_params = [{transform_indices = @transform_0, window_bounds = array<i64: 1, 4, 256>}, {pipeline_mode = #tpu.pipeline_mode<synchronous>, transform_indices = @transform_1, window_bounds = array<i64: 2, 256>}, {pipeline_mode = #tpu.pipeline_mode<synchronous>, transform_indices = @transform_2, window_bounds = array<i64: 8, 36>}, {pipeline_mode = #tpu.pipeline_mode<synchronous>, transform_indices = @transform_3, window_bounds = array<i64: 8, 1>}, {pipeline_mode = #tpu.pipeline_mode<synchronous>, transform_indices = @transform_4, window_bounds = array<i64: 8, 72>}, {pipeline_mode = #tpu.pipeline_mode<synchronous>, transform_indices = @transform_5, window_bounds = array<i64: 8, 1>}, {transform_indices = @transform_6, window_bounds = array<i64: 1, 8, 256>}]} {
    %c0 = arith.constant 0 : index
    %c0_0 = arith.constant 0 : index
    %0 = vector.load %arg2[%c0, %c0_0] : memref<2x256xf32, #tpu.memory_space<vmem>>, vector<1x256xf32>
    %c1 = arith.constant 1 : index
    %c0_1 = arith.constant 0 : index
    %1 = vector.load %arg2[%c1, %c0_1] : memref<2x256xf32, #tpu.memory_space<vmem>>, vector<1x256xf32>
    %cst = arith.constant 0.000000e+00 : f32
    %2 = vector.broadcast %cst : f32 to vector<8x512xf32>
    %c0_2 = arith.constant 0 : index
    %c0_3 = arith.constant 0 : index
    %3 = vector.load %arg8[%c0_2, %c0_3] : memref<8x512xf32, #tpu.memory_space<vmem>>, vector<8x512xf32>
    tpu.vector_store %arg8[%c0_2, %c0_3], %2 {strides = array<i32>} : memref<8x512xf32, #tpu.memory_space<vmem>>, vector<8x512xf32>,
    %c0_4 = arith.constant 0 : index
    %c0_5 = arith.constant 0 : index
    %c0_6 = arith.constant 0 : index
    %4 = vector.load %arg1[%c0_4, %c0_5, %c0_6] : memref<1x4x256xf32, #tpu.memory_space<vmem>>, vector<1x4x256xf32>
    %5 = vector.shape_cast %4 : vector<1x4x256xf32> to vector<4x256xf32>
    %c0_7 = arith.constant 0 : index
    %c128 = arith.constant 128 : index
    %6 = vector.load %arg8[%c0_7, %c128] : memref<8x512xf32, #tpu.memory_space<vmem>>, vector<4x256xf32>
    tpu.vector_store %arg8[%c0_7, %c128], %5 {strides = array<i32>} : memref<8x512xf32, #tpu.memory_space<vmem>>, vector<4x256xf32>,
    %c0_8 = arith.constant 0 : index
    %c0_9 = arith.constant 0 : index
    %7 = vector.load %arg3[%c0_8, %c0_9] : memref<8x36xf32, #tpu.memory_space<vmem>>, vector<8x36xf32>
    %cst_10 = arith.constant 0.000000e+00 : f32
    %8 = vector.broadcast %cst_10 : f32 to vector<8x256xf32>
    %c0_11 = arith.constant 0 : index
    %c0_12 = arith.constant 0 : index
    %9 = vector.load %arg4[%c0_11, %c0_12] : memref<8x1xf32, #tpu.memory_space<vmem>>, vector<8x1xf32>
    %10 = vector.broadcast %9 : vector<8x1xf32> to vector<8x256xf32>
    %11 = arith.addf %8, %10 : vector<8x256xf32>
    %c0_13 = arith.constant 0 : index
    %c111 = arith.constant 111 : index
    %12 = vector.load %arg8[%c0_13, %c111] : memref<8x512xf32, #tpu.memory_space<vmem>>, vector<4x256xf32>
    %13 = vector.broadcast %0 : vector<1x256xf32> to vector<4x256xf32>
    %14 = arith.mulf %12, %13 : vector<4x256xf32>
    %15 = vector.extract_strided_slice %7 {offsets = [0, 0], sizes = [8, 1], strides = [1, 1]} : vector<8x36xf32> to vector<8x1xf32>
    %16 = vector.extract_strided_slice %14 {offsets = [0, 0], sizes = [1, 256], strides = [1, 1]} : vector<4x256xf32> to vector<1x256xf32>
    %17 = vector.broadcast %15 : vector<8x1xf32> to vector<8x256xf32>
    %18 = vector.broadcast %16 : vector<1x256xf32> to vector<8x256xf32>
    %19 = arith.mulf %17, %18 : vector<8x256xf32>
    %20 = arith.addf %11, %19 : vector<8x256xf32>
    %21 = vector.extract_strided_slice %7 {offsets = [0, 1], sizes = [8, 1], strides = [1, 1]} : vector<8x36xf32> to vector<8x1xf32>
    %22 = vector.extract_strided_slice %14 {offsets = [1, 0], sizes = [1, 256], strides = [1, 1]} : vector<4x256xf32> to vector<1x256xf32>
    %23 = vector.broadcast %21 : vector<8x1xf32> to vector<8x256xf32>
    %24 = vector.broadcast %22 : vector<1x256xf32> to vector<8x256xf32>
    %25 = arith.mulf %23, %24 : vector<8x256xf32>
    %26 = arith.addf %20, %25 : vector<8x256xf32>
    %27 = vector.extract_strided_slice %7 {offsets = [0, 2], sizes = [8, 1], strides = [1, 1]} : vector<8x36xf32> to vector<8x1xf32>
    %28 = vector.extract_strided_slice %14 {offsets = [2, 0], sizes = [1, 256], strides = [1, 1]} : vector<4x256xf32> to vector<1x256xf32>
    %29 = vector.broadcast %27 : vector<8x1xf32> to vector<8x256xf32>
    %30 = vector.broadcast %28 : vector<1x256xf32> to vector<8x256xf32>
    %31 = arith.mulf %29, %30 : vector<8x256xf32>
    %32 = arith.addf %26, %31 : vector<8x256xf32>
    %33 = vector.extract_strided_slice %7 {offsets = [0, 3], sizes = [8, 1], strides = [1, 1]} : vector<8x36xf32> to vector<8x1xf32>
    %34 = vector.extract_strided_slice %14 {offsets = [3, 0], sizes = [1, 256], strides = [1, 1]} : vector<4x256xf32> to vector<1x256xf32>
    %35 = vector.broadcast %33 : vector<8x1xf32> to vector<8x256xf32>
    %36 = vector.broadcast %34 : vector<1x256xf32> to vector<8x256xf32>
    %37 = arith.mulf %35, %36 : vector<8x256xf32>
    %38 = arith.addf %32, %37 : vector<8x256xf32>
    %c0_14 = arith.constant 0 : index
    %c112 = arith.constant 112 : index
    %39 = vector.load %arg8[%c0_14, %c112] : memref<8x512xf32, #tpu.memory_space<vmem>>, vector<4x256xf32>
    %40 = vector.extract_strided_slice %7 {offsets = [0, 4], sizes = [8, 1], strides = [1, 1]} : vector<8x36xf32> to vector<8x1xf32>
    %41 = vector.extract_strided_slice %39 {offsets = [0, 0], sizes = [1, 256], strides = [1, 1]} : vector<4x256xf32> to vector<1x256xf32>
    %42 = vector.broadcast %40 : vector<8x1xf32> to vector<8x256xf32>
    %43 = vector.broadcast %41 : vector<1x256xf32> to vector<8x256xf32>
    %44 = arith.mulf %42, %43 : vector<8x256xf32>
    %45 = arith.addf %38, %44 : vector<8x256xf32>
    %46 = vector.extract_strided_slice %7 {offsets = [0, 5], sizes = [8, 1], strides = [1, 1]} : vector<8x36xf32> to vector<8x1xf32>
    %47 = vector.extract_strided_slice %39 {offsets = [1, 0], sizes = [1, 256], strides = [1, 1]} : vector<4x256xf32> to vector<1x256xf32>
    %48 = vector.broadcast %46 : vector<8x1xf32> to vector<8x256xf32>
    %49 = vector.broadcast %47 : vector<1x256xf32> to vector<8x256xf32>
    %50 = arith.mulf %48, %49 : vector<8x256xf32>
    %51 = arith.addf %45, %50 : vector<8x256xf32>
    %52 = vector.extract_strided_slice %7 {offsets = [0, 6], sizes = [8, 1], strides = [1, 1]} : vector<8x36xf32> to vector<8x1xf32>
    %53 = vector.extract_strided_slice %39 {offsets = [2, 0], sizes = [1, 256], strides = [1, 1]} : vector<4x256xf32> to vector<1x256xf32>
    %54 = vector.broadcast %52 : vector<8x1xf32> to vector<8x256xf32>
    %55 = vector.broadcast %53 : vector<1x256xf32> to vector<8x256xf32>
    %56 = arith.mulf %54, %55 : vector<8x256xf32>
    %57 = arith.addf %51, %56 : vector<8x256xf32>
    %58 = vector.extract_strided_slice %7 {offsets = [0, 7], sizes = [8, 1], strides = [1, 1]} : vector<8x36xf32> to vector<8x1xf32>
    %59 = vector.extract_strided_slice %39 {offsets = [3, 0], sizes = [1, 256], strides = [1, 1]} : vector<4x256xf32> to vector<1x256xf32>
    %60 = vector.broadcast %58 : vector<8x1xf32> to vector<8x256xf32>
    %61 = vector.broadcast %59 : vector<1x256xf32> to vector<8x256xf32>
    %62 = arith.mulf %60, %61 : vector<8x256xf32>
    %63 = arith.addf %57, %62 : vector<8x256xf32>
    %c0_15 = arith.constant 0 : index
    %c113 = arith.constant 113 : index
    %64 = vector.load %arg8[%c0_15, %c113] : memref<8x512xf32, #tpu.memory_space<vmem>>, vector<4x256xf32>
    %65 = vector.broadcast %1 : vector<1x256xf32> to vector<4x256xf32>
    %66 = arith.mulf %64, %65 : vector<4x256xf32>
    %67 = vector.extract_strided_slice %7 {offsets = [0, 8], sizes = [8, 1], strides = [1, 1]} : vector<8x36xf32> to vector<8x1xf32>
    %68 = vector.extract_strided_slice %66 {offsets = [0, 0], sizes = [1, 256], strides = [1, 1]} : vector<4x256xf32> to vector<1x256xf32>
    %69 = vector.broadcast %67 : vector<8x1xf32> to vector<8x256xf32>
    %70 = vector.broadcast %68 : vector<1x256xf32> to vector<8x256xf32>
    %71 = arith.mulf %69, %70 : vector<8x256xf32>
    %72 = arith.addf %63, %71 : vector<8x256xf32>
    %73 = vector.extract_strided_slice %7 {offsets = [0, 9], sizes = [8, 1], strides = [1, 1]} : vector<8x36xf32> to vector<8x1xf32>
    %74 = vector.extract_strided_slice %66 {offsets = [1, 0], sizes = [1, 256], strides = [1, 1]} : vector<4x256xf32> to vector<1x256xf32>
    %75 = vector.broadcast %73 : vector<8x1xf32> to vector<8x256xf32>
    %76 = vector.broadcast %74 : vector<1x256xf32> to vector<8x256xf32>
    %77 = arith.mulf %75, %76 : vector<8x256xf32>
    %78 = arith.addf %72, %77 : vector<8x256xf32>
    %79 = vector.extract_strided_slice %7 {offsets = [0, 10], sizes = [8, 1], strides = [1, 1]} : vector<8x36xf32> to vector<8x1xf32>
    %80 = vector.extract_strided_slice %66 {offsets = [2, 0], sizes = [1, 256], strides = [1, 1]} : vector<4x256xf32> to vector<1x256xf32>
    %81 = vector.broadcast %79 : vector<8x1xf32> to vector<8x256xf32>
    %82 = vector.broadcast %80 : vector<1x256xf32> to vector<8x256xf32>
    %83 = arith.mulf %81, %82 : vector<8x256xf32>
    %84 = arith.addf %78, %83 : vector<8x256xf32>
    %85 = vector.extract_strided_slice %7 {offsets = [0, 11], sizes = [8, 1], strides = [1, 1]} : vector<8x36xf32> to vector<8x1xf32>
    %86 = vector.extract_strided_slice %66 {offsets = [3, 0], sizes = [1, 256], strides = [1, 1]} : vector<4x256xf32> to vector<1x256xf32>
    %87 = vector.broadcast %85 : vector<8x1xf32> to vector<8x256xf32>
    %88 = vector.broadcast %86 : vector<1x256xf32> to vector<8x256xf32>
    %89 = arith.mulf %87, %88 : vector<8x256xf32>
    %90 = arith.addf %84, %89 : vector<8x256xf32>
    %c0_16 = arith.constant 0 : index
    %c127 = arith.constant 127 : index
    %91 = vector.load %arg8[%c0_16, %c127] : memref<8x512xf32, #tpu.memory_space<vmem>>, vector<4x256xf32>
    %92 = vector.broadcast %0 : vector<1x256xf32> to vector<4x256xf32>
    %93 = arith.mulf %91, %92 : vector<4x256xf32>
    %94 = vector.extract_strided_slice %7 {offsets = [0, 12], sizes = [8, 1], strides = [1, 1]} : vector<8x36xf32> to vector<8x1xf32>
    %95 = vector.extract_strided_slice %93 {offsets = [0, 0], sizes = [1, 256], strides = [1, 1]} : vector<4x256xf32> to vector<1x256xf32>
    %96 = vector.broadcast %94 : vector<8x1xf32> to vector<8x256xf32>
    %97 = vector.broadcast %95 : vector<1x256xf32> to vector<8x256xf32>
    %98 = arith.mulf %96, %97 : vector<8x256xf32>
    %99 = arith.addf %90, %98 : vector<8x256xf32>
    %100 = vector.extract_strided_slice %7 {offsets = [0, 13], sizes = [8, 1], strides = [1, 1]} : vector<8x36xf32> to vector<8x1xf32>
    %101 = vector.extract_strided_slice %93 {offsets = [1, 0], sizes = [1, 256], strides = [1, 1]} : vector<4x256xf32> to vector<1x256xf32>
    %102 = vector.broadcast %100 : vector<8x1xf32> to vector<8x256xf32>
    %103 = vector.broadcast %101 : vector<1x256xf32> to vector<8x256xf32>
    %104 = arith.mulf %102, %103 : vector<8x256xf32>
    %105 = arith.addf %99, %104 : vector<8x256xf32>
    %106 = vector.extract_strided_slice %7 {offsets = [0, 14], sizes = [8, 1], strides = [1, 1]} : vector<8x36xf32> to vector<8x1xf32>
    %107 = vector.extract_strided_slice %93 {offsets = [2, 0], sizes = [1, 256], strides = [1, 1]} : vector<4x256xf32> to vector<1x256xf32>
    %108 = vector.broadcast %106 : vector<8x1xf32> to vector<8x256xf32>
    %109 = vector.broadcast %107 : vector<1x256xf32> to vector<8x256xf32>
    %110 = arith.mulf %108, %109 : vector<8x256xf32>
    %111 = arith.addf %105, %110 : vector<8x256xf32>
    %112 = vector.extract_strided_slice %7 {offsets = [0, 15], sizes = [8, 1], strides = [1, 1]} : vector<8x36xf32> to vector<8x1xf32>
    %113 = vector.extract_strided_slice %93 {offsets = [3, 0], sizes = [1, 256], strides = [1, 1]} : vector<4x256xf32> to vector<1x256xf32>
    %114 = vector.broadcast %112 : vector<8x1xf32> to vector<8x256xf32>
    %115 = vector.broadcast %113 : vector<1x256xf32> to vector<8x256xf32>
    %116 = arith.mulf %114, %115 : vector<8x256xf32>
    %117 = arith.addf %111, %116 : vector<8x256xf32>
    %c0_17 = arith.constant 0 : index
    %c128_18 = arith.constant 128 : index
    %118 = vector.load %arg8[%c0_17, %c128_18] : memref<8x512xf32, #tpu.memory_space<vmem>>, vector<4x256xf32>
    %119 = vector.extract_strided_slice %7 {offsets = [0, 16], sizes = [8, 1], strides = [1, 1]} : vector<8x36xf32> to vector<8x1xf32>
    %120 = vector.extract_strided_slice %118 {offsets = [0, 0], sizes = [1, 256], strides = [1, 1]} : vector<4x256xf32> to vector<1x256xf32>
    %121 = vector.broadcast %119 : vector<8x1xf32> to vector<8x256xf32>
    %122 = vector.broadcast %120 : vector<1x256xf32> to vector<8x256xf32>
    %123 = arith.mulf %121, %122 : vector<8x256xf32>
    %124 = arith.addf %117, %123 : vector<8x256xf32>
    %125 = vector.extract_strided_slice %7 {offsets = [0, 17], sizes = [8, 1], strides = [1, 1]} : vector<8x36xf32> to vector<8x1xf32>
    %126 = vector.extract_strided_slice %118 {offsets = [1, 0], sizes = [1, 256], strides = [1, 1]} : vector<4x256xf32> to vector<1x256xf32>
    %127 = vector.broadcast %125 : vector<8x1xf32> to vector<8x256xf32>
    %128 = vector.broadcast %126 : vector<1x256xf32> to vector<8x256xf32>
    %129 = arith.mulf %127, %128 : vector<8x256xf32>
    %130 = arith.addf %124, %129 : vector<8x256xf32>
    %131 = vector.extract_strided_slice %7 {offsets = [0, 18], sizes = [8, 1], strides = [1, 1]} : vector<8x36xf32> to vector<8x1xf32>
    %132 = vector.extract_strided_slice %118 {offsets = [2, 0], sizes = [1, 256], strides = [1, 1]} : vector<4x256xf32> to vector<1x256xf32>
    %133 = vector.broadcast %131 : vector<8x1xf32> to vector<8x256xf32>
    %134 = vector.broadcast %132 : vector<1x256xf32> to vector<8x256xf32>
    %135 = arith.mulf %133, %134 : vector<8x256xf32>
    %136 = arith.addf %130, %135 : vector<8x256xf32>
    %137 = vector.extract_strided_slice %7 {offsets = [0, 19], sizes = [8, 1], strides = [1, 1]} : vector<8x36xf32> to vector<8x1xf32>
    %138 = vector.extract_strided_slice %118 {offsets = [3, 0], sizes = [1, 256], strides = [1, 1]} : vector<4x256xf32> to vector<1x256xf32>
    %139 = vector.broadcast %137 : vector<8x1xf32> to vector<8x256xf32>
    %140 = vector.broadcast %138 : vector<1x256xf32> to vector<8x256xf32>
    %141 = arith.mulf %139, %140 : vector<8x256xf32>
    %142 = arith.addf %136, %141 : vector<8x256xf32>
    %c0_19 = arith.constant 0 : index
    %c129 = arith.constant 129 : index
    %143 = vector.load %arg8[%c0_19, %c129] : memref<8x512xf32, #tpu.memory_space<vmem>>, vector<4x256xf32>
    %144 = vector.broadcast %1 : vector<1x256xf32> to vector<4x256xf32>
    %145 = arith.mulf %143, %144 : vector<4x256xf32>
    %146 = vector.extract_strided_slice %7 {offsets = [0, 20], sizes = [8, 1], strides = [1, 1]} : vector<8x36xf32> to vector<8x1xf32>
    %147 = vector.extract_strided_slice %145 {offsets = [0, 0], sizes = [1, 256], strides = [1, 1]} : vector<4x256xf32> to vector<1x256xf32>
    %148 = vector.broadcast %146 : vector<8x1xf32> to vector<8x256xf32>
    %149 = vector.broadcast %147 : vector<1x256xf32> to vector<8x256xf32>
    %150 = arith.mulf %148, %149 : vector<8x256xf32>
    %151 = arith.addf %142, %150 : vector<8x256xf32>
    %152 = vector.extract_strided_slice %7 {offsets = [0, 21], sizes = [8, 1], strides = [1, 1]} : vector<8x36xf32> to vector<8x1xf32>
    %153 = vector.extract_strided_slice %145 {offsets = [1, 0], sizes = [1, 256], strides = [1, 1]} : vector<4x256xf32> to vector<1x256xf32>
    %154 = vector.broadcast %152 : vector<8x1xf32> to vector<8x256xf32>
    %155 = vector.broadcast %153 : vector<1x256xf32> to vector<8x256xf32>
    %156 = arith.mulf %154, %155 : vector<8x256xf32>
    %157 = arith.addf %151, %156 : vector<8x256xf32>
    %158 = vector.extract_strided_slice %7 {offsets = [0, 22], sizes = [8, 1], strides = [1, 1]} : vector<8x36xf32> to vector<8x1xf32>
    %159 = vector.extract_strided_slice %145 {offsets = [2, 0], sizes = [1, 256], strides = [1, 1]} : vector<4x256xf32> to vector<1x256xf32>
    %160 = vector.broadcast %158 : vector<8x1xf32> to vector<8x256xf32>
    %161 = vector.broadcast %159 : vector<1x256xf32> to vector<8x256xf32>
    %162 = arith.mulf %160, %161 : vector<8x256xf32>
    %163 = arith.addf %157, %162 : vector<8x256xf32>
    %164 = vector.extract_strided_slice %7 {offsets = [0, 23], sizes = [8, 1], strides = [1, 1]} : vector<8x36xf32> to vector<8x1xf32>
    %165 = vector.extract_strided_slice %145 {offsets = [3, 0], sizes = [1, 256], strides = [1, 1]} : vector<4x256xf32> to vector<1x256xf32>
    %166 = vector.broadcast %164 : vector<8x1xf32> to vector<8x256xf32>
    %167 = vector.broadcast %165 : vector<1x256xf32> to vector<8x256xf32>
    %168 = arith.mulf %166, %167 : vector<8x256xf32>
    %169 = arith.addf %163, %168 : vector<8x256xf32>
    %c0_20 = arith.constant 0 : index
    %c143 = arith.constant 143 : index
    %170 = vector.load %arg8[%c0_20, %c143] : memref<8x512xf32, #tpu.memory_space<vmem>>, vector<4x256xf32>
    %171 = vector.broadcast %0 : vector<1x256xf32> to vector<4x256xf32>
    %172 = arith.mulf %170, %171 : vector<4x256xf32>
    %173 = vector.extract_strided_slice %7 {offsets = [0, 24], sizes = [8, 1], strides = [1, 1]} : vector<8x36xf32> to vector<8x1xf32>
    %174 = vector.extract_strided_slice %172 {offsets = [0, 0], sizes = [1, 256], strides = [1, 1]} : vector<4x256xf32> to vector<1x256xf32>
    %175 = vector.broadcast %173 : vector<8x1xf32> to vector<8x256xf32>
    %176 = vector.broadcast %174 : vector<1x256xf32> to vector<8x256xf32>
    %177 = arith.mulf %175, %176 : vector<8x256xf32>
    %178 = arith.addf %169, %177 : vector<8x256xf32>
    %179 = vector.extract_strided_slice %7 {offsets = [0, 25], sizes = [8, 1], strides = [1, 1]} : vector<8x36xf32> to vector<8x1xf32>
    %180 = vector.extract_strided_slice %172 {offsets = [1, 0], sizes = [1, 256], strides = [1, 1]} : vector<4x256xf32> to vector<1x256xf32>
    %181 = vector.broadcast %179 : vector<8x1xf32> to vector<8x256xf32>
    %182 = vector.broadcast %180 : vector<1x256xf32> to vector<8x256xf32>
    %183 = arith.mulf %181, %182 : vector<8x256xf32>
    %184 = arith.addf %178, %183 : vector<8x256xf32>
    %185 = vector.extract_strided_slice %7 {offsets = [0, 26], sizes = [8, 1], strides = [1, 1]} : vector<8x36xf32> to vector<8x1xf32>
    %186 = vector.extract_strided_slice %172 {offsets = [2, 0], sizes = [1, 256], strides = [1, 1]} : vector<4x256xf32> to vector<1x256xf32>
    %187 = vector.broadcast %185 : vector<8x1xf32> to vector<8x256xf32>
    %188 = vector.broadcast %186 : vector<1x256xf32> to vector<8x256xf32>
    %189 = arith.mulf %187, %188 : vector<8x256xf32>
    %190 = arith.addf %184, %189 : vector<8x256xf32>
    %191 = vector.extract_strided_slice %7 {offsets = [0, 27], sizes = [8, 1], strides = [1, 1]} : vector<8x36xf32> to vector<8x1xf32>
    %192 = vector.extract_strided_slice %172 {offsets = [3, 0], sizes = [1, 256], strides = [1, 1]} : vector<4x256xf32> to vector<1x256xf32>
    %193 = vector.broadcast %191 : vector<8x1xf32> to vector<8x256xf32>
    %194 = vector.broadcast %192 : vector<1x256xf32> to vector<8x256xf32>
    %195 = arith.mulf %193, %194 : vector<8x256xf32>
    %196 = arith.addf %190, %195 : vector<8x256xf32>
    %c0_21 = arith.constant 0 : index
    %c144 = arith.constant 144 : index
    %197 = vector.load %arg8[%c0_21, %c144] : memref<8x512xf32, #tpu.memory_space<vmem>>, vector<4x256xf32>
    %198 = vector.extract_strided_slice %7 {offsets = [0, 28], sizes = [8, 1], strides = [1, 1]} : vector<8x36xf32> to vector<8x1xf32>
    %199 = vector.extract_strided_slice %197 {offsets = [0, 0], sizes = [1, 256], strides = [1, 1]} : vector<4x256xf32> to vector<1x256xf32>
    %200 = vector.broadcast %198 : vector<8x1xf32> to vector<8x256xf32>
    %201 = vector.broadcast %199 : vector<1x256xf32> to vector<8x256xf32>
    %202 = arith.mulf %200, %201 : vector<8x256xf32>
    %203 = arith.addf %196, %202 : vector<8x256xf32>
    %204 = vector.extract_strided_slice %7 {offsets = [0, 29], sizes = [8, 1], strides = [1, 1]} : vector<8x36xf32> to vector<8x1xf32>
    %205 = vector.extract_strided_slice %197 {offsets = [1, 0], sizes = [1, 256], strides = [1, 1]} : vector<4x256xf32> to vector<1x256xf32>
    %206 = vector.broadcast %204 : vector<8x1xf32> to vector<8x256xf32>
    %207 = vector.broadcast %205 : vector<1x256xf32> to vector<8x256xf32>
    %208 = arith.mulf %206, %207 : vector<8x256xf32>
    %209 = arith.addf %203, %208 : vector<8x256xf32>
    %210 = vector.extract_strided_slice %7 {offsets = [0, 30], sizes = [8, 1], strides = [1, 1]} : vector<8x36xf32> to vector<8x1xf32>
    %211 = vector.extract_strided_slice %197 {offsets = [2, 0], sizes = [1, 256], strides = [1, 1]} : vector<4x256xf32> to vector<1x256xf32>
    %212 = vector.broadcast %210 : vector<8x1xf32> to vector<8x256xf32>
    %213 = vector.broadcast %211 : vector<1x256xf32> to vector<8x256xf32>
    %214 = arith.mulf %212, %213 : vector<8x256xf32>
    %215 = arith.addf %209, %214 : vector<8x256xf32>
    %216 = vector.extract_strided_slice %7 {offsets = [0, 31], sizes = [8, 1], strides = [1, 1]} : vector<8x36xf32> to vector<8x1xf32>
    %217 = vector.extract_strided_slice %197 {offsets = [3, 0], sizes = [1, 256], strides = [1, 1]} : vector<4x256xf32> to vector<1x256xf32>
    %218 = vector.broadcast %216 : vector<8x1xf32> to vector<8x256xf32>
    %219 = vector.broadcast %217 : vector<1x256xf32> to vector<8x256xf32>
    %220 = arith.mulf %218, %219 : vector<8x256xf32>
    %221 = arith.addf %215, %220 : vector<8x256xf32>
    %c0_22 = arith.constant 0 : index
    %c145 = arith.constant 145 : index
    %222 = vector.load %arg8[%c0_22, %c145] : memref<8x512xf32, #tpu.memory_space<vmem>>, vector<4x256xf32>
    %223 = vector.broadcast %1 : vector<1x256xf32> to vector<4x256xf32>
    %224 = arith.mulf %222, %223 : vector<4x256xf32>
    %225 = vector.extract_strided_slice %7 {offsets = [0, 32], sizes = [8, 1], strides = [1, 1]} : vector<8x36xf32> to vector<8x1xf32>
    %226 = vector.extract_strided_slice %224 {offsets = [0, 0], sizes = [1, 256], strides = [1, 1]} : vector<4x256xf32> to vector<1x256xf32>
    %227 = vector.broadcast %225 : vector<8x1xf32> to vector<8x256xf32>
    %228 = vector.broadcast %226 : vector<1x256xf32> to vector<8x256xf32>
    %229 = arith.mulf %227, %228 : vector<8x256xf32>
    %230 = arith.addf %221, %229 : vector<8x256xf32>
    %231 = vector.extract_strided_slice %7 {offsets = [0, 33], sizes = [8, 1], strides = [1, 1]} : vector<8x36xf32> to vector<8x1xf32>
    %232 = vector.extract_strided_slice %224 {offsets = [1, 0], sizes = [1, 256], strides = [1, 1]} : vector<4x256xf32> to vector<1x256xf32>
    %233 = vector.broadcast %231 : vector<8x1xf32> to vector<8x256xf32>
    %234 = vector.broadcast %232 : vector<1x256xf32> to vector<8x256xf32>
    %235 = arith.mulf %233, %234 : vector<8x256xf32>
    %236 = arith.addf %230, %235 : vector<8x256xf32>
    %237 = vector.extract_strided_slice %7 {offsets = [0, 34], sizes = [8, 1], strides = [1, 1]} : vector<8x36xf32> to vector<8x1xf32>
    %238 = vector.extract_strided_slice %224 {offsets = [2, 0], sizes = [1, 256], strides = [1, 1]} : vector<4x256xf32> to vector<1x256xf32>
    %239 = vector.broadcast %237 : vector<8x1xf32> to vector<8x256xf32>
    %240 = vector.broadcast %238 : vector<1x256xf32> to vector<8x256xf32>
    %241 = arith.mulf %239, %240 : vector<8x256xf32>
    %242 = arith.addf %236, %241 : vector<8x256xf32>
    %243 = vector.extract_strided_slice %7 {offsets = [0, 35], sizes = [8, 1], strides = [1, 1]} : vector<8x36xf32> to vector<8x1xf32>
    %244 = vector.extract_strided_slice %224 {offsets = [3, 0], sizes = [1, 256], strides = [1, 1]} : vector<4x256xf32> to vector<1x256xf32>
    %245 = vector.broadcast %243 : vector<8x1xf32> to vector<8x256xf32>
    %246 = vector.broadcast %244 : vector<1x256xf32> to vector<8x256xf32>
    %247 = arith.mulf %245, %246 : vector<8x256xf32>
    %248 = arith.addf %242, %247 : vector<8x256xf32>
    %249 = arith.negf %248 : vector<8x256xf32>
    %250 = math.exp %249 : vector<8x256xf32>
    %cst_23 = arith.constant 1.000000e+00 : f32
    %251 = vector.broadcast %cst_23 : f32 to vector<8x256xf32>
    %252 = arith.addf %251, %250 : vector<8x256xf32>
    %253 = arith.divf %251, %252 : vector<8x256xf32>
    %c0_24 = arith.constant 0 : index
    %c128_25 = arith.constant 128 : index
    %254 = vector.load %arg8[%c0_24, %c128_25] : memref<8x512xf32, #tpu.memory_space<vmem>>, vector<8x256xf32>
    tpu.vector_store %arg8[%c0_24, %c128_25], %253 {strides = array<i32>} : memref<8x512xf32, #tpu.memory_space<vmem>>, vector<8x256xf32>,
    %c0_26 = arith.constant 0 : index
    %c0_27 = arith.constant 0 : index
    %255 = vector.load %arg5[%c0_26, %c0_27] : memref<8x72xf32, #tpu.memory_space<vmem>>, vector<8x72xf32>
    %cst_28 = arith.constant 0.000000e+00 : f32
    %256 = vector.broadcast %cst_28 : f32 to vector<8x256xf32>
    %c0_29 = arith.constant 0 : index
    %c0_30 = arith.constant 0 : index
    %257 = vector.load %arg6[%c0_29, %c0_30] : memref<8x1xf32, #tpu.memory_space<vmem>>, vector<8x1xf32>
    %258 = vector.broadcast %257 : vector<8x1xf32> to vector<8x256xf32>
    %259 = arith.addf %256, %258 : vector<8x256xf32>
    %c0_31 = arith.constant 0 : index
    %c111_32 = arith.constant 111 : index
    %260 = vector.load %arg8[%c0_31, %c111_32] : memref<8x512xf32, #tpu.memory_space<vmem>>, vector<8x256xf32>
    %261 = vector.broadcast %0 : vector<1x256xf32> to vector<8x256xf32>
    %262 = arith.mulf %260, %261 : vector<8x256xf32>
    %263 = vector.extract_strided_slice %255 {offsets = [0, 0], sizes = [8, 1], strides = [1, 1]} : vector<8x72xf32> to vector<8x1xf32>
    %264 = vector.extract_strided_slice %262 {offsets = [0, 0], sizes = [1, 256], strides = [1, 1]} : vector<8x256xf32> to vector<1x256xf32>
    %265 = vector.broadcast %263 : vector<8x1xf32> to vector<8x256xf32>
    %266 = vector.broadcast %264 : vector<1x256xf32> to vector<8x256xf32>
    %267 = arith.mulf %265, %266 : vector<8x256xf32>
    %268 = arith.addf %259, %267 : vector<8x256xf32>
    %269 = vector.extract_strided_slice %255 {offsets = [0, 1], sizes = [8, 1], strides = [1, 1]} : vector<8x72xf32> to vector<8x1xf32>
    %270 = vector.extract_strided_slice %262 {offsets = [1, 0], sizes = [1, 256], strides = [1, 1]} : vector<8x256xf32> to vector<1x256xf32>
    %271 = vector.broadcast %269 : vector<8x1xf32> to vector<8x256xf32>
    %272 = vector.broadcast %270 : vector<1x256xf32> to vector<8x256xf32>
    %273 = arith.mulf %271, %272 : vector<8x256xf32>
    %274 = arith.addf %268, %273 : vector<8x256xf32>
    %275 = vector.extract_strided_slice %255 {offsets = [0, 2], sizes = [8, 1], strides = [1, 1]} : vector<8x72xf32> to vector<8x1xf32>
    %276 = vector.extract_strided_slice %262 {offsets = [2, 0], sizes = [1, 256], strides = [1, 1]} : vector<8x256xf32> to vector<1x256xf32>
    %277 = vector.broadcast %275 : vector<8x1xf32> to vector<8x256xf32>
    %278 = vector.broadcast %276 : vector<1x256xf32> to vector<8x256xf32>
    %279 = arith.mulf %277, %278 : vector<8x256xf32>
    %280 = arith.addf %274, %279 : vector<8x256xf32>
    %281 = vector.extract_strided_slice %255 {offsets = [0, 3], sizes = [8, 1], strides = [1, 1]} : vector<8x72xf32> to vector<8x1xf32>
    %282 = vector.extract_strided_slice %262 {offsets = [3, 0], sizes = [1, 256], strides = [1, 1]} : vector<8x256xf32> to vector<1x256xf32>
    %283 = vector.broadcast %281 : vector<8x1xf32> to vector<8x256xf32>
    %284 = vector.broadcast %282 : vector<1x256xf32> to vector<8x256xf32>
    %285 = arith.mulf %283, %284 : vector<8x256xf32>
    %286 = arith.addf %280, %285 : vector<8x256xf32>
    %287 = vector.extract_strided_slice %255 {offsets = [0, 4], sizes = [8, 1], strides = [1, 1]} : vector<8x72xf32> to vector<8x1xf32>
    %288 = vector.extract_strided_slice %262 {offsets = [4, 0], sizes = [1, 256], strides = [1, 1]} : vector<8x256xf32> to vector<1x256xf32>
    %289 = vector.broadcast %287 : vector<8x1xf32> to vector<8x256xf32>
    %290 = vector.broadcast %288 : vector<1x256xf32> to vector<8x256xf32>
    %291 = arith.mulf %289, %290 : vector<8x256xf32>
    %292 = arith.addf %286, %291 : vector<8x256xf32>
    %293 = vector.extract_strided_slice %255 {offsets = [0, 5], sizes = [8, 1], strides = [1, 1]} : vector<8x72xf32> to vector<8x1xf32>
    %294 = vector.extract_strided_slice %262 {offsets = [5, 0], sizes = [1, 256], strides = [1, 1]} : vector<8x256xf32> to vector<1x256xf32>
    %295 = vector.broadcast %293 : vector<8x1xf32> to vector<8x256xf32>
    %296 = vector.broadcast %294 : vector<1x256xf32> to vector<8x256xf32>
    %297 = arith.mulf %295, %296 : vector<8x256xf32>
    %298 = arith.addf %292, %297 : vector<8x256xf32>
    %299 = vector.extract_strided_slice %255 {offsets = [0, 6], sizes = [8, 1], strides = [1, 1]} : vector<8x72xf32> to vector<8x1xf32>
    %300 = vector.extract_strided_slice %262 {offsets = [6, 0], sizes = [1, 256], strides = [1, 1]} : vector<8x256xf32> to vector<1x256xf32>
    %301 = vector.broadcast %299 : vector<8x1xf32> to vector<8x256xf32>
    %302 = vector.broadcast %300 : vector<1x256xf32> to vector<8x256xf32>
    %303 = arith.mulf %301, %302 : vector<8x256xf32>
    %304 = arith.addf %298, %303 : vector<8x256xf32>
    %305 = vector.extract_strided_slice %255 {offsets = [0, 7], sizes = [8, 1], strides = [1, 1]} : vector<8x72xf32> to vector<8x1xf32>
    %306 = vector.extract_strided_slice %262 {offsets = [7, 0], sizes = [1, 256], strides = [1, 1]} : vector<8x256xf32> to vector<1x256xf32>
    %307 = vector.broadcast %305 : vector<8x1xf32> to vector<8x256xf32>
    %308 = vector.broadcast %306 : vector<1x256xf32> to vector<8x256xf32>
    %309 = arith.mulf %307, %308 : vector<8x256xf32>
    %310 = arith.addf %304, %309 : vector<8x256xf32>
    %c0_33 = arith.constant 0 : index
    %c112_34 = arith.constant 112 : index
    %311 = vector.load %arg8[%c0_33, %c112_34] : memref<8x512xf32, #tpu.memory_space<vmem>>, vector<8x256xf32>
    %312 = vector.extract_strided_slice %255 {offsets = [0, 8], sizes = [8, 1], strides = [1, 1]} : vector<8x72xf32> to vector<8x1xf32>
    %313 = vector.extract_strided_slice %311 {offsets = [0, 0], sizes = [1, 256], strides = [1, 1]} : vector<8x256xf32> to vector<1x256xf32>
    %314 = vector.broadcast %312 : vector<8x1xf32> to vector<8x256xf32>
    %315 = vector.broadcast %313 : vector<1x256xf32> to vector<8x256xf32>
    %316 = arith.mulf %314, %315 : vector<8x256xf32>
    %317 = arith.addf %310, %316 : vector<8x256xf32>
    %318 = vector.extract_strided_slice %255 {offsets = [0, 9], sizes = [8, 1], strides = [1, 1]} : vector<8x72xf32> to vector<8x1xf32>
    %319 = vector.extract_strided_slice %311 {offsets = [1, 0], sizes = [1, 256], strides = [1, 1]} : vector<8x256xf32> to vector<1x256xf32>
    %320 = vector.broadcast %318 : vector<8x1xf32> to vector<8x256xf32>
    %321 = vector.broadcast %319 : vector<1x256xf32> to vector<8x256xf32>
    %322 = arith.mulf %320, %321 : vector<8x256xf32>
    %323 = arith.addf %317, %322 : vector<8x256xf32>
    %324 = vector.extract_strided_slice %255 {offsets = [0, 10], sizes = [8, 1], strides = [1, 1]} : vector<8x72xf32> to vector<8x1xf32>
    %325 = vector.extract_strided_slice %311 {offsets = [2, 0], sizes = [1, 256], strides = [1, 1]} : vector<8x256xf32> to vector<1x256xf32>
    %326 = vector.broadcast %324 : vector<8x1xf32> to vector<8x256xf32>
    %327 = vector.broadcast %325 : vector<1x256xf32> to vector<8x256xf32>
    %328 = arith.mulf %326, %327 : vector<8x256xf32>
    %329 = arith.addf %323, %328 : vector<8x256xf32>
    %330 = vector.extract_strided_slice %255 {offsets = [0, 11], sizes = [8, 1], strides = [1, 1]} : vector<8x72xf32> to vector<8x1xf32>
    %331 = vector.extract_strided_slice %311 {offsets = [3, 0], sizes = [1, 256], strides = [1, 1]} : vector<8x256xf32> to vector<1x256xf32>
    %332 = vector.broadcast %330 : vector<8x1xf32> to vector<8x256xf32>
    %333 = vector.broadcast %331 : vector<1x256xf32> to vector<8x256xf32>
    %334 = arith.mulf %332, %333 : vector<8x256xf32>
    %335 = arith.addf %329, %334 : vector<8x256xf32>
    %336 = vector.extract_strided_slice %255 {offsets = [0, 12], sizes = [8, 1], strides = [1, 1]} : vector<8x72xf32> to vector<8x1xf32>
    %337 = vector.extract_strided_slice %311 {offsets = [4, 0], sizes = [1, 256], strides = [1, 1]} : vector<8x256xf32> to vector<1x256xf32>
    %338 = vector.broadcast %336 : vector<8x1xf32> to vector<8x256xf32>
    %339 = vector.broadcast %337 : vector<1x256xf32> to vector<8x256xf32>
    %340 = arith.mulf %338, %339 : vector<8x256xf32>
    %341 = arith.addf %335, %340 : vector<8x256xf32>
    %342 = vector.extract_strided_slice %255 {offsets = [0, 13], sizes = [8, 1], strides = [1, 1]} : vector<8x72xf32> to vector<8x1xf32>
    %343 = vector.extract_strided_slice %311 {offsets = [5, 0], sizes = [1, 256], strides = [1, 1]} : vector<8x256xf32> to vector<1x256xf32>
    %344 = vector.broadcast %342 : vector<8x1xf32> to vector<8x256xf32>
    %345 = vector.broadcast %343 : vector<1x256xf32> to vector<8x256xf32>
    %346 = arith.mulf %344, %345 : vector<8x256xf32>
    %347 = arith.addf %341, %346 : vector<8x256xf32>
    %348 = vector.extract_strided_slice %255 {offsets = [0, 14], sizes = [8, 1], strides = [1, 1]} : vector<8x72xf32> to vector<8x1xf32>
    %349 = vector.extract_strided_slice %311 {offsets = [6, 0], sizes = [1, 256], strides = [1, 1]} : vector<8x256xf32> to vector<1x256xf32>
    %350 = vector.broadcast %348 : vector<8x1xf32> to vector<8x256xf32>
    %351 = vector.broadcast %349 : vector<1x256xf32> to vector<8x256xf32>
    %352 = arith.mulf %350, %351 : vector<8x256xf32>
    %353 = arith.addf %347, %352 : vector<8x256xf32>
    %354 = vector.extract_strided_slice %255 {offsets = [0, 15], sizes = [8, 1], strides = [1, 1]} : vector<8x72xf32> to vector<8x1xf32>
    %355 = vector.extract_strided_slice %311 {offsets = [7, 0], sizes = [1, 256], strides = [1, 1]} : vector<8x256xf32> to vector<1x256xf32>
    %356 = vector.broadcast %354 : vector<8x1xf32> to vector<8x256xf32>
    %357 = vector.broadcast %355 : vector<1x256xf32> to vector<8x256xf32>
    %358 = arith.mulf %356, %357 : vector<8x256xf32>
    %359 = arith.addf %353, %358 : vector<8x256xf32>
    %c0_35 = arith.constant 0 : index
    %c113_36 = arith.constant 113 : index
    %360 = vector.load %arg8[%c0_35, %c113_36] : memref<8x512xf32, #tpu.memory_space<vmem>>, vector<8x256xf32>
    %361 = vector.broadcast %1 : vector<1x256xf32> to vector<8x256xf32>
    %362 = arith.mulf %360, %361 : vector<8x256xf32>
    %363 = vector.extract_strided_slice %255 {offsets = [0, 16], sizes = [8, 1], strides = [1, 1]} : vector<8x72xf32> to vector<8x1xf32>
    %364 = vector.extract_strided_slice %362 {offsets = [0, 0], sizes = [1, 256], strides = [1, 1]} : vector<8x256xf32> to vector<1x256xf32>
    %365 = vector.broadcast %363 : vector<8x1xf32> to vector<8x256xf32>
    %366 = vector.broadcast %364 : vector<1x256xf32> to vector<8x256xf32>
    %367 = arith.mulf %365, %366 : vector<8x256xf32>
    %368 = arith.addf %359, %367 : vector<8x256xf32>
    %369 = vector.extract_strided_slice %255 {offsets = [0, 17], sizes = [8, 1], strides = [1, 1]} : vector<8x72xf32> to vector<8x1xf32>
    %370 = vector.extract_strided_slice %362 {offsets = [1, 0], sizes = [1, 256], strides = [1, 1]} : vector<8x256xf32> to vector<1x256xf32>
    %371 = vector.broadcast %369 : vector<8x1xf32> to vector<8x256xf32>
    %372 = vector.broadcast %370 : vector<1x256xf32> to vector<8x256xf32>
    %373 = arith.mulf %371, %372 : vector<8x256xf32>
    %374 = arith.addf %368, %373 : vector<8x256xf32>
    %375 = vector.extract_strided_slice %255 {offsets = [0, 18], sizes = [8, 1], strides = [1, 1]} : vector<8x72xf32> to vector<8x1xf32>
    %376 = vector.extract_strided_slice %362 {offsets = [2, 0], sizes = [1, 256], strides = [1, 1]} : vector<8x256xf32> to vector<1x256xf32>
    %377 = vector.broadcast %375 : vector<8x1xf32> to vector<8x256xf32>
    %378 = vector.broadcast %376 : vector<1x256xf32> to vector<8x256xf32>
    %379 = arith.mulf %377, %378 : vector<8x256xf32>
    %380 = arith.addf %374, %379 : vector<8x256xf32>
    %381 = vector.extract_strided_slice %255 {offsets = [0, 19], sizes = [8, 1], strides = [1, 1]} : vector<8x72xf32> to vector<8x1xf32>
    %382 = vector.extract_strided_slice %362 {offsets = [3, 0], sizes = [1, 256], strides = [1, 1]} : vector<8x256xf32> to vector<1x256xf32>
    %383 = vector.broadcast %381 : vector<8x1xf32> to vector<8x256xf32>
    %384 = vector.broadcast %382 : vector<1x256xf32> to vector<8x256xf32>
    %385 = arith.mulf %383, %384 : vector<8x256xf32>
    %386 = arith.addf %380, %385 : vector<8x256xf32>
    %387 = vector.extract_strided_slice %255 {offsets = [0, 20], sizes = [8, 1], strides = [1, 1]} : vector<8x72xf32> to vector<8x1xf32>
    %388 = vector.extract_strided_slice %362 {offsets = [4, 0], sizes = [1, 256], strides = [1, 1]} : vector<8x256xf32> to vector<1x256xf32>
    %389 = vector.broadcast %387 : vector<8x1xf32> to vector<8x256xf32>
    %390 = vector.broadcast %388 : vector<1x256xf32> to vector<8x256xf32>
    %391 = arith.mulf %389, %390 : vector<8x256xf32>
    %392 = arith.addf %386, %391 : vector<8x256xf32>
    %393 = vector.extract_strided_slice %255 {offsets = [0, 21], sizes = [8, 1], strides = [1, 1]} : vector<8x72xf32> to vector<8x1xf32>
    %394 = vector.extract_strided_slice %362 {offsets = [5, 0], sizes = [1, 256], strides = [1, 1]} : vector<8x256xf32> to vector<1x256xf32>
    %395 = vector.broadcast %393 : vector<8x1xf32> to vector<8x256xf32>
    %396 = vector.broadcast %394 : vector<1x256xf32> to vector<8x256xf32>
    %397 = arith.mulf %395, %396 : vector<8x256xf32>
    %398 = arith.addf %392, %397 : vector<8x256xf32>
    %399 = vector.extract_strided_slice %255 {offsets = [0, 22], sizes = [8, 1], strides = [1, 1]} : vector<8x72xf32> to vector<8x1xf32>
    %400 = vector.extract_strided_slice %362 {offsets = [6, 0], sizes = [1, 256], strides = [1, 1]} : vector<8x256xf32> to vector<1x256xf32>
    %401 = vector.broadcast %399 : vector<8x1xf32> to vector<8x256xf32>
    %402 = vector.broadcast %400 : vector<1x256xf32> to vector<8x256xf32>
    %403 = arith.mulf %401, %402 : vector<8x256xf32>
    %404 = arith.addf %398, %403 : vector<8x256xf32>
    %405 = vector.extract_strided_slice %255 {offsets = [0, 23], sizes = [8, 1], strides = [1, 1]} : vector<8x72xf32> to vector<8x1xf32>
    %406 = vector.extract_strided_slice %362 {offsets = [7, 0], sizes = [1, 256], strides = [1, 1]} : vector<8x256xf32> to vector<1x256xf32>
    %407 = vector.broadcast %405 : vector<8x1xf32> to vector<8x256xf32>
    %408 = vector.broadcast %406 : vector<1x256xf32> to vector<8x256xf32>
    %409 = arith.mulf %407, %408 : vector<8x256xf32>
    %410 = arith.addf %404, %409 : vector<8x256xf32>
    %c0_37 = arith.constant 0 : index
    %c127_38 = arith.constant 127 : index
    %411 = vector.load %arg8[%c0_37, %c127_38] : memref<8x512xf32, #tpu.memory_space<vmem>>, vector<8x256xf32>
    %412 = vector.broadcast %0 : vector<1x256xf32> to vector<8x256xf32>
    %413 = arith.mulf %411, %412 : vector<8x256xf32>
    %414 = vector.extract_strided_slice %255 {offsets = [0, 24], sizes = [8, 1], strides = [1, 1]} : vector<8x72xf32> to vector<8x1xf32>
    %415 = vector.extract_strided_slice %413 {offsets = [0, 0], sizes = [1, 256], strides = [1, 1]} : vector<8x256xf32> to vector<1x256xf32>
    %416 = vector.broadcast %414 : vector<8x1xf32> to vector<8x256xf32>
    %417 = vector.broadcast %415 : vector<1x256xf32> to vector<8x256xf32>
    %418 = arith.mulf %416, %417 : vector<8x256xf32>
    %419 = arith.addf %410, %418 : vector<8x256xf32>
    %420 = vector.extract_strided_slice %255 {offsets = [0, 25], sizes = [8, 1], strides = [1, 1]} : vector<8x72xf32> to vector<8x1xf32>
    %421 = vector.extract_strided_slice %413 {offsets = [1, 0], sizes = [1, 256], strides = [1, 1]} : vector<8x256xf32> to vector<1x256xf32>
    %422 = vector.broadcast %420 : vector<8x1xf32> to vector<8x256xf32>
    %423 = vector.broadcast %421 : vector<1x256xf32> to vector<8x256xf32>
    %424 = arith.mulf %422, %423 : vector<8x256xf32>
    %425 = arith.addf %419, %424 : vector<8x256xf32>
    %426 = vector.extract_strided_slice %255 {offsets = [0, 26], sizes = [8, 1], strides = [1, 1]} : vector<8x72xf32> to vector<8x1xf32>
    %427 = vector.extract_strided_slice %413 {offsets = [2, 0], sizes = [1, 256], strides = [1, 1]} : vector<8x256xf32> to vector<1x256xf32>
    %428 = vector.broadcast %426 : vector<8x1xf32> to vector<8x256xf32>
    %429 = vector.broadcast %427 : vector<1x256xf32> to vector<8x256xf32>
    %430 = arith.mulf %428, %429 : vector<8x256xf32>
    %431 = arith.addf %425, %430 : vector<8x256xf32>
    %432 = vector.extract_strided_slice %255 {offsets = [0, 27], sizes = [8, 1], strides = [1, 1]} : vector<8x72xf32> to vector<8x1xf32>
    %433 = vector.extract_strided_slice %413 {offsets = [3, 0], sizes = [1, 256], strides = [1, 1]} : vector<8x256xf32> to vector<1x256xf32>
    %434 = vector.broadcast %432 : vector<8x1xf32> to vector<8x256xf32>
    %435 = vector.broadcast %433 : vector<1x256xf32> to vector<8x256xf32>
    %436 = arith.mulf %434, %435 : vector<8x256xf32>
    %437 = arith.addf %431, %436 : vector<8x256xf32>
    %438 = vector.extract_strided_slice %255 {offsets = [0, 28], sizes = [8, 1], strides = [1, 1]} : vector<8x72xf32> to vector<8x1xf32>
    %439 = vector.extract_strided_slice %413 {offsets = [4, 0], sizes = [1, 256], strides = [1, 1]} : vector<8x256xf32> to vector<1x256xf32>
    %440 = vector.broadcast %438 : vector<8x1xf32> to vector<8x256xf32>
    %441 = vector.broadcast %439 : vector<1x256xf32> to vector<8x256xf32>
    %442 = arith.mulf %440, %441 : vector<8x256xf32>
    %443 = arith.addf %437, %442 : vector<8x256xf32>
    %444 = vector.extract_strided_slice %255 {offsets = [0, 29], sizes = [8, 1], strides = [1, 1]} : vector<8x72xf32> to vector<8x1xf32>
    %445 = vector.extract_strided_slice %413 {offsets = [5, 0], sizes = [1, 256], strides = [1, 1]} : vector<8x256xf32> to vector<1x256xf32>
    %446 = vector.broadcast %444 : vector<8x1xf32> to vector<8x256xf32>
    %447 = vector.broadcast %445 : vector<1x256xf32> to vector<8x256xf32>
    %448 = arith.mulf %446, %447 : vector<8x256xf32>
    %449 = arith.addf %443, %448 : vector<8x256xf32>
    %450 = vector.extract_strided_slice %255 {offsets = [0, 30], sizes = [8, 1], strides = [1, 1]} : vector<8x72xf32> to vector<8x1xf32>
    %451 = vector.extract_strided_slice %413 {offsets = [6, 0], sizes = [1, 256], strides = [1, 1]} : vector<8x256xf32> to vector<1x256xf32>
    %452 = vector.broadcast %450 : vector<8x1xf32> to vector<8x256xf32>
    %453 = vector.broadcast %451 : vector<1x256xf32> to vector<8x256xf32>
    %454 = arith.mulf %452, %453 : vector<8x256xf32>
    %455 = arith.addf %449, %454 : vector<8x256xf32>
    %456 = vector.extract_strided_slice %255 {offsets = [0, 31], sizes = [8, 1], strides = [1, 1]} : vector<8x72xf32> to vector<8x1xf32>
    %457 = vector.extract_strided_slice %413 {offsets = [7, 0], sizes = [1, 256], strides = [1, 1]} : vector<8x256xf32> to vector<1x256xf32>
    %458 = vector.broadcast %456 : vector<8x1xf32> to vector<8x256xf32>
    %459 = vector.broadcast %457 : vector<1x256xf32> to vector<8x256xf32>
    %460 = arith.mulf %458, %459 : vector<8x256xf32>
    %461 = arith.addf %455, %460 : vector<8x256xf32>
    %c0_39 = arith.constant 0 : index
    %c128_40 = arith.constant 128 : index
    %462 = vector.load %arg8[%c0_39, %c128_40] : memref<8x512xf32, #tpu.memory_space<vmem>>, vector<8x256xf32>
    %463 = vector.extract_strided_slice %255 {offsets = [0, 32], sizes = [8, 1], strides = [1, 1]} : vector<8x72xf32> to vector<8x1xf32>
    %464 = vector.extract_strided_slice %462 {offsets = [0, 0], sizes = [1, 256], strides = [1, 1]} : vector<8x256xf32> to vector<1x256xf32>
    %465 = vector.broadcast %463 : vector<8x1xf32> to vector<8x256xf32>
    %466 = vector.broadcast %464 : vector<1x256xf32> to vector<8x256xf32>
    %467 = arith.mulf %465, %466 : vector<8x256xf32>
    %468 = arith.addf %461, %467 : vector<8x256xf32>
    %469 = vector.extract_strided_slice %255 {offsets = [0, 33], sizes = [8, 1], strides = [1, 1]} : vector<8x72xf32> to vector<8x1xf32>
    %470 = vector.extract_strided_slice %462 {offsets = [1, 0], sizes = [1, 256], strides = [1, 1]} : vector<8x256xf32> to vector<1x256xf32>
    %471 = vector.broadcast %469 : vector<8x1xf32> to vector<8x256xf32>
    %472 = vector.broadcast %470 : vector<1x256xf32> to vector<8x256xf32>
    %473 = arith.mulf %471, %472 : vector<8x256xf32>
    %474 = arith.addf %468, %473 : vector<8x256xf32>
    %475 = vector.extract_strided_slice %255 {offsets = [0, 34], sizes = [8, 1], strides = [1, 1]} : vector<8x72xf32> to vector<8x1xf32>
    %476 = vector.extract_strided_slice %462 {offsets = [2, 0], sizes = [1, 256], strides = [1, 1]} : vector<8x256xf32> to vector<1x256xf32>
    %477 = vector.broadcast %475 : vector<8x1xf32> to vector<8x256xf32>
    %478 = vector.broadcast %476 : vector<1x256xf32> to vector<8x256xf32>
    %479 = arith.mulf %477, %478 : vector<8x256xf32>
    %480 = arith.addf %474, %479 : vector<8x256xf32>
    %481 = vector.extract_strided_slice %255 {offsets = [0, 35], sizes = [8, 1], strides = [1, 1]} : vector<8x72xf32> to vector<8x1xf32>
    %482 = vector.extract_strided_slice %462 {offsets = [3, 0], sizes = [1, 256], strides = [1, 1]} : vector<8x256xf32> to vector<1x256xf32>
    %483 = vector.broadcast %481 : vector<8x1xf32> to vector<8x256xf32>
    %484 = vector.broadcast %482 : vector<1x256xf32> to vector<8x256xf32>
    %485 = arith.mulf %483, %484 : vector<8x256xf32>
    %486 = arith.addf %480, %485 : vector<8x256xf32>
    %487 = vector.extract_strided_slice %255 {offsets = [0, 36], sizes = [8, 1], strides = [1, 1]} : vector<8x72xf32> to vector<8x1xf32>
    %488 = vector.extract_strided_slice %462 {offsets = [4, 0], sizes = [1, 256], strides = [1, 1]} : vector<8x256xf32> to vector<1x256xf32>
    %489 = vector.broadcast %487 : vector<8x1xf32> to vector<8x256xf32>
    %490 = vector.broadcast %488 : vector<1x256xf32> to vector<8x256xf32>
    %491 = arith.mulf %489, %490 : vector<8x256xf32>
    %492 = arith.addf %486, %491 : vector<8x256xf32>
    %493 = vector.extract_strided_slice %255 {offsets = [0, 37], sizes = [8, 1], strides = [1, 1]} : vector<8x72xf32> to vector<8x1xf32>
    %494 = vector.extract_strided_slice %462 {offsets = [5, 0], sizes = [1, 256], strides = [1, 1]} : vector<8x256xf32> to vector<1x256xf32>
    %495 = vector.broadcast %493 : vector<8x1xf32> to vector<8x256xf32>
    %496 = vector.broadcast %494 : vector<1x256xf32> to vector<8x256xf32>
    %497 = arith.mulf %495, %496 : vector<8x256xf32>
    %498 = arith.addf %492, %497 : vector<8x256xf32>
    %499 = vector.extract_strided_slice %255 {offsets = [0, 38], sizes = [8, 1], strides = [1, 1]} : vector<8x72xf32> to vector<8x1xf32>
    %500 = vector.extract_strided_slice %462 {offsets = [6, 0], sizes = [1, 256], strides = [1, 1]} : vector<8x256xf32> to vector<1x256xf32>
    %501 = vector.broadcast %499 : vector<8x1xf32> to vector<8x256xf32>
    %502 = vector.broadcast %500 : vector<1x256xf32> to vector<8x256xf32>
    %503 = arith.mulf %501, %502 : vector<8x256xf32>
    %504 = arith.addf %498, %503 : vector<8x256xf32>
    %505 = vector.extract_strided_slice %255 {offsets = [0, 39], sizes = [8, 1], strides = [1, 1]} : vector<8x72xf32> to vector<8x1xf32>
    %506 = vector.extract_strided_slice %462 {offsets = [7, 0], sizes = [1, 256], strides = [1, 1]} : vector<8x256xf32> to vector<1x256xf32>
    %507 = vector.broadcast %505 : vector<8x1xf32> to vector<8x256xf32>
    %508 = vector.broadcast %506 : vector<1x256xf32> to vector<8x256xf32>
    %509 = arith.mulf %507, %508 : vector<8x256xf32>
    %510 = arith.addf %504, %509 : vector<8x256xf32>
    %c0_41 = arith.constant 0 : index
    %c129_42 = arith.constant 129 : index
    %511 = vector.load %arg8[%c0_41, %c129_42] : memref<8x512xf32, #tpu.memory_space<vmem>>, vector<8x256xf32>
    %512 = vector.broadcast %1 : vector<1x256xf32> to vector<8x256xf32>
    %513 = arith.mulf %511, %512 : vector<8x256xf32>
    %514 = vector.extract_strided_slice %255 {offsets = [0, 40], sizes = [8, 1], strides = [1, 1]} : vector<8x72xf32> to vector<8x1xf32>
    %515 = vector.extract_strided_slice %513 {offsets = [0, 0], sizes = [1, 256], strides = [1, 1]} : vector<8x256xf32> to vector<1x256xf32>
    %516 = vector.broadcast %514 : vector<8x1xf32> to vector<8x256xf32>
    %517 = vector.broadcast %515 : vector<1x256xf32> to vector<8x256xf32>
    %518 = arith.mulf %516, %517 : vector<8x256xf32>
    %519 = arith.addf %510, %518 : vector<8x256xf32>
    %520 = vector.extract_strided_slice %255 {offsets = [0, 41], sizes = [8, 1], strides = [1, 1]} : vector<8x72xf32> to vector<8x1xf32>
    %521 = vector.extract_strided_slice %513 {offsets = [1, 0], sizes = [1, 256], strides = [1, 1]} : vector<8x256xf32> to vector<1x256xf32>
    %522 = vector.broadcast %520 : vector<8x1xf32> to vector<8x256xf32>
    %523 = vector.broadcast %521 : vector<1x256xf32> to vector<8x256xf32>
    %524 = arith.mulf %522, %523 : vector<8x256xf32>
    %525 = arith.addf %519, %524 : vector<8x256xf32>
    %526 = vector.extract_strided_slice %255 {offsets = [0, 42], sizes = [8, 1], strides = [1, 1]} : vector<8x72xf32> to vector<8x1xf32>
    %527 = vector.extract_strided_slice %513 {offsets = [2, 0], sizes = [1, 256], strides = [1, 1]} : vector<8x256xf32> to vector<1x256xf32>
    %528 = vector.broadcast %526 : vector<8x1xf32> to vector<8x256xf32>
    %529 = vector.broadcast %527 : vector<1x256xf32> to vector<8x256xf32>
    %530 = arith.mulf %528, %529 : vector<8x256xf32>
    %531 = arith.addf %525, %530 : vector<8x256xf32>
    %532 = vector.extract_strided_slice %255 {offsets = [0, 43], sizes = [8, 1], strides = [1, 1]} : vector<8x72xf32> to vector<8x1xf32>
    %533 = vector.extract_strided_slice %513 {offsets = [3, 0], sizes = [1, 256], strides = [1, 1]} : vector<8x256xf32> to vector<1x256xf32>
    %534 = vector.broadcast %532 : vector<8x1xf32> to vector<8x256xf32>
    %535 = vector.broadcast %533 : vector<1x256xf32> to vector<8x256xf32>
    %536 = arith.mulf %534, %535 : vector<8x256xf32>
    %537 = arith.addf %531, %536 : vector<8x256xf32>
    %538 = vector.extract_strided_slice %255 {offsets = [0, 44], sizes = [8, 1], strides = [1, 1]} : vector<8x72xf32> to vector<8x1xf32>
    %539 = vector.extract_strided_slice %513 {offsets = [4, 0], sizes = [1, 256], strides = [1, 1]} : vector<8x256xf32> to vector<1x256xf32>
    %540 = vector.broadcast %538 : vector<8x1xf32> to vector<8x256xf32>
    %541 = vector.broadcast %539 : vector<1x256xf32> to vector<8x256xf32>
    %542 = arith.mulf %540, %541 : vector<8x256xf32>
    %543 = arith.addf %537, %542 : vector<8x256xf32>
    %544 = vector.extract_strided_slice %255 {offsets = [0, 45], sizes = [8, 1], strides = [1, 1]} : vector<8x72xf32> to vector<8x1xf32>
    %545 = vector.extract_strided_slice %513 {offsets = [5, 0], sizes = [1, 256], strides = [1, 1]} : vector<8x256xf32> to vector<1x256xf32>
    %546 = vector.broadcast %544 : vector<8x1xf32> to vector<8x256xf32>
    %547 = vector.broadcast %545 : vector<1x256xf32> to vector<8x256xf32>
    %548 = arith.mulf %546, %547 : vector<8x256xf32>
    %549 = arith.addf %543, %548 : vector<8x256xf32>
    %550 = vector.extract_strided_slice %255 {offsets = [0, 46], sizes = [8, 1], strides = [1, 1]} : vector<8x72xf32> to vector<8x1xf32>
    %551 = vector.extract_strided_slice %513 {offsets = [6, 0], sizes = [1, 256], strides = [1, 1]} : vector<8x256xf32> to vector<1x256xf32>
    %552 = vector.broadcast %550 : vector<8x1xf32> to vector<8x256xf32>
    %553 = vector.broadcast %551 : vector<1x256xf32> to vector<8x256xf32>
    %554 = arith.mulf %552, %553 : vector<8x256xf32>
    %555 = arith.addf %549, %554 : vector<8x256xf32>
    %556 = vector.extract_strided_slice %255 {offsets = [0, 47], sizes = [8, 1], strides = [1, 1]} : vector<8x72xf32> to vector<8x1xf32>
    %557 = vector.extract_strided_slice %513 {offsets = [7, 0], sizes = [1, 256], strides = [1, 1]} : vector<8x256xf32> to vector<1x256xf32>
    %558 = vector.broadcast %556 : vector<8x1xf32> to vector<8x256xf32>
    %559 = vector.broadcast %557 : vector<1x256xf32> to vector<8x256xf32>
    %560 = arith.mulf %558, %559 : vector<8x256xf32>
    %561 = arith.addf %555, %560 : vector<8x256xf32>
    %c0_43 = arith.constant 0 : index
    %c143_44 = arith.constant 143 : index
    %562 = vector.load %arg8[%c0_43, %c143_44] : memref<8x512xf32, #tpu.memory_space<vmem>>, vector<8x256xf32>
    %563 = vector.broadcast %0 : vector<1x256xf32> to vector<8x256xf32>
    %564 = arith.mulf %562, %563 : vector<8x256xf32>
    %565 = vector.extract_strided_slice %255 {offsets = [0, 48], sizes = [8, 1], strides = [1, 1]} : vector<8x72xf32> to vector<8x1xf32>
    %566 = vector.extract_strided_slice %564 {offsets = [0, 0], sizes = [1, 256], strides = [1, 1]} : vector<8x256xf32> to vector<1x256xf32>
    %567 = vector.broadcast %565 : vector<8x1xf32> to vector<8x256xf32>
    %568 = vector.broadcast %566 : vector<1x256xf32> to vector<8x256xf32>
    %569 = arith.mulf %567, %568 : vector<8x256xf32>
    %570 = arith.addf %561, %569 : vector<8x256xf32>
    %571 = vector.extract_strided_slice %255 {offsets = [0, 49], sizes = [8, 1], strides = [1, 1]} : vector<8x72xf32> to vector<8x1xf32>
    %572 = vector.extract_strided_slice %564 {offsets = [1, 0], sizes = [1, 256], strides = [1, 1]} : vector<8x256xf32> to vector<1x256xf32>
    %573 = vector.broadcast %571 : vector<8x1xf32> to vector<8x256xf32>
    %574 = vector.broadcast %572 : vector<1x256xf32> to vector<8x256xf32>
    %575 = arith.mulf %573, %574 : vector<8x256xf32>
    %576 = arith.addf %570, %575 : vector<8x256xf32>
    %577 = vector.extract_strided_slice %255 {offsets = [0, 50], sizes = [8, 1], strides = [1, 1]} : vector<8x72xf32> to vector<8x1xf32>
    %578 = vector.extract_strided_slice %564 {offsets = [2, 0], sizes = [1, 256], strides = [1, 1]} : vector<8x256xf32> to vector<1x256xf32>
    %579 = vector.broadcast %577 : vector<8x1xf32> to vector<8x256xf32>
    %580 = vector.broadcast %578 : vector<1x256xf32> to vector<8x256xf32>
    %581 = arith.mulf %579, %580 : vector<8x256xf32>
    %582 = arith.addf %576, %581 : vector<8x256xf32>
    %583 = vector.extract_strided_slice %255 {offsets = [0, 51], sizes = [8, 1], strides = [1, 1]} : vector<8x72xf32> to vector<8x1xf32>
    %584 = vector.extract_strided_slice %564 {offsets = [3, 0], sizes = [1, 256], strides = [1, 1]} : vector<8x256xf32> to vector<1x256xf32>
    %585 = vector.broadcast %583 : vector<8x1xf32> to vector<8x256xf32>
    %586 = vector.broadcast %584 : vector<1x256xf32> to vector<8x256xf32>
    %587 = arith.mulf %585, %586 : vector<8x256xf32>
    %588 = arith.addf %582, %587 : vector<8x256xf32>
    %589 = vector.extract_strided_slice %255 {offsets = [0, 52], sizes = [8, 1], strides = [1, 1]} : vector<8x72xf32> to vector<8x1xf32>
    %590 = vector.extract_strided_slice %564 {offsets = [4, 0], sizes = [1, 256], strides = [1, 1]} : vector<8x256xf32> to vector<1x256xf32>
    %591 = vector.broadcast %589 : vector<8x1xf32> to vector<8x256xf32>
    %592 = vector.broadcast %590 : vector<1x256xf32> to vector<8x256xf32>
    %593 = arith.mulf %591, %592 : vector<8x256xf32>
    %594 = arith.addf %588, %593 : vector<8x256xf32>
    %595 = vector.extract_strided_slice %255 {offsets = [0, 53], sizes = [8, 1], strides = [1, 1]} : vector<8x72xf32> to vector<8x1xf32>
    %596 = vector.extract_strided_slice %564 {offsets = [5, 0], sizes = [1, 256], strides = [1, 1]} : vector<8x256xf32> to vector<1x256xf32>
    %597 = vector.broadcast %595 : vector<8x1xf32> to vector<8x256xf32>
    %598 = vector.broadcast %596 : vector<1x256xf32> to vector<8x256xf32>
    %599 = arith.mulf %597, %598 : vector<8x256xf32>
    %600 = arith.addf %594, %599 : vector<8x256xf32>
    %601 = vector.extract_strided_slice %255 {offsets = [0, 54], sizes = [8, 1], strides = [1, 1]} : vector<8x72xf32> to vector<8x1xf32>
    %602 = vector.extract_strided_slice %564 {offsets = [6, 0], sizes = [1, 256], strides = [1, 1]} : vector<8x256xf32> to vector<1x256xf32>
    %603 = vector.broadcast %601 : vector<8x1xf32> to vector<8x256xf32>
    %604 = vector.broadcast %602 : vector<1x256xf32> to vector<8x256xf32>
    %605 = arith.mulf %603, %604 : vector<8x256xf32>
    %606 = arith.addf %600, %605 : vector<8x256xf32>
    %607 = vector.extract_strided_slice %255 {offsets = [0, 55], sizes = [8, 1], strides = [1, 1]} : vector<8x72xf32> to vector<8x1xf32>
    %608 = vector.extract_strided_slice %564 {offsets = [7, 0], sizes = [1, 256], strides = [1, 1]} : vector<8x256xf32> to vector<1x256xf32>
    %609 = vector.broadcast %607 : vector<8x1xf32> to vector<8x256xf32>
    %610 = vector.broadcast %608 : vector<1x256xf32> to vector<8x256xf32>
    %611 = arith.mulf %609, %610 : vector<8x256xf32>
    %612 = arith.addf %606, %611 : vector<8x256xf32>
    %c0_45 = arith.constant 0 : index
    %c144_46 = arith.constant 144 : index
    %613 = vector.load %arg8[%c0_45, %c144_46] : memref<8x512xf32, #tpu.memory_space<vmem>>, vector<8x256xf32>
    %614 = vector.extract_strided_slice %255 {offsets = [0, 56], sizes = [8, 1], strides = [1, 1]} : vector<8x72xf32> to vector<8x1xf32>
    %615 = vector.extract_strided_slice %613 {offsets = [0, 0], sizes = [1, 256], strides = [1, 1]} : vector<8x256xf32> to vector<1x256xf32>
    %616 = vector.broadcast %614 : vector<8x1xf32> to vector<8x256xf32>
    %617 = vector.broadcast %615 : vector<1x256xf32> to vector<8x256xf32>
    %618 = arith.mulf %616, %617 : vector<8x256xf32>
    %619 = arith.addf %612, %618 : vector<8x256xf32>
    %620 = vector.extract_strided_slice %255 {offsets = [0, 57], sizes = [8, 1], strides = [1, 1]} : vector<8x72xf32> to vector<8x1xf32>
    %621 = vector.extract_strided_slice %613 {offsets = [1, 0], sizes = [1, 256], strides = [1, 1]} : vector<8x256xf32> to vector<1x256xf32>
    %622 = vector.broadcast %620 : vector<8x1xf32> to vector<8x256xf32>
    %623 = vector.broadcast %621 : vector<1x256xf32> to vector<8x256xf32>
    %624 = arith.mulf %622, %623 : vector<8x256xf32>
    %625 = arith.addf %619, %624 : vector<8x256xf32>
    %626 = vector.extract_strided_slice %255 {offsets = [0, 58], sizes = [8, 1], strides = [1, 1]} : vector<8x72xf32> to vector<8x1xf32>
    %627 = vector.extract_strided_slice %613 {offsets = [2, 0], sizes = [1, 256], strides = [1, 1]} : vector<8x256xf32> to vector<1x256xf32>
    %628 = vector.broadcast %626 : vector<8x1xf32> to vector<8x256xf32>
    %629 = vector.broadcast %627 : vector<1x256xf32> to vector<8x256xf32>
    %630 = arith.mulf %628, %629 : vector<8x256xf32>
    %631 = arith.addf %625, %630 : vector<8x256xf32>
    %632 = vector.extract_strided_slice %255 {offsets = [0, 59], sizes = [8, 1], strides = [1, 1]} : vector<8x72xf32> to vector<8x1xf32>
    %633 = vector.extract_strided_slice %613 {offsets = [3, 0], sizes = [1, 256], strides = [1, 1]} : vector<8x256xf32> to vector<1x256xf32>
    %634 = vector.broadcast %632 : vector<8x1xf32> to vector<8x256xf32>
    %635 = vector.broadcast %633 : vector<1x256xf32> to vector<8x256xf32>
    %636 = arith.mulf %634, %635 : vector<8x256xf32>
    %637 = arith.addf %631, %636 : vector<8x256xf32>
    %638 = vector.extract_strided_slice %255 {offsets = [0, 60], sizes = [8, 1], strides = [1, 1]} : vector<8x72xf32> to vector<8x1xf32>
    %639 = vector.extract_strided_slice %613 {offsets = [4, 0], sizes = [1, 256], strides = [1, 1]} : vector<8x256xf32> to vector<1x256xf32>
    %640 = vector.broadcast %638 : vector<8x1xf32> to vector<8x256xf32>
    %641 = vector.broadcast %639 : vector<1x256xf32> to vector<8x256xf32>
    %642 = arith.mulf %640, %641 : vector<8x256xf32>
    %643 = arith.addf %637, %642 : vector<8x256xf32>
    %644 = vector.extract_strided_slice %255 {offsets = [0, 61], sizes = [8, 1], strides = [1, 1]} : vector<8x72xf32> to vector<8x1xf32>
    %645 = vector.extract_strided_slice %613 {offsets = [5, 0], sizes = [1, 256], strides = [1, 1]} : vector<8x256xf32> to vector<1x256xf32>
    %646 = vector.broadcast %644 : vector<8x1xf32> to vector<8x256xf32>
    %647 = vector.broadcast %645 : vector<1x256xf32> to vector<8x256xf32>
    %648 = arith.mulf %646, %647 : vector<8x256xf32>
    %649 = arith.addf %643, %648 : vector<8x256xf32>
    %650 = vector.extract_strided_slice %255 {offsets = [0, 62], sizes = [8, 1], strides = [1, 1]} : vector<8x72xf32> to vector<8x1xf32>
    %651 = vector.extract_strided_slice %613 {offsets = [6, 0], sizes = [1, 256], strides = [1, 1]} : vector<8x256xf32> to vector<1x256xf32>
    %652 = vector.broadcast %650 : vector<8x1xf32> to vector<8x256xf32>
    %653 = vector.broadcast %651 : vector<1x256xf32> to vector<8x256xf32>
    %654 = arith.mulf %652, %653 : vector<8x256xf32>
    %655 = arith.addf %649, %654 : vector<8x256xf32>
    %656 = vector.extract_strided_slice %255 {offsets = [0, 63], sizes = [8, 1], strides = [1, 1]} : vector<8x72xf32> to vector<8x1xf32>
    %657 = vector.extract_strided_slice %613 {offsets = [7, 0], sizes = [1, 256], strides = [1, 1]} : vector<8x256xf32> to vector<1x256xf32>
    %658 = vector.broadcast %656 : vector<8x1xf32> to vector<8x256xf32>
    %659 = vector.broadcast %657 : vector<1x256xf32> to vector<8x256xf32>
    %660 = arith.mulf %658, %659 : vector<8x256xf32>
    %661 = arith.addf %655, %660 : vector<8x256xf32>
    %c0_47 = arith.constant 0 : index
    %c145_48 = arith.constant 145 : index
    %662 = vector.load %arg8[%c0_47, %c145_48] : memref<8x512xf32, #tpu.memory_space<vmem>>, vector<8x256xf32>
    %663 = vector.broadcast %1 : vector<1x256xf32> to vector<8x256xf32>
    %664 = arith.mulf %662, %663 : vector<8x256xf32>
    %665 = vector.extract_strided_slice %255 {offsets = [0, 64], sizes = [8, 1], strides = [1, 1]} : vector<8x72xf32> to vector<8x1xf32>
    %666 = vector.extract_strided_slice %664 {offsets = [0, 0], sizes = [1, 256], strides = [1, 1]} : vector<8x256xf32> to vector<1x256xf32>
    %667 = vector.broadcast %665 : vector<8x1xf32> to vector<8x256xf32>
    %668 = vector.broadcast %666 : vector<1x256xf32> to vector<8x256xf32>
    %669 = arith.mulf %667, %668 : vector<8x256xf32>
    %670 = arith.addf %661, %669 : vector<8x256xf32>
    %671 = vector.extract_strided_slice %255 {offsets = [0, 65], sizes = [8, 1], strides = [1, 1]} : vector<8x72xf32> to vector<8x1xf32>
    %672 = vector.extract_strided_slice %664 {offsets = [1, 0], sizes = [1, 256], strides = [1, 1]} : vector<8x256xf32> to vector<1x256xf32>
    %673 = vector.broadcast %671 : vector<8x1xf32> to vector<8x256xf32>
    %674 = vector.broadcast %672 : vector<1x256xf32> to vector<8x256xf32>
    %675 = arith.mulf %673, %674 : vector<8x256xf32>
    %676 = arith.addf %670, %675 : vector<8x256xf32>
    %677 = vector.extract_strided_slice %255 {offsets = [0, 66], sizes = [8, 1], strides = [1, 1]} : vector<8x72xf32> to vector<8x1xf32>
    %678 = vector.extract_strided_slice %664 {offsets = [2, 0], sizes = [1, 256], strides = [1, 1]} : vector<8x256xf32> to vector<1x256xf32>
    %679 = vector.broadcast %677 : vector<8x1xf32> to vector<8x256xf32>
    %680 = vector.broadcast %678 : vector<1x256xf32> to vector<8x256xf32>
    %681 = arith.mulf %679, %680 : vector<8x256xf32>
    %682 = arith.addf %676, %681 : vector<8x256xf32>
    %683 = vector.extract_strided_slice %255 {offsets = [0, 67], sizes = [8, 1], strides = [1, 1]} : vector<8x72xf32> to vector<8x1xf32>
    %684 = vector.extract_strided_slice %664 {offsets = [3, 0], sizes = [1, 256], strides = [1, 1]} : vector<8x256xf32> to vector<1x256xf32>
    %685 = vector.broadcast %683 : vector<8x1xf32> to vector<8x256xf32>
    %686 = vector.broadcast %684 : vector<1x256xf32> to vector<8x256xf32>
    %687 = arith.mulf %685, %686 : vector<8x256xf32>
    %688 = arith.addf %682, %687 : vector<8x256xf32>
    %689 = vector.extract_strided_slice %255 {offsets = [0, 68], sizes = [8, 1], strides = [1, 1]} : vector<8x72xf32> to vector<8x1xf32>
    %690 = vector.extract_strided_slice %664 {offsets = [4, 0], sizes = [1, 256], strides = [1, 1]} : vector<8x256xf32> to vector<1x256xf32>
    %691 = vector.broadcast %689 : vector<8x1xf32> to vector<8x256xf32>
    %692 = vector.broadcast %690 : vector<1x256xf32> to vector<8x256xf32>
    %693 = arith.mulf %691, %692 : vector<8x256xf32>
    %694 = arith.addf %688, %693 : vector<8x256xf32>
    %695 = vector.extract_strided_slice %255 {offsets = [0, 69], sizes = [8, 1], strides = [1, 1]} : vector<8x72xf32> to vector<8x1xf32>
    %696 = vector.extract_strided_slice %664 {offsets = [5, 0], sizes = [1, 256], strides = [1, 1]} : vector<8x256xf32> to vector<1x256xf32>
    %697 = vector.broadcast %695 : vector<8x1xf32> to vector<8x256xf32>
    %698 = vector.broadcast %696 : vector<1x256xf32> to vector<8x256xf32>
    %699 = arith.mulf %697, %698 : vector<8x256xf32>
    %700 = arith.addf %694, %699 : vector<8x256xf32>
    %701 = vector.extract_strided_slice %255 {offsets = [0, 70], sizes = [8, 1], strides = [1, 1]} : vector<8x72xf32> to vector<8x1xf32>
    %702 = vector.extract_strided_slice %664 {offsets = [6, 0], sizes = [1, 256], strides = [1, 1]} : vector<8x256xf32> to vector<1x256xf32>
    %703 = vector.broadcast %701 : vector<8x1xf32> to vector<8x256xf32>
    %704 = vector.broadcast %702 : vector<1x256xf32> to vector<8x256xf32>
    %705 = arith.mulf %703, %704 : vector<8x256xf32>
    %706 = arith.addf %700, %705 : vector<8x256xf32>
    %707 = vector.extract_strided_slice %255 {offsets = [0, 71], sizes = [8, 1], strides = [1, 1]} : vector<8x72xf32> to vector<8x1xf32>
    %708 = vector.extract_strided_slice %664 {offsets = [7, 0], sizes = [1, 256], strides = [1, 1]} : vector<8x256xf32> to vector<1x256xf32>
    %709 = vector.broadcast %707 : vector<8x1xf32> to vector<8x256xf32>
    %710 = vector.broadcast %708 : vector<1x256xf32> to vector<8x256xf32>
    %711 = arith.mulf %709, %710 : vector<8x256xf32>
    %712 = arith.addf %706, %711 : vector<8x256xf32>
    %713 = arith.negf %712 : vector<8x256xf32>
    %714 = math.exp %713 : vector<8x256xf32>
    %cst_49 = arith.constant 1.000000e+00 : f32
    %715 = vector.broadcast %cst_49 : f32 to vector<8x256xf32>
    %716 = arith.addf %715, %714 : vector<8x256xf32>
    %717 = arith.divf %715, %716 : vector<8x256xf32>
    %c0_50 = arith.constant 0 : index
    %c0_51 = arith.constant 0 : index
    %c0_52 = arith.constant 0 : index
    %718 = vector.load %arg7[%c0_50, %c0_51, %c0_52] : memref<1x8x256xf32, #tpu.memory_space<vmem>>, vector<1x8x256xf32>
    %719 = vector.shape_cast %718 : vector<1x8x256xf32> to vector<8x256xf32>
    %720 = vector.shape_cast %717 : vector<8x256xf32> to vector<1x8x256xf32>
    tpu.vector_store %arg7[%c0_50, %c0_51, %c0_52], %720 {strides = array<i32>} : memref<1x8x256xf32, #tpu.memory_space<vmem>>, vector<1x8x256xf32>,
    return
  }
  func.func @transform_0(%arg0: i32) -> (i32, i32, i32) {
    %c0_i32 = arith.constant 0 : i32
    %c0_i32_0 = arith.constant 0 : i32
    %c0_i32_1 = arith.constant 0 : i32
    return %arg0, %c0_i32, %c0_i32_0 : i32, i32, i32
  }
  func.func @transform_1(%arg0: i32) -> (i32, i32) {
    %c0_i32 = arith.constant 0 : i32
    %c0_i32_0 = arith.constant 0 : i32
    %c0_i32_1 = arith.constant 0 : i32
    return %c0_i32, %c0_i32_0 : i32, i32
  }
  func.func @transform_2(%arg0: i32) -> (i32, i32) {
    %c0_i32 = arith.constant 0 : i32
    %c0_i32_0 = arith.constant 0 : i32
    %c0_i32_1 = arith.constant 0 : i32
    return %c0_i32, %c0_i32_0 : i32, i32
  }
  func.func @transform_3(%arg0: i32) -> (i32, i32) {
    %c0_i32 = arith.constant 0 : i32
    %c0_i32_0 = arith.constant 0 : i32
    %c0_i32_1 = arith.constant 0 : i32
    return %c0_i32, %c0_i32_0 : i32, i32
  }
  func.func @transform_4(%arg0: i32) -> (i32, i32) {
    %c0_i32 = arith.constant 0 : i32
    %c0_i32_0 = arith.constant 0 : i32
    %c0_i32_1 = arith.constant 0 : i32
    return %c0_i32, %c0_i32_0 : i32, i32
  }
  func.func @transform_5(%arg0: i32) -> (i32, i32) {
    %c0_i32 = arith.constant 0 : i32
    %c0_i32_0 = arith.constant 0 : i32
    %c0_i32_1 = arith.constant 0 : i32
    return %c0_i32, %c0_i32_0 : i32, i32
  }
  func.func @transform_6(%arg0: i32) -> (i32, i32, i32) {
    %c0_i32 = arith.constant 0 : i32
    %c0_i32_0 = arith.constant 0 : i32
    %c0_i32_1 = arith.constant 0 : i32
    return %arg0, %c0_i32, %c0_i32_0 : i32, i32, i32
  }
}

</mosaic_0001>

<llo_original>
// kernel: conv_block.1
$region0: #{conv_block.1}
  #allocation0 [shape = 'u32[]', space=smem, size = 0x4, offset = 0x4, fixed_abs, tag = 'smem constant byte address 0x4 - core index']
  #allocation1 [shape = 'u32[144,128]{1,0:T(1,128)}', space=vmem, size = 0x12000, scoped, tag = 'internal scratch']
  #allocation2 [shape = 'f32[8,512]{1,0:T(8,128)}', space=vmem, size = 0x4000, scoped, tag = 'scratch operand']
  %s0 = inlined_call_operand.vmem [shape: f32[2,4,256], index: 0, kind: input, shape index: {}]
  %s1 = inlined_call_operand.vmem [shape: f32[2,256], index: 1, kind: input, shape index: {}]
  %s2 = inlined_call_operand.vmem [shape: f32[8,36], index: 2, kind: input, shape index: {}]
  %s3 = inlined_call_operand.vmem [shape: f32[8,1], index: 3, kind: input, shape index: {}]
  %s4 = inlined_call_operand.vmem [shape: f32[8,72], index: 4, kind: input, shape index: {}]
  %s5 = inlined_call_operand.vmem [shape: f32[8,1], index: 5, kind: input, shape index: {}]
  %s6 = inlined_call_operand.vmem [shape: f32[2,8,256], index: 6, kind: output, shape index: {}]
  %s7 = sld [smem:[#allocation0]]
  $region57: #{conv_block.1} parent=0
    _
  %s9 = ssub.s32 1, %s7
  %s10 = scalar_select 0, %s9, %s7
  loop: start=0, step=1, limit=4
  $region2: #{conv_block.1} parent=0 // loop_pre_header
    _
  $region3: #{conv_block.1} parent=0 // loop_header
    %s12 = sphi 0, %s16
    %p13 = scmp.ge.s32.totalorder %s12, 4
    %s22 = sphi 0, %s24
    %s25 = sphi 0, %s22
    %s26 = sphi 0, %s25
    %s42 = sphi 0, %s26
    %s46 = sphi 0, %s46
    %s48 = sphi 0, %s46
    %s49 = sphi 0, %s48
    %s63 = sphi 0, %s49
    %s67 = sphi 0, %s67
    %s69 = sphi 0, %s67
    %s70 = sphi 0, %s69
    %s84 = sphi 0, %s70
    %s88 = sphi 0, %s88
    %s90 = sphi 0, %s88
    %s91 = sphi 0, %s90
    %s105 = sphi 0, %s91
    %s109 = sphi 0, %s109
    %s111 = sphi 0, %s109
    %s112 = sphi 0, %s111
    %s126 = sphi 0, %s112
    %s130 = sphi 0, %s130
    %s132 = sphi 0, %s130
    %s133 = sphi 0, %s132
    %s147 = sphi 0, %s133
    %s153 = sphi 0, %s155
    %s156 = sphi 0, %s153
    %s157 = sphi 0, %s156
    %s173 = sphi 0, %s157
  $region4: #{conv_block.1} parent=0 // loop_header_branch
    %15 = sbr.rel (%p13) target = $region8
  $region5: #{conv_block.1} parent=0 // loop_body
    %s17 = ssub.s32 %s12, 1
    %s18 = ssub.s32 %s12, 2
    %s19 = sadd.s32 %s12, 1
    %s20 = ssub.s32 %s12, %s19
    %p21 = scmp.eq.s32.totalorder %s20, 0
    %s23 = sadd.s32 %s22, 1
    %s24 = scalar_select %p21, %s22, %s23
    %p27 = pneg %p21
    %p28 = scmp.eq.s32.totalorder %s12, 1
    %p29 = por %p27, %p28
    %p30 = scmp.ne.s32.totalorder %s22, %s25
    %p31 = scmp.eq.s32.totalorder %s12, 0
    %p32 = por %p30, %p31
    %p33 = scmp.ne.s32.totalorder %s22, %s25
    %p34 = scmp.eq.s32.totalorder %s17, 1
    %p35 = por %p33, %p34
    %p36 = scmp.ne.s32.totalorder %s25, %s26
    %p37 = scmp.eq.s32.totalorder %s17, 0
    %p38 = por %p36, %p37
    %p39 = scmp.ne.s32.totalorder %s25, %s26
    %p40 = scmp.eq.s32.totalorder %s18, 1
    %p41 = por %p39, %p40
    %p43 = scmp.ne.s32.totalorder %s26, %s42
    %p44 = scmp.eq.s32.totalorder %s18, 0
    %p45 = por %p43, %p44
    %s47 = sadd.s32 %s46, 1
    %p50 = scmp.eq.s32.totalorder %s12, 1
    %p51 = scmp.ne.s32.totalorder %s46, %s48
    %p52 = scmp.eq.s32.totalorder %s12, 0
    %p53 = por %p51, %p52
    %p54 = scmp.ne.s32.totalorder %s46, %s48
    %p55 = scmp.eq.s32.totalorder %s17, 1
    %p56 = por %p54, %p55
    %p57 = scmp.ne.s32.totalorder %s48, %s49
    %p58 = scmp.eq.s32.totalorder %s17, 0
    %p59 = por %p57, %p58
    %p60 = scmp.ne.s32.totalorder %s48, %s49
    %p61 = scmp.eq.s32.totalorder %s18, 1
    %p62 = por %p60, %p61
    %p64 = scmp.ne.s32.totalorder %s49, %s63
    %p65 = scmp.eq.s32.totalorder %s18, 0
    %p66 = por %p64, %p65
    %s68 = sadd.s32 %s67, 1
    %p71 = scmp.eq.s32.totalorder %s12, 1
    %p72 = scmp.ne.s32.totalorder %s67, %s69
    %p73 = scmp.eq.s32.totalorder %s12, 0
    %p74 = por %p72, %p73
    %p75 = scmp.ne.s32.totalorder %s67, %s69
    %p76 = scmp.eq.s32.totalorder %s17, 1
    %p77 = por %p75, %p76
    %p78 = scmp.ne.s32.totalorder %s69, %s70
    %p79 = scmp.eq.s32.totalorder %s17, 0
    %p80 = por %p78, %p79
    %p81 = scmp.ne.s32.totalorder %s69, %s70
    %p82 = scmp.eq.s32.totalorder %s18, 1
    %p83 = por %p81, %p82
    %p85 = scmp.ne.s32.totalorder %s70, %s84
    %p86 = scmp.eq.s32.totalorder %s18, 0
    %p87 = por %p85, %p86
    %s89 = sadd.s32 %s88, 1
    %p92 = scmp.eq.s32.totalorder %s12, 1
    %p93 = scmp.ne.s32.totalorder %s88, %s90
    %p94 = scmp.eq.s32.totalorder %s12, 0
    %p95 = por %p93, %p94
    %p96 = scmp.ne.s32.totalorder %s88, %s90
    %p97 = scmp.eq.s32.totalorder %s17, 1
    %p98 = por %p96, %p97
    %p99 = scmp.ne.s32.totalorder %s90, %s91
    %p100 = scmp.eq.s32.totalorder %s17, 0
    %p101 = por %p99, %p100
    %p102 = scmp.ne.s32.totalorder %s90, %s91
    %p103 = scmp.eq.s32.totalorder %s18, 1
    %p104 = por %p102, %p103
    %p106 = scmp.ne.s32.totalorder %s91, %s105
    %p107 = scmp.eq.s32.totalorder %s18, 0
    %p108 = por %p106, %p107
    %s110 = sadd.s32 %s109, 1
    %p113 = scmp.eq.s32.totalorder %s12, 1
    %p114 = scmp.ne.s32.totalorder %s109, %s111
    %p115 = scmp.eq.s32.totalorder %s12, 0
    %p116 = por %p114, %p115
    %p117 = scmp.ne.s32.totalorder %s109, %s111
    %p118 = scmp.eq.s32.totalorder %s17, 1
    %p119 = por %p117, %p118
    %p120 = scmp.ne.s32.totalorder %s111, %s112
    %p121 = scmp.eq.s32.totalorder %s17, 0
    %p122 = por %p120, %p121
    %p123 = scmp.ne.s32.totalorder %s111, %s112
    %p124 = scmp.eq.s32.totalorder %s18, 1
    %p125 = por %p123, %p124
    %p127 = scmp.ne.s32.totalorder %s112, %s126
    %p128 = scmp.eq.s32.totalorder %s18, 0
    %p129 = por %p127, %p128
    %s131 = sadd.s32 %s130, 1
    %p134 = scmp.eq.s32.totalorder %s12, 1
    %p135 = scmp.ne.s32.totalorder %s130, %s132
    %p136 = scmp.eq.s32.totalorder %s12, 0
    %p137 = por %p135, %p136
    %p138 = scmp.ne.s32.totalorder %s130, %s132
    %p139 = scmp.eq.s32.totalorder %s17, 1
    %p140 = por %p138, %p139
    %p141 = scmp.ne.s32.totalorder %s132, %s133
    %p142 = scmp.eq.s32.totalorder %s17, 0
    %p143 = por %p141, %p142
    %p144 = scmp.ne.s32.totalorder %s132, %s133
    %p145 = scmp.eq.s32.totalorder %s18, 1
    %p146 = por %p144, %p145
    %p148 = scmp.ne.s32.totalorder %s133, %s147
    %p149 = scmp.eq.s32.totalorder %s18, 0
    %p150 = por %p148, %p149
    %s151 = ssub.s32 %s12, %s19
    %p152 = scmp.eq.s32.totalorder %s151, 0
    %s154 = sadd.s32 %s153, 1
    %s155 = scalar_select %p152, %s153, %s154
    %p158 = pneg %p152
    %p159 = scmp.eq.s32.totalorder %s12, 1
    %p160 = por %p158, %p159
    %p161 = scmp.ne.s32.totalorder %s153, %s156
    %p162 = scmp.eq.s32.totalorder %s12, 0
    %p163 = por %p161, %p162
    %p164 = scmp.ne.s32.totalorder %s153, %s156
    %p165 = scmp.eq.s32.totalorder %s17, 1
    %p166 = por %p164, %p165
    %p167 = scmp.ne.s32.totalorder %s156, %s157
    %p168 = scmp.eq.s32.totalorder %s17, 0
    %p169 = por %p167, %p168
    %p170 = scmp.ne.s32.totalorder %s156, %s157
    %p171 = scmp.eq.s32.totalorder %s18, 1
    %p172 = por %p170, %p171
    %p174 = scmp.ne.s32.totalorder %s157, %s173
    %p175 = scmp.eq.s32.totalorder %s18, 0
    %p176 = por %p174, %p175
    %p177 = scmp.le.s32.totalorder 1, %s12
    %p178 = scmp.lt.s32.totalorder %s12, 3
    %p179 = pnand %p177, %p178
    %p180 = pneg %p179
    // Predicated region
    $region9: #{conv_block.1} parent=5 // pred_check
      _
    $region10: #{conv_block.1} parent=5 // pred_check_branch
      %182 = sbr.rel (%p179) target = $region12
    $region11: #{conv_block.1} parent=5 // pred_region
      %s183 = ssub.s32 %s12, 1
      // Predicated region
      $region13: #{conv_block.1} parent=11 // pred_check
        %p184 = pneg %p59
      $region14: #{conv_block.1} parent=11 // pred_check_branch
        %186 = sbr.rel (%p184) target = $region16
      $region15: #{conv_block.1} parent=11 // pred_region
        _
      $region16: #{conv_block.1} parent=11 // pred_fallthru
        _
      // Predicated region
      $region17: #{conv_block.1} parent=11 // pred_check
        %p187 = pneg %p80
      $region18: #{conv_block.1} parent=11 // pred_check_branch
        %189 = sbr.rel (%p187) target = $region20
      $region19: #{conv_block.1} parent=11 // pred_region
        _
      $region20: #{conv_block.1} parent=11 // pred_fallthru
        _
      // Predicated region
      $region21: #{conv_block.1} parent=11 // pred_check
        %p190 = pneg %p101
      $region22: #{conv_block.1} parent=11 // pred_check_branch
        %192 = sbr.rel (%p190) target = $region24
      $region23: #{conv_block.1} parent=11 // pred_region
        _
      $region24: #{conv_block.1} parent=11 // pred_fallthru
        _
      // Predicated region
      $region25: #{conv_block.1} parent=11 // pred_check
        %p193 = pneg %p122
      $region26: #{conv_block.1} parent=11 // pred_check_branch
        %195 = sbr.rel (%p193) target = $region28
      $region27: #{conv_block.1} parent=11 // pred_region
        _
      $region28: #{conv_block.1} parent=11 // pred_fallthru
        _
      // Predicated region
      $region29: #{conv_block.1} parent=11 // pred_check
        %p196 = pneg %p143
      $region30: #{conv_block.1} parent=11 // pred_check_branch
        %198 = sbr.rel (%p196) target = $region32
      $region31: #{conv_block.1} parent=11 // pred_region
        _
      $region32: #{conv_block.1} parent=11 // pred_fallthru
        _
    $region12: #{conv_block.1} parent=5 // pred_fallthru
      _
    %p199 = scmp.lt.s32.totalorder %s12, 2
    // Predicated region
    $region33: #{conv_block.1} parent=5 // pred_check
      %p200 = pneg %p199
    $region34: #{conv_block.1} parent=5 // pred_check_branch
      %202 = sbr.rel (%p200) target = $region36
    $region35: #{conv_block.1} parent=5 // pred_region
      // Predicated region
      $region37: #{conv_block.1} parent=35 // pred_check
        %p203 = pneg %p32
      $region38: #{conv_block.1} parent=35 // pred_check_branch
        %205 = sbr.rel (%p203) target = $region40
      $region39: #{conv_block.1} parent=35 // pred_region
        %p206 = scmp.lt.s32.totalorder %s12, 1
        %s207 = scalar_select %p206, %s12, 1
        %s208 = smul.addr %s207, 2
        %s209 = smul.addr %s208, 4
        %s210 = scalar_lea.vmem %s0, %s209
      $region40: #{conv_block.1} parent=35 // pred_fallthru
        _
    $region36: #{conv_block.1} parent=5 // pred_fallthru
      _
    %p211 = scmp.le.s32.totalorder 1, %s12
    %p212 = scmp.lt.s32.totalorder %s12, 3
    %p213 = pnand %p211, %p212
    %p214 = pneg %p213
    // Predicated region
    $region41: #{conv_block.1} parent=5 // pred_check
      _
    $region42: #{conv_block.1} parent=5 // pred_check_branch
      %216 = sbr.rel (%p213) target = $region44
    $region43: #{conv_block.1} parent=5 // pred_region
      %s217 = ssub.s32 %s12, 1
      %p218 = scmp.lt.s32.totalorder %s17, 1
      %s219 = scalar_select %p218, %s17, 1
      %s220 = smul.addr %s219, 2
      %s221 = smul.addr %s220, 4
      %s222 = scalar_lea.vmem %s0, %s221
      %p223 = pneg %p38
      %p224 = pneg %p35
      %p225 = pneg %p59
      %p226 = pneg %p56
      %p227 = pneg %p80
      %p228 = pneg %p77
      %p229 = pneg %p101
      %p230 = pneg %p98
      %p231 = pneg %p122
      %p232 = pneg %p119
      %p233 = pneg %p143
      %p234 = pneg %p140
      %p235 = pneg %p169
      %p236 = pneg %p166
      %p237 = scmp.lt.s32.totalorder %s17, 1
      %s238 = scalar_select %p237, %s17, 1
      %s239 = smul.addr %s238, 2
      %s240 = smul.addr %s239, 8
      %s241 = scalar_lea.vmem %s6, %s240
      %p242 = scmp.lt.s32.totalorder %s17, 1
      %s243 = scalar_select %p242, %s17, 1
      %s244 = smul.addr %s243, 2
      %s245 = smul.addr %s244, 4
      %s246 = scalar_lea.vmem %s0, %s245
      %p247 = scmp.lt.s32.totalorder %s17, 1
      %s248 = scalar_select %p247, %s17, 1
      %s249 = smul.addr %s248, 2
      %s250 = smul.addr %s249, 8
      %s251 = scalar_lea.vmem %s6, %s250
      %v252 = vld [vmem:[%s1] ss:$2 sm:$0x3]
      %s253 = scalar_lea.vmem %s1, 1
      %v254 = vld [vmem:[%s253] ss:$2 sm:$0x3]
      %255 = vst [vmem:[#allocation2] sm:$0xff] 0.0
      %256 = vst [vmem:[#allocation2 + $0x8] sm:$0xff] 0.0
      %257 = vst [vmem:[#allocation2 + $0x10] sm:$0xff] 0.0
      %258 = vst [vmem:[#allocation2 + $0x18] sm:$0xff] 0.0
      %v259 = vld [vmem:[%s246] sm:$0xff]
      %v261 = vcombine.high %v259, %v259
      %263 = vst [vmem:[#allocation2 + $0x8] sm:$0xf] %v259
      %264 = vst [vmem:[#allocation2 + $0x10] sm:$0xf] %v261
      %v265 = vld [vmem:[%s2] sm:$0xff]
      %v266 = vld [vmem:[%s3] sm:$0xff]
      %268 = vset.pattern.permute.xlu0 0
      %269 = vperm.xlu0 %268, %v266
      %v270 = vpop.permute.xlu0 %269
      %v272 = vadd.f32 %v270, 0.0
      %v273 = vld [vmem:[#allocation2] sm:$0xf]
      %v274 = vld [vmem:[#allocation2 + $0x8] sm:$0xf]
      %v275 = vld [vmem:[#allocation2 + $0x10] sm:$0xf]
      %v277 = vlaneseq
      %v278 = vshrl.u32 %v277, 7
      %v279 = vsub.s32 0, %v278
      %v280 = vrot.slane %v252, %v279
      %v281 = vlaneseq
      %v282 = vshrl.u32 %v281, 7
      %v283 = vsub.s32 1, %v282
      %v284 = vrot.slane %v252, %v283
      %285 = vrot.lane.b32.xlu0 %v280, 111
      %v286 = vpop.permute.xlu0 %285
      %287 = vrot.lane.b32.xlu0 %v284, 111
      %v288 = vpop.permute.xlu0 %287
      %vm289 = vcmask 908288
      %v290 = vsel %vm289, %v286, %v288
      %v294 = vmul.f32 %v273, %v286
      %v295 = vmul.f32 %v274, %v290
      %v296 = vmul.f32 %v275, %v288
      %298 = vset.pattern.permute.xlu0 0
      %299 = vperm.xlu0 %298, %v265
      %v300 = vpop.permute.xlu0 %299
      %v302 = vlaneseq
      %v303 = vshrl.u32 %v302, 7
      %v304 = vsub.s32 0, %v303
      %v305 = vrot.slane %v294, %v304
      %v306 = vlaneseq
      %v307 = vshrl.u32 %v306, 7
      %v308 = vsub.s32 0, %v307
      %v309 = vrot.slane %v295, %v308
      %v310 = vlaneseq
      %v311 = vshrl.u32 %v310, 7
      %v312 = vsub.s32 0, %v311
      %v313 = vrot.slane %v296, %v312
      %v314 = vmul.f32 %v300, %v305
      %v315 = vmul.f32 %v300, %v309
      %v316 = vmul.f32 %v300, %v313
      %v317 = vadd.f32 %v272, %v314
      %v318 = vadd.f32 %v272, %v315
      %v319 = vadd.f32 %v272, %v316
      %320 = vset.pattern.permute.xlu0 1
      %321 = vperm.xlu0 %320, %v265
      %v322 = vpop.permute.xlu0 %321
      %v324 = vlaneseq
      %v325 = vshrl.u32 %v324, 7
      %v326 = vsub.s32 1, %v325
      %v327 = vrot.slane %v294, %v326
      %v328 = vlaneseq
      %v329 = vshrl.u32 %v328, 7
      %v330 = vsub.s32 1, %v329
      %v331 = vrot.slane %v295, %v330
      %v332 = vlaneseq
      %v333 = vshrl.u32 %v332, 7
      %v334 = vsub.s32 1, %v333
      %v335 = vrot.slane %v296, %v334
      %v336 = vmul.f32 %v322, %v327
      %v337 = vmul.f32 %v322, %v331
      %v338 = vmul.f32 %v322, %v335
      %v339 = vadd.f32 %v317, %v336
      %v340 = vadd.f32 %v318, %v337
      %v341 = vadd.f32 %v319, %v338
      %342 = vset.pattern.permute.xlu0 2
      %343 = vperm.xlu0 %342, %v265
      %v344 = vpop.permute.xlu0 %343
      %v346 = vlaneseq
      %v347 = vshrl.u32 %v346, 7
      %v348 = vsub.s32 2, %v347
      %v349 = vrot.slane %v294, %v348
      %v350 = vlaneseq
      %v351 = vshrl.u32 %v350, 7
      %v352 = vsub.s32 2, %v351
      %v353 = vrot.slane %v295, %v352
      %v354 = vlaneseq
      %v355 = vshrl.u32 %v354, 7
      %v356 = vsub.s32 2, %v355
      %v357 = vrot.slane %v296, %v356
      %v358 = vmul.f32 %v344, %v349
      %v359 = vmul.f32 %v344, %v353
      %v360 = vmul.f32 %v344, %v357
      %v361 = vadd.f32 %v339, %v358
      %v362 = vadd.f32 %v340, %v359
      %v363 = vadd.f32 %v341, %v360
      %364 = vset.pattern.permute.xlu0 3
      %365 = vperm.xlu0 %364, %v265
      %v366 = vpop.permute.xlu0 %365
      %v368 = vlaneseq
      %v369 = vshrl.u32 %v368, 7
      %v370 = vsub.s32 3, %v369
      %v371 = vrot.slane %v294, %v370
      %v372 = vlaneseq
      %v373 = vshrl.u32 %v372, 7
      %v374 = vsub.s32 3, %v373
      %v375 = vrot.slane %v295, %v374
      %v376 = vlaneseq
      %v377 = vshrl.u32 %v376, 7
      %v378 = vsub.s32 3, %v377
      %v379 = vrot.slane %v296, %v378
      %v380 = vmul.f32 %v366, %v371
      %v381 = vmul.f32 %v366, %v375
      %v382 = vmul.f32 %v366, %v379
      %v383 = vadd.f32 %v361, %v380
      %v384 = vadd.f32 %v362, %v381
      %v385 = vadd.f32 %v363, %v382
      %386 = vset.pattern.permute.xlu0 4
      %387 = vperm.xlu0 %386, %v265
      %v388 = vpop.permute.xlu0 %387
      %v390 = vlaneseq
      %v391 = vshrl.u32 %v390, 7
      %v392 = vsub.s32 0, %v391
      %v393 = vrot.slane %v273, %v392
      %v394 = vlaneseq
      %v395 = vshrl.u32 %v394, 7
      %v396 = vsub.s32 0, %v395
      %v397 = vrot.slane %v274, %v396
      %v398 = vlaneseq
      %v399 = vshrl.u32 %v398, 7
      %v400 = vsub.s32 0, %v399
      %v401 = vrot.slane %v275, %v400
      %v402 = vmul.f32 %v388, %v393
      %v403 = vmul.f32 %v388, %v397
      %v404 = vmul.f32 %v388, %v401
      %408 = vrot.lane.b32.xlu0 %v402, 127
      %v409 = vpop.permute.xlu0 %408
      %410 = vrot.lane.b32.xlu0 %v403, 127
      %v411 = vpop.permute.xlu0 %410
      %412 = vrot.lane.b32.xlu0 %v404, 127
      %v413 = vpop.permute.xlu0 %412
      %vm414 = vcmask 1039360
      %v415 = vsel %vm414, %v409, %v411
      %v416 = vsel %vm414, %v411, %v413
      %v420 = vadd.f32 %v383, %v415
      %v421 = vadd.f32 %v384, %v416
      %v422 = vadd.f32 %v385, %v413
      %423 = vset.pattern.permute.xlu0 5
      %424 = vperm.xlu0 %423, %v265
      %v425 = vpop.permute.xlu0 %424
      %v427 = vlaneseq
      %v428 = vshrl.u32 %v427, 7
      %v429 = vsub.s32 1, %v428
      %v430 = vrot.slane %v273, %v429
      %v431 = vlaneseq
      %v432 = vshrl.u32 %v431, 7
      %v433 = vsub.s32 1, %v432
      %v434 = vrot.slane %v274, %v433
      %v435 = vlaneseq
      %v436 = vshrl.u32 %v435, 7
      %v437 = vsub.s32 1, %v436
      %v438 = vrot.slane %v275, %v437
      %v439 = vmul.f32 %v425, %v430
      %v440 = vmul.f32 %v425, %v434
      %v441 = vmul.f32 %v425, %v438
      %445 = vrot.lane.b32.xlu0 %v439, 127
      %v446 = vpop.permute.xlu0 %445
      %447 = vrot.lane.b32.xlu0 %v440, 127
      %v448 = vpop.permute.xlu0 %447
      %449 = vrot.lane.b32.xlu0 %v441, 127
      %v450 = vpop.permute.xlu0 %449
      %v451 = vsel %vm414, %v446, %v448
      %v452 = vsel %vm414, %v448, %v450
      %v456 = vadd.f32 %v420, %v451
      %v457 = vadd.f32 %v421, %v452
      %v458 = vadd.f32 %v422, %v450
      %459 = vset.pattern.permute.xlu0 6
      %460 = vperm.xlu0 %459, %v265
      %v461 = vpop.permute.xlu0 %460
      %v463 = vlaneseq
      %v464 = vshrl.u32 %v463, 7
      %v465 = vsub.s32 2, %v464
      %v466 = vrot.slane %v273, %v465
      %v467 = vlaneseq
      %v468 = vshrl.u32 %v467, 7
      %v469 = vsub.s32 2, %v468
      %v470 = vrot.slane %v274, %v469
      %v471 = vlaneseq
      %v472 = vshrl.u32 %v471, 7
      %v473 = vsub.s32 2, %v472
      %v474 = vrot.slane %v275, %v473
      %v475 = vmul.f32 %v461, %v466
      %v476 = vmul.f32 %v461, %v470
      %v477 = vmul.f32 %v461, %v474
      %481 = vrot.lane.b32.xlu0 %v475, 127
      %v482 = vpop.permute.xlu0 %481
      %483 = vrot.lane.b32.xlu0 %v476, 127
      %v484 = vpop.permute.xlu0 %483
      %485 = vrot.lane.b32.xlu0 %v477, 127
      %v486 = vpop.permute.xlu0 %485
      %v487 = vsel %vm414, %v482, %v484
      %v488 = vsel %vm414, %v484, %v486
      %v492 = vadd.f32 %v456, %v487
      %v493 = vadd.f32 %v457, %v488
      %v494 = vadd.f32 %v458, %v486
      %495 = vset.pattern.permute.xlu0 7
      %496 = vperm.xlu0 %495, %v265
      %v497 = vpop.permute.xlu0 %496
      %v499 = vlaneseq
      %v500 = vshrl.u32 %v499, 7
      %v501 = vsub.s32 3, %v500
      %v502 = vrot.slane %v273, %v501
      %v503 = vlaneseq
      %v504 = vshrl.u32 %v503, 7
      %v505 = vsub.s32 3, %v504
      %v506 = vrot.slane %v274, %v505
      %v507 = vlaneseq
      %v508 = vshrl.u32 %v507, 7
      %v509 = vsub.s32 3, %v508
      %v510 = vrot.slane %v275, %v509
      %v511 = vmul.f32 %v497, %v502
      %v512 = vmul.f32 %v497, %v506
      %v513 = vmul.f32 %v497, %v510
      %517 = vrot.lane.b32.xlu0 %v511, 127
      %v518 = vpop.permute.xlu0 %517
      %519 = vrot.lane.b32.xlu0 %v512, 127
      %v520 = vpop.permute.xlu0 %519
      %521 = vrot.lane.b32.xlu0 %v513, 127
      %v522 = vpop.permute.xlu0 %521
      %v523 = vsel %vm414, %v518, %v520
      %v524 = vsel %vm414, %v520, %v522
      %v528 = vadd.f32 %v492, %v523
      %v529 = vadd.f32 %v493, %v524
      %v530 = vadd.f32 %v494, %v522
      %v532 = vlaneseq
      %v533 = vshrl.u32 %v532, 7
      %v534 = vsub.s32 0, %v533
      %v535 = vrot.slane %v254, %v534
      %v536 = vlaneseq
      %v537 = vshrl.u32 %v536, 7
      %v538 = vsub.s32 1, %v537
      %v539 = vrot.slane %v254, %v538
      %540 = vrot.lane.b32.xlu0 %v535, 113
      %v541 = vpop.permute.xlu0 %540
      %542 = vrot.lane.b32.xlu0 %v539, 113
      %v543 = vpop.permute.xlu0 %542
      %vm544 = vcmask 924672
      %v545 = vsel %vm544, %v541, %v543
      %v549 = vmul.f32 %v273, %v541
      %v550 = vmul.f32 %v274, %v545
      %v551 = vmul.f32 %v275, %v543
      %552 = vset.pattern.permute.xlu0 8
      %553 = vperm.xlu0 %552, %v265
      %v554 = vpop.permute.xlu0 %553
      %v556 = vlaneseq
      %v557 = vshrl.u32 %v556, 7
      %v558 = vsub.s32 0, %v557
      %v559 = vrot.slane %v549, %v558
      %v560 = vlaneseq
      %v561 = vshrl.u32 %v560, 7
      %v562 = vsub.s32 0, %v561
      %v563 = vrot.slane %v550, %v562
      %v564 = vlaneseq
      %v565 = vshrl.u32 %v564, 7
      %v566 = vsub.s32 0, %v565
      %v567 = vrot.slane %v551, %v566
      %v568 = vmul.f32 %v554, %v559
      %v569 = vmul.f32 %v554, %v563
      %v570 = vmul.f32 %v554, %v567
      %574 = vrot.lane.b32.xlu0 %v568, 126
      %v575 = vpop.permute.xlu0 %574
      %576 = vrot.lane.b32.xlu0 %v569, 126
      %v577 = vpop.permute.xlu0 %576
      %578 = vrot.lane.b32.xlu0 %v570, 126
      %v579 = vpop.permute.xlu0 %578
      %vm580 = vcmask 1031168
      %v581 = vsel %vm580, %v575, %v577
      %v582 = vsel %vm580, %v577, %v579
      %v586 = vadd.f32 %v528, %v581
      %v587 = vadd.f32 %v529, %v582
      %v588 = vadd.f32 %v530, %v579
      %589 = vset.pattern.permute.xlu0 9
      %590 = vperm.xlu0 %589, %v265
      %v591 = vpop.permute.xlu0 %590
      %v593 = vlaneseq
      %v594 = vshrl.u32 %v593, 7
      %v595 = vsub.s32 1, %v594
      %v596 = vrot.slane %v549, %v595
      %v597 = vlaneseq
      %v598 = vshrl.u32 %v597, 7
      %v599 = vsub.s32 1, %v598
      %v600 = vrot.slane %v550, %v599
      %v601 = vlaneseq
      %v602 = vshrl.u32 %v601, 7
      %v603 = vsub.s32 1, %v602
      %v604 = vrot.slane %v551, %v603
      %v605 = vmul.f32 %v591, %v596
      %v606 = vmul.f32 %v591, %v600
      %v607 = vmul.f32 %v591, %v604
      %611 = vrot.lane.b32.xlu0 %v605, 126
      %v612 = vpop.permute.xlu0 %611
      %613 = vrot.lane.b32.xlu0 %v606, 126
      %v614 = vpop.permute.xlu0 %613
      %615 = vrot.lane.b32.xlu0 %v607, 126
      %v616 = vpop.permute.xlu0 %615
      %v617 = vsel %vm580, %v612, %v614
      %v618 = vsel %vm580, %v614, %v616
      %v622 = vadd.f32 %v586, %v617
      %v623 = vadd.f32 %v587, %v618
      %v624 = vadd.f32 %v588, %v616
      %625 = vset.pattern.permute.xlu0 10
      %626 = vperm.xlu0 %625, %v265
      %v627 = vpop.permute.xlu0 %626
      %v629 = vlaneseq
      %v630 = vshrl.u32 %v629, 7
      %v631 = vsub.s32 2, %v630
      %v632 = vrot.slane %v549, %v631
      %v633 = vlaneseq
      %v634 = vshrl.u32 %v633, 7
      %v635 = vsub.s32 2, %v634
      %v636 = vrot.slane %v550, %v635
      %v637 = vlaneseq
      %v638 = vshrl.u32 %v637, 7
      %v639 = vsub.s32 2, %v638
      %v640 = vrot.slane %v551, %v639
      %v641 = vmul.f32 %v627, %v632
      %v642 = vmul.f32 %v627, %v636
      %v643 = vmul.f32 %v627, %v640
      %647 = vrot.lane.b32.xlu0 %v641, 126
      %v648 = vpop.permute.xlu0 %647
      %649 = vrot.lane.b32.xlu0 %v642, 126
      %v650 = vpop.permute.xlu0 %649
      %651 = vrot.lane.b32.xlu0 %v643, 126
      %v652 = vpop.permute.xlu0 %651
      %v653 = vsel %vm580, %v648, %v650
      %v654 = vsel %vm580, %v650, %v652
      %v658 = vadd.f32 %v622, %v653
      %v659 = vadd.f32 %v623, %v654
      %v660 = vadd.f32 %v624, %v652
      %661 = vset.pattern.permute.xlu0 11
      %662 = vperm.xlu0 %661, %v265
      %v663 = vpop.permute.xlu0 %662
      %v665 = vlaneseq
      %v666 = vshrl.u32 %v665, 7
      %v667 = vsub.s32 3, %v666
      %v668 = vrot.slane %v549, %v667
      %v669 = vlaneseq
      %v670 = vshrl.u32 %v669, 7
      %v671 = vsub.s32 3, %v670
      %v672 = vrot.slane %v550, %v671
      %v673 = vlaneseq
      %v674 = vshrl.u32 %v673, 7
      %v675 = vsub.s32 3, %v674
      %v676 = vrot.slane %v551, %v675
      %v677 = vmul.f32 %v663, %v668
      %v678 = vmul.f32 %v663, %v672
      %v679 = vmul.f32 %v663, %v676
      %683 = vrot.lane.b32.xlu0 %v677, 126
      %v684 = vpop.permute.xlu0 %683
      %685 = vrot.lane.b32.xlu0 %v678, 126
      %v686 = vpop.permute.xlu0 %685
      %687 = vrot.lane.b32.xlu0 %v679, 126
      %v688 = vpop.permute.xlu0 %687
      %v689 = vsel %vm580, %v684, %v686
      %v690 = vsel %vm580, %v686, %v688
      %v694 = vadd.f32 %v658, %v689
      %v695 = vadd.f32 %v659, %v690
      %v696 = vadd.f32 %v660, %v688
      %697 = vrot.lane.b32.xlu0 %v280, 127
      %v698 = vpop.permute.xlu0 %697
      %699 = vrot.lane.b32.xlu0 %v284, 127
      %v700 = vpop.permute.xlu0 %699
      %v701 = vsel %vm414, %v698, %v700
      %v705 = vmul.f32 %v273, %v698
      %v706 = vmul.f32 %v274, %v701
      %v707 = vmul.f32 %v275, %v700
      %708 = vset.pattern.permute.xlu0 12
      %709 = vperm.xlu0 %708, %v265
      %v710 = vpop.permute.xlu0 %709
      %v712 = vlaneseq
      %v713 = vshrl.u32 %v712, 7
      %v714 = vsub.s32 0, %v713
      %v715 = vrot.slane %v705, %v714
      %v716 = vlaneseq
      %v717 = vshrl.u32 %v716, 7
      %v718 = vsub.s32 0, %v717
      %v719 = vrot.slane %v706, %v718
      %v720 = vlaneseq
      %v721 = vshrl.u32 %v720, 7
      %v722 = vsub.s32 0, %v721
      %v723 = vrot.slane %v707, %v722
      %v724 = vmul.f32 %v710, %v715
      %v725 = vmul.f32 %v710, %v719
      %v726 = vmul.f32 %v710, %v723
      %730 = vrot.lane.b32.xlu0 %v724, 112
      %v731 = vpop.permute.xlu0 %730
      %732 = vrot.lane.b32.xlu0 %v725, 112
      %v733 = vpop.permute.xlu0 %732
      %734 = vrot.lane.b32.xlu0 %v726, 112
      %v735 = vpop.permute.xlu0 %734
      %vm736 = vcmask 916480
      %v737 = vsel %vm736, %v731, %v733
      %v738 = vsel %vm736, %v733, %v735
      %v742 = vadd.f32 %v694, %v737
      %v743 = vadd.f32 %v695, %v738
      %v744 = vadd.f32 %v696, %v735
      %745 = vset.pattern.permute.xlu0 13
      %746 = vperm.xlu0 %745, %v265
      %v747 = vpop.permute.xlu0 %746
      %v749 = vlaneseq
      %v750 = vshrl.u32 %v749, 7
      %v751 = vsub.s32 1, %v750
      %v752 = vrot.slane %v705, %v751
      %v753 = vlaneseq
      %v754 = vshrl.u32 %v753, 7
      %v755 = vsub.s32 1, %v754
      %v756 = vrot.slane %v706, %v755
      %v757 = vlaneseq
      %v758 = vshrl.u32 %v757, 7
      %v759 = vsub.s32 1, %v758
      %v760 = vrot.slane %v707, %v759
      %v761 = vmul.f32 %v747, %v752
      %v762 = vmul.f32 %v747, %v756
      %v763 = vmul.f32 %v747, %v760
      %767 = vrot.lane.b32.xlu0 %v761, 112
      %v768 = vpop.permute.xlu0 %767
      %769 = vrot.lane.b32.xlu0 %v762, 112
      %v770 = vpop.permute.xlu0 %769
      %771 = vrot.lane.b32.xlu0 %v763, 112
      %v772 = vpop.permute.xlu0 %771
      %v773 = vsel %vm736, %v768, %v770
      %v774 = vsel %vm736, %v770, %v772
      %v778 = vadd.f32 %v742, %v773
      %v779 = vadd.f32 %v743, %v774
      %v780 = vadd.f32 %v744, %v772
      %781 = vset.pattern.permute.xlu0 14
      %782 = vperm.xlu0 %781, %v265
      %v783 = vpop.permute.xlu0 %782
      %v785 = vlaneseq
      %v786 = vshrl.u32 %v785, 7
      %v787 = vsub.s32 2, %v786
      %v788 = vrot.slane %v705, %v787
      %v789 = vlaneseq
      %v790 = vshrl.u32 %v789, 7
      %v791 = vsub.s32 2, %v790
      %v792 = vrot.slane %v706, %v791
      %v793 = vlaneseq
      %v794 = vshrl.u32 %v793, 7
      %v795 = vsub.s32 2, %v794
      %v796 = vrot.slane %v707, %v795
      %v797 = vmul.f32 %v783, %v788
      %v798 = vmul.f32 %v783, %v792
      %v799 = vmul.f32 %v783, %v796
      %803 = vrot.lane.b32.xlu0 %v797, 112
      %v804 = vpop.permute.xlu0 %803
      %805 = vrot.lane.b32.xlu0 %v798, 112
      %v806 = vpop.permute.xlu0 %805
      %807 = vrot.lane.b32.xlu0 %v799, 112
      %v808 = vpop.permute.xlu0 %807
      %v809 = vsel %vm736, %v804, %v806
      %v810 = vsel %vm736, %v806, %v808
      %v814 = vadd.f32 %v778, %v809
      %v815 = vadd.f32 %v779, %v810
      %v816 = vadd.f32 %v780, %v808
      %817 = vset.pattern.permute.xlu0 15
      %818 = vperm.xlu0 %817, %v265
      %v819 = vpop.permute.xlu0 %818
      %v821 = vlaneseq
      %v822 = vshrl.u32 %v821, 7
      %v823 = vsub.s32 3, %v822
      %v824 = vrot.slane %v705, %v823
      %v825 = vlaneseq
      %v826 = vshrl.u32 %v825, 7
      %v827 = vsub.s32 3, %v826
      %v828 = vrot.slane %v706, %v827
      %v829 = vlaneseq
      %v830 = vshrl.u32 %v829, 7
      %v831 = vsub.s32 3, %v830
      %v832 = vrot.slane %v707, %v831
      %v833 = vmul.f32 %v819, %v824
      %v834 = vmul.f32 %v819, %v828
      %v835 = vmul.f32 %v819, %v832
      %839 = vrot.lane.b32.xlu0 %v833, 112
      %v840 = vpop.permute.xlu0 %839
      %841 = vrot.lane.b32.xlu0 %v834, 112
      %v842 = vpop.permute.xlu0 %841
      %843 = vrot.lane.b32.xlu0 %v835, 112
      %v844 = vpop.permute.xlu0 %843
      %v845 = vsel %vm736, %v840, %v842
      %v846 = vsel %vm736, %v842, %v844
      %v850 = vadd.f32 %v814, %v845
      %v851 = vadd.f32 %v815, %v846
      %v852 = vadd.f32 %v816, %v844
      %853 = vset.pattern.permute.xlu0 16
      %854 = vperm.xlu0 %853, %v265
      %v855 = vpop.permute.xlu0 %854
      %v857 = vmul.f32 %v855, %v397
      %v858 = vmul.f32 %v855, %v401
      %861 = vrot.lane.b32.xlu0 %v857, 111
      %v862 = vpop.permute.xlu0 %861
      %863 = vrot.lane.b32.xlu0 %v858, 111
      %v864 = vpop.permute.xlu0 %863
      %v865 = vsel %vm289, %v862, %v864
      %v869 = vadd.f32 %v850, %v862
      %v870 = vadd.f32 %v851, %v865
      %v871 = vadd.f32 %v852, %v864
      %872 = vset.pattern.permute.xlu0 17
      %873 = vperm.xlu0 %872, %v265
      %v874 = vpop.permute.xlu0 %873
      %v876 = vmul.f32 %v874, %v434
      %v877 = vmul.f32 %v874, %v438
      %880 = vrot.lane.b32.xlu0 %v876, 111
      %v881 = vpop.permute.xlu0 %880
      %882 = vrot.lane.b32.xlu0 %v877, 111
      %v883 = vpop.permute.xlu0 %882
      %v884 = vsel %vm289, %v881, %v883
      %v888 = vadd.f32 %v869, %v881
      %v889 = vadd.f32 %v870, %v884
      %v890 = vadd.f32 %v871, %v883
      %891 = vset.pattern.permute.xlu0 18
      %892 = vperm.xlu0 %891, %v265
      %v893 = vpop.permute.xlu0 %892
      %v895 = vmul.f32 %v893, %v470
      %v896 = vmul.f32 %v893, %v474
      %899 = vrot.lane.b32.xlu0 %v895, 111
      %v900 = vpop.permute.xlu0 %899
      %901 = vrot.lane.b32.xlu0 %v896, 111
      %v902 = vpop.permute.xlu0 %901
      %v903 = vsel %vm289, %v900, %v902
      %v907 = vadd.f32 %v888, %v900
      %v908 = vadd.f32 %v889, %v903
      %v909 = vadd.f32 %v890, %v902
      %910 = vset.pattern.permute.xlu0 19
      %911 = vperm.xlu0 %910, %v265
      %v912 = vpop.permute.xlu0 %911
      %v914 = vmul.f32 %v912, %v506
      %v915 = vmul.f32 %v912, %v510
      %918 = vrot.lane.b32.xlu0 %v914, 111
      %v919 = vpop.permute.xlu0 %918
      %920 = vrot.lane.b32.xlu0 %v915, 111
      %v921 = vpop.permute.xlu0 %920
      %v922 = vsel %vm289, %v919, %v921
      %v926 = vadd.f32 %v907, %v919
      %v927 = vadd.f32 %v908, %v922
      %v928 = vadd.f32 %v909, %v921
      %v929 = vld [vmem:[#allocation2 + $0x8] sm:$0xf]
      %v930 = vld [vmem:[#allocation2 + $0x10] sm:$0xf]
      %v931 = vld [vmem:[#allocation2 + $0x18] sm:$0xf]
      %932 = vrot.lane.b32.xlu0 %v535, 1
      %v933 = vpop.permute.xlu0 %932
      %934 = vrot.lane.b32.xlu0 %v539, 1
      %v935 = vpop.permute.xlu0 %934
      %vm936 = vcmask 7168
      %v937 = vsel %vm936, %v933, %v935
      %v941 = vmul.f32 %v929, %v933
      %v942 = vmul.f32 %v930, %v937
      %v943 = vmul.f32 %v931, %v935
      %944 = vset.pattern.permute.xlu0 20
      %945 = vperm.xlu0 %944, %v265
      %v946 = vpop.permute.xlu0 %945
      %v948 = vlaneseq
      %v949 = vshrl.u32 %v948, 7
      %v950 = vsub.s32 0, %v949
      %v951 = vrot.slane %v941, %v950
      %v952 = vlaneseq
      %v953 = vshrl.u32 %v952, 7
      %v954 = vsub.s32 0, %v953
      %v955 = vrot.slane %v942, %v954
      %v956 = vlaneseq
      %v957 = vshrl.u32 %v956, 7
      %v958 = vsub.s32 0, %v957
      %v959 = vrot.slane %v943, %v958
      %v960 = vmul.f32 %v946, %v951
      %v961 = vmul.f32 %v946, %v955
      %v962 = vmul.f32 %v946, %v959
      %966 = vrot.lane.b32.xlu0 %v960, 110
      %v967 = vpop.permute.xlu0 %966
      %968 = vrot.lane.b32.xlu0 %v961, 110
      %v969 = vpop.permute.xlu0 %968
      %970 = vrot.lane.b32.xlu0 %v962, 110
      %v971 = vpop.permute.xlu0 %970
      %vm972 = vcmask 900096
      %v973 = vsel %vm972, %v967, %v969
      %v974 = vsel %vm972, %v969, %v971
      %v978 = vadd.f32 %v926, %v967
      %v979 = vadd.f32 %v927, %v973
      %v980 = vadd.f32 %v928, %v974
      %981 = vset.pattern.permute.xlu0 21
      %982 = vperm.xlu0 %981, %v265
      %v983 = vpop.permute.xlu0 %982
      %v985 = vlaneseq
      %v986 = vshrl.u32 %v985, 7
      %v987 = vsub.s32 1, %v986
      %v988 = vrot.slane %v941, %v987
      %v989 = vlaneseq
      %v990 = vshrl.u32 %v989, 7
      %v991 = vsub.s32 1, %v990
      %v992 = vrot.slane %v942, %v991
      %v993 = vlaneseq
      %v994 = vshrl.u32 %v993, 7
      %v995 = vsub.s32 1, %v994
      %v996 = vrot.slane %v943, %v995
      %v997 = vmul.f32 %v983, %v988
      %v998 = vmul.f32 %v983, %v992
      %v999 = vmul.f32 %v983, %v996
      %1003 = vrot.lane.b32.xlu0 %v997, 110
      %v1004 = vpop.permute.xlu0 %1003
      %1005 = vrot.lane.b32.xlu0 %v998, 110
      %v1006 = vpop.permute.xlu0 %1005
      %1007 = vrot.lane.b32.xlu0 %v999, 110
      %v1008 = vpop.permute.xlu0 %1007
      %v1009 = vsel %vm972, %v1004, %v1006
      %v1010 = vsel %vm972, %v1006, %v1008
      %v1014 = vadd.f32 %v978, %v1004
      %v1015 = vadd.f32 %v979, %v1009
      %v1016 = vadd.f32 %v980, %v1010
      %1017 = vset.pattern.permute.xlu0 22
      %1018 = vperm.xlu0 %1017, %v265
      %v1019 = vpop.permute.xlu0 %1018
      %v1021 = vlaneseq
      %v1022 = vshrl.u32 %v1021, 7
      %v1023 = vsub.s32 2, %v1022
      %v1024 = vrot.slane %v941, %v1023
      %v1025 = vlaneseq
      %v1026 = vshrl.u32 %v1025, 7
      %v1027 = vsub.s32 2, %v1026
      %v1028 = vrot.slane %v942, %v1027
      %v1029 = vlaneseq
      %v1030 = vshrl.u32 %v1029, 7
      %v1031 = vsub.s32 2, %v1030
      %v1032 = vrot.slane %v943, %v1031
      %v1033 = vmul.f32 %v1019, %v1024
      %v1034 = vmul.f32 %v1019, %v1028
      %v1035 = vmul.f32 %v1019, %v1032
      %1039 = vrot.lane.b32.xlu0 %v1033, 110
      %v1040 = vpop.permute.xlu0 %1039
      %1041 = vrot.lane.b32.xlu0 %v1034, 110
      %v1042 = vpop.permute.xlu0 %1041
      %1043 = vrot.lane.b32.xlu0 %v1035, 110
      %v1044 = vpop.permute.xlu0 %1043
      %v1045 = vsel %vm972, %v1040, %v1042
      %v1046 = vsel %vm972, %v1042, %v1044
      %v1050 = vadd.f32 %v1014, %v1040
      %v1051 = vadd.f32 %v1015, %v1045
      %v1052 = vadd.f32 %v1016, %v1046
      %1053 = vset.pattern.permute.xlu0 23
      %1054 = vperm.xlu0 %1053, %v265
      %v1055 = vpop.permute.xlu0 %1054
      %v1057 = vlaneseq
      %v1058 = vshrl.u32 %v1057, 7
      %v1059 = vsub.s32 3, %v1058
      %v1060 = vrot.slane %v941, %v1059
      %v1061 = vlaneseq
      %v1062 = vshrl.u32 %v1061, 7
      %v1063 = vsub.s32 3, %v1062
      %v1064 = vrot.slane %v942, %v1063
      %v1065 = vlaneseq
      %v1066 = vshrl.u32 %v1065, 7
      %v1067 = vsub.s32 3, %v1066
      %v1068 = vrot.slane %v943, %v1067
      %v1069 = vmul.f32 %v1055, %v1060
      %v1070 = vmul.f32 %v1055, %v1064
      %v1071 = vmul.f32 %v1055, %v1068
      %1075 = vrot.lane.b32.xlu0 %v1069, 110
      %v1076 = vpop.permute.xlu0 %1075
      %1077 = vrot.lane.b32.xlu0 %v1070, 110
      %v1078 = vpop.permute.xlu0 %1077
      %1079 = vrot.lane.b32.xlu0 %v1071, 110
      %v1080 = vpop.permute.xlu0 %1079
      %v1081 = vsel %vm972, %v1076, %v1078
      %v1082 = vsel %vm972, %v1078, %v1080
      %v1086 = vadd.f32 %v1050, %v1076
      %v1087 = vadd.f32 %v1051, %v1081
      %v1088 = vadd.f32 %v1052, %v1082
      %1089 = vrot.lane.b32.xlu0 %v280, 15
      %v1090 = vpop.permute.xlu0 %1089
      %1091 = vrot.lane.b32.xlu0 %v284, 15
      %v1092 = vpop.permute.xlu0 %1091
      %vm1093 = vcmask 121856
      %v1094 = vsel %vm1093, %v1090, %v1092
      %v1098 = vmul.f32 %v929, %v1090
      %v1099 = vmul.f32 %v930, %v1094
      %v1100 = vmul.f32 %v931, %v1092
      %1101 = vset.pattern.permute.xlu0 24
      %1102 = vperm.xlu0 %1101, %v265
      %v1103 = vpop.permute.xlu0 %1102
      %v1105 = vlaneseq
      %v1106 = vshrl.u32 %v1105, 7
      %v1107 = vsub.s32 0, %v1106
      %v1108 = vrot.slane %v1098, %v1107
      %v1109 = vlaneseq
      %v1110 = vshrl.u32 %v1109, 7
      %v1111 = vsub.s32 0, %v1110
      %v1112 = vrot.slane %v1099, %v1111
      %v1113 = vlaneseq
      %v1114 = vshrl.u32 %v1113, 7
      %v1115 = vsub.s32 0, %v1114
      %v1116 = vrot.slane %v1100, %v1115
      %v1117 = vmul.f32 %v1103, %v1108
      %v1118 = vmul.f32 %v1103, %v1112
      %v1119 = vmul.f32 %v1103, %v1116
      %1123 = vrot.lane.b32.xlu0 %v1117, 96
      %v1124 = vpop.permute.xlu0 %1123
      %1125 = vrot.lane.b32.xlu0 %v1118, 96
      %v1126 = vpop.permute.xlu0 %1125
      %1127 = vrot.lane.b32.xlu0 %v1119, 96
      %v1128 = vpop.permute.xlu0 %1127
      %vm1129 = vcmask 785408
      %v1130 = vsel %vm1129, %v1124, %v1126
      %v1131 = vsel %vm1129, %v1126, %v1128
      %v1135 = vadd.f32 %v1086, %v1124
      %v1136 = vadd.f32 %v1087, %v1130
      %v1137 = vadd.f32 %v1088, %v1131
      %1138 = vset.pattern.permute.xlu0 25
      %1139 = vperm.xlu0 %1138, %v265
      %v1140 = vpop.permute.xlu0 %1139
      %v1142 = vlaneseq
      %v1143 = vshrl.u32 %v1142, 7
      %v1144 = vsub.s32 1, %v1143
      %v1145 = vrot.slane %v1098, %v1144
      %v1146 = vlaneseq
      %v1147 = vshrl.u32 %v1146, 7
      %v1148 = vsub.s32 1, %v1147
      %v1149 = vrot.slane %v1099, %v1148
      %v1150 = vlaneseq
      %v1151 = vshrl.u32 %v1150, 7
      %v1152 = vsub.s32 1, %v1151
      %v1153 = vrot.slane %v1100, %v1152
      %v1154 = vmul.f32 %v1140, %v1145
      %v1155 = vmul.f32 %v1140, %v1149
      %v1156 = vmul.f32 %v1140, %v1153
      %1160 = vrot.lane.b32.xlu0 %v1154, 96
      %v1161 = vpop.permute.xlu0 %1160
      %1162 = vrot.lane.b32.xlu0 %v1155, 96
      %v1163 = vpop.permute.xlu0 %1162
      %1164 = vrot.lane.b32.xlu0 %v1156, 96
      %v1165 = vpop.permute.xlu0 %1164
      %v1166 = vsel %vm1129, %v1161, %v1163
      %v1167 = vsel %vm1129, %v1163, %v1165
      %v1171 = vadd.f32 %v1135, %v1161
      %v1172 = vadd.f32 %v1136, %v1166
      %v1173 = vadd.f32 %v1137, %v1167
      %1174 = vset.pattern.permute.xlu0 26
      %1175 = vperm.xlu0 %1174, %v265
      %v1176 = vpop.permute.xlu0 %1175
      %v1178 = vlaneseq
      %v1179 = vshrl.u32 %v1178, 7
      %v1180 = vsub.s32 2, %v1179
      %v1181 = vrot.slane %v1098, %v1180
      %v1182 = vlaneseq
      %v1183 = vshrl.u32 %v1182, 7
      %v1184 = vsub.s32 2, %v1183
      %v1185 = vrot.slane %v1099, %v1184
      %v1186 = vlaneseq
      %v1187 = vshrl.u32 %v1186, 7
      %v1188 = vsub.s32 2, %v1187
      %v1189 = vrot.slane %v1100, %v1188
      %v1190 = vmul.f32 %v1176, %v1181
      %v1191 = vmul.f32 %v1176, %v1185
      %v1192 = vmul.f32 %v1176, %v1189
      %1196 = vrot.lane.b32.xlu0 %v1190, 96
      %v1197 = vpop.permute.xlu0 %1196
      %1198 = vrot.lane.b32.xlu0 %v1191, 96
      %v1199 = vpop.permute.xlu0 %1198
      %1200 = vrot.lane.b32.xlu0 %v1192, 96
      %v1201 = vpop.permute.xlu0 %1200
      %v1202 = vsel %vm1129, %v1197, %v1199
      %v1203 = vsel %vm1129, %v1199, %v1201
      %v1207 = vadd.f32 %v1171, %v1197
      %v1208 = vadd.f32 %v1172, %v1202
      %v1209 = vadd.f32 %v1173, %v1203
      %1210 = vset.pattern.permute.xlu0 27
      %1211 = vperm.xlu0 %1210, %v265
      %v1212 = vpop.permute.xlu0 %1211
      %v1214 = vlaneseq
      %v1215 = vshrl.u32 %v1214, 7
      %v1216 = vsub.s32 3, %v1215
      %v1217 = vrot.slane %v1098, %v1216
      %v1218 = vlaneseq
      %v1219 = vshrl.u32 %v1218, 7
      %v1220 = vsub.s32 3, %v1219
      %v1221 = vrot.slane %v1099, %v1220
      %v1222 = vlaneseq
      %v1223 = vshrl.u32 %v1222, 7
      %v1224 = vsub.s32 3, %v1223
      %v1225 = vrot.slane %v1100, %v1224
      %v1226 = vmul.f32 %v1212, %v1217
      %v1227 = vmul.f32 %v1212, %v1221
      %v1228 = vmul.f32 %v1212, %v1225
      %1232 = vrot.lane.b32.xlu0 %v1226, 96
      %v1233 = vpop.permute.xlu0 %1232
      %1234 = vrot.lane.b32.xlu0 %v1227, 96
      %v1235 = vpop.permute.xlu0 %1234
      %1236 = vrot.lane.b32.xlu0 %v1228, 96
      %v1237 = vpop.permute.xlu0 %1236
      %v1238 = vsel %vm1129, %v1233, %v1235
      %v1239 = vsel %vm1129, %v1235, %v1237
      %v1243 = vadd.f32 %v1207, %v1233
      %v1244 = vadd.f32 %v1208, %v1238
      %v1245 = vadd.f32 %v1209, %v1239
      %1246 = vset.pattern.permute.xlu0 28
      %1247 = vperm.xlu0 %1246, %v265
      %v1248 = vpop.permute.xlu0 %1247
      %v1250 = vlaneseq
      %v1251 = vshrl.u32 %v1250, 7
      %v1252 = vsub.s32 0, %v1251
      %v1253 = vrot.slane %v929, %v1252
      %v1254 = vlaneseq
      %v1255 = vshrl.u32 %v1254, 7
      %v1256 = vsub.s32 0, %v1255
      %v1257 = vrot.slane %v930, %v1256
      %v1258 = vlaneseq
      %v1259 = vshrl.u32 %v1258, 7
      %v1260 = vsub.s32 0, %v1259
      %v1261 = vrot.slane %v931, %v1260
      %v1262 = vmul.f32 %v1248, %v1253
      %v1263 = vmul.f32 %v1248, %v1257
      %v1264 = vmul.f32 %v1248, %v1261
      %1268 = vrot.lane.b32.xlu0 %v1262, 95
      %v1269 = vpop.permute.xlu0 %1268
      %1270 = vrot.lane.b32.xlu0 %v1263, 95
      %v1271 = vpop.permute.xlu0 %1270
      %1272 = vrot.lane.b32.xlu0 %v1264, 95
      %v1273 = vpop.permute.xlu0 %1272
      %vm1274 = vcmask 777216
      %v1275 = vsel %vm1274, %v1269, %v1271
      %v1276 = vsel %vm1274, %v1271, %v1273
      %v1280 = vadd.f32 %v1243, %v1269
      %v1281 = vadd.f32 %v1244, %v1275
      %v1282 = vadd.f32 %v1245, %v1276
      %1283 = vset.pattern.permute.xlu0 29
      %1284 = vperm.xlu0 %1283, %v265
      %v1285 = vpop.permute.xlu0 %1284
      %v1287 = vlaneseq
      %v1288 = vshrl.u32 %v1287, 7
      %v1289 = vsub.s32 1, %v1288
      %v1290 = vrot.slane %v929, %v1289
      %v1291 = vlaneseq
      %v1292 = vshrl.u32 %v1291, 7
      %v1293 = vsub.s32 1, %v1292
      %v1294 = vrot.slane %v930, %v1293
      %v1295 = vlaneseq
      %v1296 = vshrl.u32 %v1295, 7
      %v1297 = vsub.s32 1, %v1296
      %v1298 = vrot.slane %v931, %v1297
      %v1299 = vmul.f32 %v1285, %v1290
      %v1300 = vmul.f32 %v1285, %v1294
      %v1301 = vmul.f32 %v1285, %v1298
      %1305 = vrot.lane.b32.xlu0 %v1299, 95
      %v1306 = vpop.permute.xlu0 %1305
      %1307 = vrot.lane.b32.xlu0 %v1300, 95
      %v1308 = vpop.permute.xlu0 %1307
      %1309 = vrot.lane.b32.xlu0 %v1301, 95
      %v1310 = vpop.permute.xlu0 %1309
      %v1311 = vsel %vm1274, %v1306, %v1308
      %v1312 = vsel %vm1274, %v1308, %v1310
      %v1316 = vadd.f32 %v1280, %v1306
      %v1317 = vadd.f32 %v1281, %v1311
      %v1318 = vadd.f32 %v1282, %v1312
      %1319 = vset.pattern.permute.xlu0 30
      %1320 = vperm.xlu0 %1319, %v265
      %v1321 = vpop.permute.xlu0 %1320
      %v1323 = vlaneseq
      %v1324 = vshrl.u32 %v1323, 7
      %v1325 = vsub.s32 2, %v1324
      %v1326 = vrot.slane %v929, %v1325
      %v1327 = vlaneseq
      %v1328 = vshrl.u32 %v1327, 7
      %v1329 = vsub.s32 2, %v1328
      %v1330 = vrot.slane %v930, %v1329
      %v1331 = vlaneseq
      %v1332 = vshrl.u32 %v1331, 7
      %v1333 = vsub.s32 2, %v1332
      %v1334 = vrot.slane %v931, %v1333
      %v1335 = vmul.f32 %v1321, %v1326
      %v1336 = vmul.f32 %v1321, %v1330
      %v1337 = vmul.f32 %v1321, %v1334
      %1341 = vrot.lane.b32.xlu0 %v1335, 95
      %v1342 = vpop.permute.xlu0 %1341
      %1343 = vrot.lane.b32.xlu0 %v1336, 95
      %v1344 = vpop.permute.xlu0 %1343
      %1345 = vrot.lane.b32.xlu0 %v1337, 95
      %v1346 = vpop.permute.xlu0 %1345
      %v1347 = vsel %vm1274, %v1342, %v1344
      %v1348 = vsel %vm1274, %v1344, %v1346
      %v1352 = vadd.f32 %v1316, %v1342
      %v1353 = vadd.f32 %v1317, %v1347
      %v1354 = vadd.f32 %v1318, %v1348
      %1355 = vset.pattern.permute.xlu0 31
      %1356 = vperm.xlu0 %1355, %v265
      %v1357 = vpop.permute.xlu0 %1356
      %v1359 = vlaneseq
      %v1360 = vshrl.u32 %v1359, 7
      %v1361 = vsub.s32 3, %v1360
      %v1362 = vrot.slane %v929, %v1361
      %v1363 = vlaneseq
      %v1364 = vshrl.u32 %v1363, 7
      %v1365 = vsub.s32 3, %v1364
      %v1366 = vrot.slane %v930, %v1365
      %v1367 = vlaneseq
      %v1368 = vshrl.u32 %v1367, 7
      %v1369 = vsub.s32 3, %v1368
      %v1370 = vrot.slane %v931, %v1369
      %v1371 = vmul.f32 %v1357, %v1362
      %v1372 = vmul.f32 %v1357, %v1366
      %v1373 = vmul.f32 %v1357, %v1370
      %1377 = vrot.lane.b32.xlu0 %v1371, 95
      %v1378 = vpop.permute.xlu0 %1377
      %1379 = vrot.lane.b32.xlu0 %v1372, 95
      %v1380 = vpop.permute.xlu0 %1379
      %1381 = vrot.lane.b32.xlu0 %v1373, 95
      %v1382 = vpop.permute.xlu0 %1381
      %v1383 = vsel %vm1274, %v1378, %v1380
      %v1384 = vsel %vm1274, %v1380, %v1382
      %v1388 = vadd.f32 %v1352, %v1378
      %v1389 = vadd.f32 %v1353, %v1383
      %v1390 = vadd.f32 %v1354, %v1384
      %1391 = vrot.lane.b32.xlu0 %v535, 17
      %v1392 = vpop.permute.xlu0 %1391
      %1393 = vrot.lane.b32.xlu0 %v539, 17
      %v1394 = vpop.permute.xlu0 %1393
      %vm1395 = vcmask 138240
      %v1396 = vsel %vm1395, %v1392, %v1394
      %v1400 = vmul.f32 %v929, %v1392
      %v1401 = vmul.f32 %v930, %v1396
      %v1402 = vmul.f32 %v931, %v1394
      %1403 = vset.pattern.permute.xlu0 32
      %1404 = vperm.xlu0 %1403, %v265
      %v1405 = vpop.permute.xlu0 %1404
      %v1407 = vlaneseq
      %v1408 = vshrl.u32 %v1407, 7
      %v1409 = vsub.s32 0, %v1408
      %v1410 = vrot.slane %v1400, %v1409
      %v1411 = vlaneseq
      %v1412 = vshrl.u32 %v1411, 7
      %v1413 = vsub.s32 0, %v1412
      %v1414 = vrot.slane %v1401, %v1413
      %v1415 = vlaneseq
      %v1416 = vshrl.u32 %v1415, 7
      %v1417 = vsub.s32 0, %v1416
      %v1418 = vrot.slane %v1402, %v1417
      %v1419 = vmul.f32 %v1405, %v1410
      %v1420 = vmul.f32 %v1405, %v1414
      %v1421 = vmul.f32 %v1405, %v1418
      %1425 = vrot.lane.b32.xlu0 %v1419, 94
      %v1426 = vpop.permute.xlu0 %1425
      %1427 = vrot.lane.b32.xlu0 %v1420, 94
      %v1428 = vpop.permute.xlu0 %1427
      %1429 = vrot.lane.b32.xlu0 %v1421, 94
      %v1430 = vpop.permute.xlu0 %1429
      %vm1431 = vcmask 769024
      %v1432 = vsel %vm1431, %v1426, %v1428
      %v1433 = vsel %vm1431, %v1428, %v1430
      %v1437 = vadd.f32 %v1388, %v1426
      %v1438 = vadd.f32 %v1389, %v1432
      %v1439 = vadd.f32 %v1390, %v1433
      %1440 = vset.pattern.permute.xlu0 33
      %1441 = vperm.xlu0 %1440, %v265
      %v1442 = vpop.permute.xlu0 %1441
      %v1444 = vlaneseq
      %v1445 = vshrl.u32 %v1444, 7
      %v1446 = vsub.s32 1, %v1445
      %v1447 = vrot.slane %v1400, %v1446
      %v1448 = vlaneseq
      %v1449 = vshrl.u32 %v1448, 7
      %v1450 = vsub.s32 1, %v1449
      %v1451 = vrot.slane %v1401, %v1450
      %v1452 = vlaneseq
      %v1453 = vshrl.u32 %v1452, 7
      %v1454 = vsub.s32 1, %v1453
      %v1455 = vrot.slane %v1402, %v1454
      %v1456 = vmul.f32 %v1442, %v1447
      %v1457 = vmul.f32 %v1442, %v1451
      %v1458 = vmul.f32 %v1442, %v1455
      %1462 = vrot.lane.b32.xlu0 %v1456, 94
      %v1463 = vpop.permute.xlu0 %1462
      %1464 = vrot.lane.b32.xlu0 %v1457, 94
      %v1465 = vpop.permute.xlu0 %1464
      %1466 = vrot.lane.b32.xlu0 %v1458, 94
      %v1467 = vpop.permute.xlu0 %1466
      %v1468 = vsel %vm1431, %v1463, %v1465
      %v1469 = vsel %vm1431, %v1465, %v1467
      %v1473 = vadd.f32 %v1437, %v1463
      %v1474 = vadd.f32 %v1438, %v1468
      %v1475 = vadd.f32 %v1439, %v1469
      %1476 = vset.pattern.permute.xlu0 34
      %1477 = vperm.xlu0 %1476, %v265
      %v1478 = vpop.permute.xlu0 %1477
      %v1480 = vlaneseq
      %v1481 = vshrl.u32 %v1480, 7
      %v1482 = vsub.s32 2, %v1481
      %v1483 = vrot.slane %v1400, %v1482
      %v1484 = vlaneseq
      %v1485 = vshrl.u32 %v1484, 7
      %v1486 = vsub.s32 2, %v1485
      %v1487 = vrot.slane %v1401, %v1486
      %v1488 = vlaneseq
      %v1489 = vshrl.u32 %v1488, 7
      %v1490 = vsub.s32 2, %v1489
      %v1491 = vrot.slane %v1402, %v1490
      %v1492 = vmul.f32 %v1478, %v1483
      %v1493 = vmul.f32 %v1478, %v1487
      %v1494 = vmul.f32 %v1478, %v1491
      %1498 = vrot.lane.b32.xlu0 %v1492, 94
      %v1499 = vpop.permute.xlu0 %1498
      %1500 = vrot.lane.b32.xlu0 %v1493, 94
      %v1501 = vpop.permute.xlu0 %1500
      %1502 = vrot.lane.b32.xlu0 %v1494, 94
      %v1503 = vpop.permute.xlu0 %1502
      %v1504 = vsel %vm1431, %v1499, %v1501
      %v1505 = vsel %vm1431, %v1501, %v1503
      %v1509 = vadd.f32 %v1473, %v1499
      %v1510 = vadd.f32 %v1474, %v1504
      %v1511 = vadd.f32 %v1475, %v1505
      %1512 = vset.pattern.permute.xlu0 35
      %1513 = vperm.xlu0 %1512, %v265
      %v1514 = vpop.permute.xlu0 %1513
      %v1516 = vlaneseq
      %v1517 = vshrl.u32 %v1516, 7
      %v1518 = vsub.s32 3, %v1517
      %v1519 = vrot.slane %v1400, %v1518
      %v1520 = vlaneseq
      %v1521 = vshrl.u32 %v1520, 7
      %v1522 = vsub.s32 3, %v1521
      %v1523 = vrot.slane %v1401, %v1522
      %v1524 = vlaneseq
      %v1525 = vshrl.u32 %v1524, 7
      %v1526 = vsub.s32 3, %v1525
      %v1527 = vrot.slane %v1402, %v1526
      %v1528 = vmul.f32 %v1514, %v1519
      %v1529 = vmul.f32 %v1514, %v1523
      %v1530 = vmul.f32 %v1514, %v1527
      %1534 = vrot.lane.b32.xlu0 %v1528, 94
      %v1535 = vpop.permute.xlu0 %1534
      %1536 = vrot.lane.b32.xlu0 %v1529, 94
      %v1537 = vpop.permute.xlu0 %1536
      %1538 = vrot.lane.b32.xlu0 %v1530, 94
      %v1539 = vpop.permute.xlu0 %1538
      %v1540 = vsel %vm1431, %v1535, %v1537
      %v1541 = vsel %vm1431, %v1537, %v1539
      %v1545 = vadd.f32 %v1509, %v1535
      %v1546 = vadd.f32 %v1510, %v1540
      %v1547 = vadd.f32 %v1511, %v1541
      %v1548 = vxor.u32 %v1545, 2147483648
      %v1549 = vxor.u32 %v1546, 2147483648
      %v1550 = vxor.u32 %v1547, 2147483648
      %v1551 = vmul.f32 %v1548, 1.442695
      %v1552 = vpow.pop %v1551
      %v1553 = vmul.f32 %v1549, 1.442695
      %v1554 = vpow.pop %v1553
      %v1555 = vmul.f32 %v1550, 1.442695
      %v1556 = vpow.pop %v1555
      %v1557 = vadd.f32 %v1552, 1.0
      %v1558 = vadd.f32 %v1554, 1.0
      %v1559 = vadd.f32 %v1556, 1.0
      %v1560 = vrcp.pop %v1557
      %v1561 = vmul.f32 1.0, %v1560
      %v1562 = vrcp.pop %v1558
      %v1563 = vmul.f32 1.0, %v1562
      %v1564 = vrcp.pop %v1559
      %v1565 = vmul.f32 1.0, %v1564
      %1569 = vrot.lane.b32.xlu0 %v1561, 17
      %v1570 = vpop.permute.xlu0 %1569
      %1571 = vrot.lane.b32.xlu0 %v1563, 17
      %v1572 = vpop.permute.xlu0 %1571
      %1573 = vrot.lane.b32.xlu0 %v1565, 17
      %v1574 = vpop.permute.xlu0 %1573
      %v1575 = vsel %vm1395, %v1570, %v1572
      %v1576 = vsel %vm1395, %v1572, %v1574
      %1579 = vst [vmem:[#allocation2 + $0x8] sm:$0xff] %v1575
      %1580 = vst [vmem:[#allocation2 + $0x10] sm:$0xff] %v1576
      %v1581 = vld [vmem:[%s4] sm:$0xff]
      %v1582 = vld [vmem:[%s5] sm:$0xff]
      %1584 = vset.pattern.permute.xlu0 0
      %1585 = vperm.xlu0 %1584, %v1582
      %v1586 = vpop.permute.xlu0 %1585
      %v1588 = vadd.f32 %v1586, 0.0
      %v1589 = vld [vmem:[#allocation2] sm:$0xff]
      %v1590 = vld [vmem:[#allocation2 + $0x8] sm:$0xff]
      %v1591 = vld [vmem:[#allocation2 + $0x10] sm:$0xff]
      %v1592 = vmul.f32 %v1589, %v286
      %v1593 = vmul.f32 %v1590, %v290
      %v1594 = vmul.f32 %v1591, %v288
      %1596 = vset.pattern.permute.xlu0 0
      %1597 = vperm.xlu0 %1596, %v1581
      %v1598 = vpop.permute.xlu0 %1597
      %v1600 = vlaneseq
      %v1601 = vshrl.u32 %v1600, 7
      %v1602 = vsub.s32 0, %v1601
      %v1603 = vrot.slane %v1592, %v1602
      %v1604 = vlaneseq
      %v1605 = vshrl.u32 %v1604, 7
      %v1606 = vsub.s32 0, %v1605
      %v1607 = vrot.slane %v1593, %v1606
      %v1608 = vlaneseq
      %v1609 = vshrl.u32 %v1608, 7
      %v1610 = vsub.s32 0, %v1609
      %v1611 = vrot.slane %v1594, %v1610
      %v1612 = vmul.f32 %v1598, %v1603
      %v1613 = vmul.f32 %v1598, %v1607
      %v1614 = vmul.f32 %v1598, %v1611
      %v1615 = vadd.f32 %v1588, %v1612
      %v1616 = vadd.f32 %v1588, %v1613
      %v1617 = vadd.f32 %v1588, %v1614
      %1618 = vset.pattern.permute.xlu0 1
      %1619 = vperm.xlu0 %1618, %v1581
      %v1620 = vpop.permute.xlu0 %1619
      %v1622 = vlaneseq
      %v1623 = vshrl.u32 %v1622, 7
      %v1624 = vsub.s32 1, %v1623
      %v1625 = vrot.slane %v1592, %v1624
      %v1626 = vlaneseq
      %v1627 = vshrl.u32 %v1626, 7
      %v1628 = vsub.s32 1, %v1627
      %v1629 = vrot.slane %v1593, %v1628
      %v1630 = vlaneseq
      %v1631 = vshrl.u32 %v1630, 7
      %v1632 = vsub.s32 1, %v1631
      %v1633 = vrot.slane %v1594, %v1632
      %v1634 = vmul.f32 %v1620, %v1625
      %v1635 = vmul.f32 %v1620, %v1629
      %v1636 = vmul.f32 %v1620, %v1633
      %v1637 = vadd.f32 %v1615, %v1634
      %v1638 = vadd.f32 %v1616, %v1635
      %v1639 = vadd.f32 %v1617, %v1636
      %1640 = vset.pattern.permute.xlu0 2
      %1641 = vperm.xlu0 %1640, %v1581
      %v1642 = vpop.permute.xlu0 %1641
      %v1644 = vlaneseq
      %v1645 = vshrl.u32 %v1644, 7
      %v1646 = vsub.s32 2, %v1645
      %v1647 = vrot.slane %v1592, %v1646
      %v1648 = vlaneseq
      %v1649 = vshrl.u32 %v1648, 7
      %v1650 = vsub.s32 2, %v1649
      %v1651 = vrot.slane %v1593, %v1650
      %v1652 = vlaneseq
      %v1653 = vshrl.u32 %v1652, 7
      %v1654 = vsub.s32 2, %v1653
      %v1655 = vrot.slane %v1594, %v1654
      %v1656 = vmul.f32 %v1642, %v1647
      %v1657 = vmul.f32 %v1642, %v1651
      %v1658 = vmul.f32 %v1642, %v1655
      %v1659 = vadd.f32 %v1637, %v1656
      %v1660 = vadd.f32 %v1638, %v1657
      %v1661 = vadd.f32 %v1639, %v1658
      %1662 = vset.pattern.permute.xlu0 3
      %1663 = vperm.xlu0 %1662, %v1581
      %v1664 = vpop.permute.xlu0 %1663
      %v1666 = vlaneseq
      %v1667 = vshrl.u32 %v1666, 7
      %v1668 = vsub.s32 3, %v1667
      %v1669 = vrot.slane %v1592, %v1668
      %v1670 = vlaneseq
      %v1671 = vshrl.u32 %v1670, 7
      %v1672 = vsub.s32 3, %v1671
      %v1673 = vrot.slane %v1593, %v1672
      %v1674 = vlaneseq
      %v1675 = vshrl.u32 %v1674, 7
      %v1676 = vsub.s32 3, %v1675
      %v1677 = vrot.slane %v1594, %v1676
      %v1678 = vmul.f32 %v1664, %v1669
      %v1679 = vmul.f32 %v1664, %v1673
      %v1680 = vmul.f32 %v1664, %v1677
      %v1681 = vadd.f32 %v1659, %v1678
      %v1682 = vadd.f32 %v1660, %v1679
      %v1683 = vadd.f32 %v1661, %v1680
      %1684 = vset.pattern.permute.xlu0 4
      %1685 = vperm.xlu0 %1684, %v1581
      %v1686 = vpop.permute.xlu0 %1685
      %v1688 = vlaneseq
      %v1689 = vshrl.u32 %v1688, 7
      %v1690 = vsub.s32 4, %v1689
      %v1691 = vrot.slane %v1592, %v1690
      %v1692 = vlaneseq
      %v1693 = vshrl.u32 %v1692, 7
      %v1694 = vsub.s32 4, %v1693
      %v1695 = vrot.slane %v1593, %v1694
      %v1696 = vlaneseq
      %v1697 = vshrl.u32 %v1696, 7
      %v1698 = vsub.s32 4, %v1697
      %v1699 = vrot.slane %v1594, %v1698
      %v1700 = vmul.f32 %v1686, %v1691
      %v1701 = vmul.f32 %v1686, %v1695
      %v1702 = vmul.f32 %v1686, %v1699
      %v1703 = vadd.f32 %v1681, %v1700
      %v1704 = vadd.f32 %v1682, %v1701
      %v1705 = vadd.f32 %v1683, %v1702
      %1706 = vset.pattern.permute.xlu0 5
      %1707 = vperm.xlu0 %1706, %v1581
      %v1708 = vpop.permute.xlu0 %1707
      %v1710 = vlaneseq
      %v1711 = vshrl.u32 %v1710, 7
      %v1712 = vsub.s32 5, %v1711
      %v1713 = vrot.slane %v1592, %v1712
      %v1714 = vlaneseq
      %v1715 = vshrl.u32 %v1714, 7
      %v1716 = vsub.s32 5, %v1715
      %v1717 = vrot.slane %v1593, %v1716
      %v1718 = vlaneseq
      %v1719 = vshrl.u32 %v1718, 7
      %v1720 = vsub.s32 5, %v1719
      %v1721 = vrot.slane %v1594, %v1720
      %v1722 = vmul.f32 %v1708, %v1713
      %v1723 = vmul.f32 %v1708, %v1717
      %v1724 = vmul.f32 %v1708, %v1721
      %v1725 = vadd.f32 %v1703, %v1722
      %v1726 = vadd.f32 %v1704, %v1723
      %v1727 = vadd.f32 %v1705, %v1724
      %1728 = vset.pattern.permute.xlu0 6
      %1729 = vperm.xlu0 %1728, %v1581
      %v1730 = vpop.permute.xlu0 %1729
      %v1732 = vlaneseq
      %v1733 = vshrl.u32 %v1732, 7
      %v1734 = vsub.s32 6, %v1733
      %v1735 = vrot.slane %v1592, %v1734
      %v1736 = vlaneseq
      %v1737 = vshrl.u32 %v1736, 7
      %v1738 = vsub.s32 6, %v1737
      %v1739 = vrot.slane %v1593, %v1738
      %v1740 = vlaneseq
      %v1741 = vshrl.u32 %v1740, 7
      %v1742 = vsub.s32 6, %v1741
      %v1743 = vrot.slane %v1594, %v1742
      %v1744 = vmul.f32 %v1730, %v1735
      %v1745 = vmul.f32 %v1730, %v1739
      %v1746 = vmul.f32 %v1730, %v1743
      %v1747 = vadd.f32 %v1725, %v1744
      %v1748 = vadd.f32 %v1726, %v1745
      %v1749 = vadd.f32 %v1727, %v1746
      %1750 = vset.pattern.permute.xlu0 7
      %1751 = vperm.xlu0 %1750, %v1581
      %v1752 = vpop.permute.xlu0 %1751
      %v1754 = vlaneseq
      %v1755 = vshrl.u32 %v1754, 7
      %v1756 = vsub.s32 7, %v1755
      %v1757 = vrot.slane %v1592, %v1756
      %v1758 = vlaneseq
      %v1759 = vshrl.u32 %v1758, 7
      %v1760 = vsub.s32 7, %v1759
      %v1761 = vrot.slane %v1593, %v1760
      %v1762 = vlaneseq
      %v1763 = vshrl.u32 %v1762, 7
      %v1764 = vsub.s32 7, %v1763
      %v1765 = vrot.slane %v1594, %v1764
      %v1766 = vmul.f32 %v1752, %v1757
      %v1767 = vmul.f32 %v1752, %v1761
      %v1768 = vmul.f32 %v1752, %v1765
      %v1769 = vadd.f32 %v1747, %v1766
      %v1770 = vadd.f32 %v1748, %v1767
      %v1771 = vadd.f32 %v1749, %v1768
      %1772 = vset.pattern.permute.xlu0 8
      %1773 = vperm.xlu0 %1772, %v1581
      %v1774 = vpop.permute.xlu0 %1773
      %v1776 = vlaneseq
      %v1777 = vshrl.u32 %v1776, 7
      %v1778 = vsub.s32 0, %v1777
      %v1779 = vrot.slane %v1589, %v1778
      %v1780 = vlaneseq
      %v1781 = vshrl.u32 %v1780, 7
      %v1782 = vsub.s32 0, %v1781
      %v1783 = vrot.slane %v1590, %v1782
      %v1784 = vlaneseq
      %v1785 = vshrl.u32 %v1784, 7
      %v1786 = vsub.s32 0, %v1785
      %v1787 = vrot.slane %v1591, %v1786
      %v1788 = vmul.f32 %v1774, %v1779
      %v1789 = vmul.f32 %v1774, %v1783
      %v1790 = vmul.f32 %v1774, %v1787
      %1794 = vrot.lane.b32.xlu0 %v1788, 127
      %v1795 = vpop.permute.xlu0 %1794
      %1796 = vrot.lane.b32.xlu0 %v1789, 127
      %v1797 = vpop.permute.xlu0 %1796
      %1798 = vrot.lane.b32.xlu0 %v1790, 127
      %v1799 = vpop.permute.xlu0 %1798
      %v1800 = vsel %vm414, %v1795, %v1797
      %v1801 = vsel %vm414, %v1797, %v1799
      %v1805 = vadd.f32 %v1769, %v1800
      %v1806 = vadd.f32 %v1770, %v1801
      %v1807 = vadd.f32 %v1771, %v1799
      %1808 = vset.pattern.permute.xlu0 9
      %1809 = vperm.xlu0 %1808, %v1581
      %v1810 = vpop.permute.xlu0 %1809
      %v1812 = vlaneseq
      %v1813 = vshrl.u32 %v1812, 7
      %v1814 = vsub.s32 1, %v1813
      %v1815 = vrot.slane %v1589, %v1814
      %v1816 = vlaneseq
      %v1817 = vshrl.u32 %v1816, 7
      %v1818 = vsub.s32 1, %v1817
      %v1819 = vrot.slane %v1590, %v1818
      %v1820 = vlaneseq
      %v1821 = vshrl.u32 %v1820, 7
      %v1822 = vsub.s32 1, %v1821
      %v1823 = vrot.slane %v1591, %v1822
      %v1824 = vmul.f32 %v1810, %v1815
      %v1825 = vmul.f32 %v1810, %v1819
      %v1826 = vmul.f32 %v1810, %v1823
      %1830 = vrot.lane.b32.xlu0 %v1824, 127
      %v1831 = vpop.permute.xlu0 %1830
      %1832 = vrot.lane.b32.xlu0 %v1825, 127
      %v1833 = vpop.permute.xlu0 %1832
      %1834 = vrot.lane.b32.xlu0 %v1826, 127
      %v1835 = vpop.permute.xlu0 %1834
      %v1836 = vsel %vm414, %v1831, %v1833
      %v1837 = vsel %vm414, %v1833, %v1835
      %v1841 = vadd.f32 %v1805, %v1836
      %v1842 = vadd.f32 %v1806, %v1837
      %v1843 = vadd.f32 %v1807, %v1835
      %1844 = vset.pattern.permute.xlu0 10
      %1845 = vperm.xlu0 %1844, %v1581
      %v1846 = vpop.permute.xlu0 %1845
      %v1848 = vlaneseq
      %v1849 = vshrl.u32 %v1848, 7
      %v1850 = vsub.s32 2, %v1849
      %v1851 = vrot.slane %v1589, %v1850
      %v1852 = vlaneseq
      %v1853 = vshrl.u32 %v1852, 7
      %v1854 = vsub.s32 2, %v1853
      %v1855 = vrot.slane %v1590, %v1854
      %v1856 = vlaneseq
      %v1857 = vshrl.u32 %v1856, 7
      %v1858 = vsub.s32 2, %v1857
      %v1859 = vrot.slane %v1591, %v1858
      %v1860 = vmul.f32 %v1846, %v1851
      %v1861 = vmul.f32 %v1846, %v1855
      %v1862 = vmul.f32 %v1846, %v1859
      %1866 = vrot.lane.b32.xlu0 %v1860, 127
      %v1867 = vpop.permute.xlu0 %1866
      %1868 = vrot.lane.b32.xlu0 %v1861, 127
      %v1869 = vpop.permute.xlu0 %1868
      %1870 = vrot.lane.b32.xlu0 %v1862, 127
      %v1871 = vpop.permute.xlu0 %1870
      %v1872 = vsel %vm414, %v1867, %v1869
      %v1873 = vsel %vm414, %v1869, %v1871
      %v1877 = vadd.f32 %v1841, %v1872
      %v1878 = vadd.f32 %v1842, %v1873
      %v1879 = vadd.f32 %v1843, %v1871
      %1880 = vset.pattern.permute.xlu0 11
      %1881 = vperm.xlu0 %1880, %v1581
      %v1882 = vpop.permute.xlu0 %1881
      %v1884 = vlaneseq
      %v1885 = vshrl.u32 %v1884, 7
      %v1886 = vsub.s32 3, %v1885
      %v1887 = vrot.slane %v1589, %v1886
      %v1888 = vlaneseq
      %v1889 = vshrl.u32 %v1888, 7
      %v1890 = vsub.s32 3, %v1889
      %v1891 = vrot.slane %v1590, %v1890
      %v1892 = vlaneseq
      %v1893 = vshrl.u32 %v1892, 7
      %v1894 = vsub.s32 3, %v1893
      %v1895 = vrot.slane %v1591, %v1894
      %v1896 = vmul.f32 %v1882, %v1887
      %v1897 = vmul.f32 %v1882, %v1891
      %v1898 = vmul.f32 %v1882, %v1895
      %1902 = vrot.lane.b32.xlu0 %v1896, 127
      %v1903 = vpop.permute.xlu0 %1902
      %1904 = vrot.lane.b32.xlu0 %v1897, 127
      %v1905 = vpop.permute.xlu0 %1904
      %1906 = vrot.lane.b32.xlu0 %v1898, 127
      %v1907 = vpop.permute.xlu0 %1906
      %v1908 = vsel %vm414, %v1903, %v1905
      %v1909 = vsel %vm414, %v1905, %v1907
      %v1913 = vadd.f32 %v1877, %v1908
      %v1914 = vadd.f32 %v1878, %v1909
      %v1915 = vadd.f32 %v1879, %v1907
      %1916 = vset.pattern.permute.xlu0 12
      %1917 = vperm.xlu0 %1916, %v1581
      %v1918 = vpop.permute.xlu0 %1917
      %v1920 = vlaneseq
      %v1921 = vshrl.u32 %v1920, 7
      %v1922 = vsub.s32 4, %v1921
      %v1923 = vrot.slane %v1589, %v1922
      %v1924 = vlaneseq
      %v1925 = vshrl.u32 %v1924, 7
      %v1926 = vsub.s32 4, %v1925
      %v1927 = vrot.slane %v1590, %v1926
      %v1928 = vlaneseq
      %v1929 = vshrl.u32 %v1928, 7
      %v1930 = vsub.s32 4, %v1929
      %v1931 = vrot.slane %v1591, %v1930
      %v1932 = vmul.f32 %v1918, %v1923
      %v1933 = vmul.f32 %v1918, %v1927
      %v1934 = vmul.f32 %v1918, %v1931
      %1938 = vrot.lane.b32.xlu0 %v1932, 127
      %v1939 = vpop.permute.xlu0 %1938
      %1940 = vrot.lane.b32.xlu0 %v1933, 127
      %v1941 = vpop.permute.xlu0 %1940
      %1942 = vrot.lane.b32.xlu0 %v1934, 127
      %v1943 = vpop.permute.xlu0 %1942
      %v1944 = vsel %vm414, %v1939, %v1941
      %v1945 = vsel %vm414, %v1941, %v1943
      %v1949 = vadd.f32 %v1913, %v1944
      %v1950 = vadd.f32 %v1914, %v1945
      %v1951 = vadd.f32 %v1915, %v1943
      %1952 = vset.pattern.permute.xlu0 13
      %1953 = vperm.xlu0 %1952, %v1581
      %v1954 = vpop.permute.xlu0 %1953
      %v1956 = vlaneseq
      %v1957 = vshrl.u32 %v1956, 7
      %v1958 = vsub.s32 5, %v1957
      %v1959 = vrot.slane %v1589, %v1958
      %v1960 = vlaneseq
      %v1961 = vshrl.u32 %v1960, 7
      %v1962 = vsub.s32 5, %v1961
      %v1963 = vrot.slane %v1590, %v1962
      %v1964 = vlaneseq
      %v1965 = vshrl.u32 %v1964, 7
      %v1966 = vsub.s32 5, %v1965
      %v1967 = vrot.slane %v1591, %v1966
      %v1968 = vmul.f32 %v1954, %v1959
      %v1969 = vmul.f32 %v1954, %v1963
      %v1970 = vmul.f32 %v1954, %v1967
      %1974 = vrot.lane.b32.xlu0 %v1968, 127
      %v1975 = vpop.permute.xlu0 %1974
      %1976 = vrot.lane.b32.xlu0 %v1969, 127
      %v1977 = vpop.permute.xlu0 %1976
      %1978 = vrot.lane.b32.xlu0 %v1970, 127
      %v1979 = vpop.permute.xlu0 %1978
      %v1980 = vsel %vm414, %v1975, %v1977
      %v1981 = vsel %vm414, %v1977, %v1979
      %v1985 = vadd.f32 %v1949, %v1980
      %v1986 = vadd.f32 %v1950, %v1981
      %v1987 = vadd.f32 %v1951, %v1979
      %1988 = vset.pattern.permute.xlu0 14
      %1989 = vperm.xlu0 %1988, %v1581
      %v1990 = vpop.permute.xlu0 %1989
      %v1992 = vlaneseq
      %v1993 = vshrl.u32 %v1992, 7
      %v1994 = vsub.s32 6, %v1993
      %v1995 = vrot.slane %v1589, %v1994
      %v1996 = vlaneseq
      %v1997 = vshrl.u32 %v1996, 7
      %v1998 = vsub.s32 6, %v1997
      %v1999 = vrot.slane %v1590, %v1998
      %v2000 = vlaneseq
      %v2001 = vshrl.u32 %v2000, 7
      %v2002 = vsub.s32 6, %v2001
      %v2003 = vrot.slane %v1591, %v2002
      %v2004 = vmul.f32 %v1990, %v1995
      %v2005 = vmul.f32 %v1990, %v1999
      %v2006 = vmul.f32 %v1990, %v2003
      %2010 = vrot.lane.b32.xlu0 %v2004, 127
      %v2011 = vpop.permute.xlu0 %2010
      %2012 = vrot.lane.b32.xlu0 %v2005, 127
      %v2013 = vpop.permute.xlu0 %2012
      %2014 = vrot.lane.b32.xlu0 %v2006, 127
      %v2015 = vpop.permute.xlu0 %2014
      %v2016 = vsel %vm414, %v2011, %v2013
      %v2017 = vsel %vm414, %v2013, %v2015
      %v2021 = vadd.f32 %v1985, %v2016
      %v2022 = vadd.f32 %v1986, %v2017
      %v2023 = vadd.f32 %v1987, %v2015
      %2024 = vset.pattern.permute.xlu0 15
      %2025 = vperm.xlu0 %2024, %v1581
      %v2026 = vpop.permute.xlu0 %2025
      %v2028 = vlaneseq
      %v2029 = vshrl.u32 %v2028, 7
      %v2030 = vsub.s32 7, %v2029
      %v2031 = vrot.slane %v1589, %v2030
      %v2032 = vlaneseq
      %v2033 = vshrl.u32 %v2032, 7
      %v2034 = vsub.s32 7, %v2033
      %v2035 = vrot.slane %v1590, %v2034
      %v2036 = vlaneseq
      %v2037 = vshrl.u32 %v2036, 7
      %v2038 = vsub.s32 7, %v2037
      %v2039 = vrot.slane %v1591, %v2038
      %v2040 = vmul.f32 %v2026, %v2031
      %v2041 = vmul.f32 %v2026, %v2035
      %v2042 = vmul.f32 %v2026, %v2039
      %2046 = vrot.lane.b32.xlu0 %v2040, 127
      %v2047 = vpop.permute.xlu0 %2046
      %2048 = vrot.lane.b32.xlu0 %v2041, 127
      %v2049 = vpop.permute.xlu0 %2048
      %2050 = vrot.lane.b32.xlu0 %v2042, 127
      %v2051 = vpop.permute.xlu0 %2050
      %v2052 = vsel %vm414, %v2047, %v2049
      %v2053 = vsel %vm414, %v2049, %v2051
      %v2057 = vadd.f32 %v2021, %v2052
      %v2058 = vadd.f32 %v2022, %v2053
      %v2059 = vadd.f32 %v2023, %v2051
      %v2060 = vmul.f32 %v1589, %v541
      %v2061 = vmul.f32 %v1590, %v545
      %v2062 = vmul.f32 %v1591, %v543
      %2063 = vset.pattern.permute.xlu0 16
      %2064 = vperm.xlu0 %2063, %v1581
      %v2065 = vpop.permute.xlu0 %2064
      %v2067 = vlaneseq
      %v2068 = vshrl.u32 %v2067, 7
      %v2069 = vsub.s32 0, %v2068
      %v2070 = vrot.slane %v2060, %v2069
      %v2071 = vlaneseq
      %v2072 = vshrl.u32 %v2071, 7
      %v2073 = vsub.s32 0, %v2072
      %v2074 = vrot.slane %v2061, %v2073
      %v2075 = vlaneseq
      %v2076 = vshrl.u32 %v2075, 7
      %v2077 = vsub.s32 0, %v2076
      %v2078 = vrot.slane %v2062, %v2077
      %v2079 = vmul.f32 %v2065, %v2070
      %v2080 = vmul.f32 %v2065, %v2074
      %v2081 = vmul.f32 %v2065, %v2078
      %2085 = vrot.lane.b32.xlu0 %v2079, 126
      %v2086 = vpop.permute.xlu0 %2085
      %2087 = vrot.lane.b32.xlu0 %v2080, 126
      %v2088 = vpop.permute.xlu0 %2087
      %2089 = vrot.lane.b32.xlu0 %v2081, 126
      %v2090 = vpop.permute.xlu0 %2089
      %v2091 = vsel %vm580, %v2086, %v2088
      %v2092 = vsel %vm580, %v2088, %v2090
      %v2096 = vadd.f32 %v2057, %v2091
      %v2097 = vadd.f32 %v2058, %v2092
      %v2098 = vadd.f32 %v2059, %v2090
      %2099 = vset.pattern.permute.xlu0 17
      %2100 = vperm.xlu0 %2099, %v1581
      %v2101 = vpop.permute.xlu0 %2100
      %v2103 = vlaneseq
      %v2104 = vshrl.u32 %v2103, 7
      %v2105 = vsub.s32 1, %v2104
      %v2106 = vrot.slane %v2060, %v2105
      %v2107 = vlaneseq
      %v2108 = vshrl.u32 %v2107, 7
      %v2109 = vsub.s32 1, %v2108
      %v2110 = vrot.slane %v2061, %v2109
      %v2111 = vlaneseq
      %v2112 = vshrl.u32 %v2111, 7
      %v2113 = vsub.s32 1, %v2112
      %v2114 = vrot.slane %v2062, %v2113
      %v2115 = vmul.f32 %v2101, %v2106
      %v2116 = vmul.f32 %v2101, %v2110
      %v2117 = vmul.f32 %v2101, %v2114
      %2121 = vrot.lane.b32.xlu0 %v2115, 126
      %v2122 = vpop.permute.xlu0 %2121
      %2123 = vrot.lane.b32.xlu0 %v2116, 126
      %v2124 = vpop.permute.xlu0 %2123
      %2125 = vrot.lane.b32.xlu0 %v2117, 126
      %v2126 = vpop.permute.xlu0 %2125
      %v2127 = vsel %vm580, %v2122, %v2124
      %v2128 = vsel %vm580, %v2124, %v2126
      %v2132 = vadd.f32 %v2096, %v2127
      %v2133 = vadd.f32 %v2097, %v2128
      %v2134 = vadd.f32 %v2098, %v2126
      %2135 = vset.pattern.permute.xlu0 18
      %2136 = vperm.xlu0 %2135, %v1581
      %v2137 = vpop.permute.xlu0 %2136
      %v2139 = vlaneseq
      %v2140 = vshrl.u32 %v2139, 7
      %v2141 = vsub.s32 2, %v2140
      %v2142 = vrot.slane %v2060, %v2141
      %v2143 = vlaneseq
      %v2144 = vshrl.u32 %v2143, 7
      %v2145 = vsub.s32 2, %v2144
      %v2146 = vrot.slane %v2061, %v2145
      %v2147 = vlaneseq
      %v2148 = vshrl.u32 %v2147, 7
      %v2149 = vsub.s32 2, %v2148
      %v2150 = vrot.slane %v2062, %v2149
      %v2151 = vmul.f32 %v2137, %v2142
      %v2152 = vmul.f32 %v2137, %v2146
      %v2153 = vmul.f32 %v2137, %v2150
      %2157 = vrot.lane.b32.xlu0 %v2151, 126
      %v2158 = vpop.permute.xlu0 %2157
      %2159 = vrot.lane.b32.xlu0 %v2152, 126
      %v2160 = vpop.permute.xlu0 %2159
      %2161 = vrot.lane.b32.xlu0 %v2153, 126
      %v2162 = vpop.permute.xlu0 %2161
      %v2163 = vsel %vm580, %v2158, %v2160
      %v2164 = vsel %vm580, %v2160, %v2162
      %v2168 = vadd.f32 %v2132, %v2163
      %v2169 = vadd.f32 %v2133, %v2164
      %v2170 = vadd.f32 %v2134, %v2162
      %2171 = vset.pattern.permute.xlu0 19
      %2172 = vperm.xlu0 %2171, %v1581
      %v2173 = vpop.permute.xlu0 %2172
      %v2175 = vlaneseq
      %v2176 = vshrl.u32 %v2175, 7
      %v2177 = vsub.s32 3, %v2176
      %v2178 = vrot.slane %v2060, %v2177
      %v2179 = vlaneseq
      %v2180 = vshrl.u32 %v2179, 7
      %v2181 = vsub.s32 3, %v2180
      %v2182 = vrot.slane %v2061, %v2181
      %v2183 = vlaneseq
      %v2184 = vshrl.u32 %v2183, 7
      %v2185 = vsub.s32 3, %v2184
      %v2186 = vrot.slane %v2062, %v2185
      %v2187 = vmul.f32 %v2173, %v2178
      %v2188 = vmul.f32 %v2173, %v2182
      %v2189 = vmul.f32 %v2173, %v2186
      %2193 = vrot.lane.b32.xlu0 %v2187, 126
      %v2194 = vpop.permute.xlu0 %2193
      %2195 = vrot.lane.b32.xlu0 %v2188, 126
      %v2196 = vpop.permute.xlu0 %2195
      %2197 = vrot.lane.b32.xlu0 %v2189, 126
      %v2198 = vpop.permute.xlu0 %2197
      %v2199 = vsel %vm580, %v2194, %v2196
      %v2200 = vsel %vm580, %v2196, %v2198
      %v2204 = vadd.f32 %v2168, %v2199
      %v2205 = vadd.f32 %v2169, %v2200
      %v2206 = vadd.f32 %v2170, %v2198
      %2207 = vset.pattern.permute.xlu0 20
      %2208 = vperm.xlu0 %2207, %v1581
      %v2209 = vpop.permute.xlu0 %2208
      %v2211 = vlaneseq
      %v2212 = vshrl.u32 %v2211, 7
      %v2213 = vsub.s32 4, %v2212
      %v2214 = vrot.slane %v2060, %v2213
      %v2215 = vlaneseq
      %v2216 = vshrl.u32 %v2215, 7
      %v2217 = vsub.s32 4, %v2216
      %v2218 = vrot.slane %v2061, %v2217
      %v2219 = vlaneseq
      %v2220 = vshrl.u32 %v2219, 7
      %v2221 = vsub.s32 4, %v2220
      %v2222 = vrot.slane %v2062, %v2221
      %v2223 = vmul.f32 %v2209, %v2214
      %v2224 = vmul.f32 %v2209, %v2218
      %v2225 = vmul.f32 %v2209, %v2222
      %2229 = vrot.lane.b32.xlu0 %v2223, 126
      %v2230 = vpop.permute.xlu0 %2229
      %2231 = vrot.lane.b32.xlu0 %v2224, 126
      %v2232 = vpop.permute.xlu0 %2231
      %2233 = vrot.lane.b32.xlu0 %v2225, 126
      %v2234 = vpop.permute.xlu0 %2233
      %v2235 = vsel %vm580, %v2230, %v2232
      %v2236 = vsel %vm580, %v2232, %v2234
      %v2240 = vadd.f32 %v2204, %v2235
      %v2241 = vadd.f32 %v2205, %v2236
      %v2242 = vadd.f32 %v2206, %v2234
      %2243 = vset.pattern.permute.xlu0 21
      %2244 = vperm.xlu0 %2243, %v1581
      %v2245 = vpop.permute.xlu0 %2244
      %v2247 = vlaneseq
      %v2248 = vshrl.u32 %v2247, 7
      %v2249 = vsub.s32 5, %v2248
      %v2250 = vrot.slane %v2060, %v2249
      %v2251 = vlaneseq
      %v2252 = vshrl.u32 %v2251, 7
      %v2253 = vsub.s32 5, %v2252
      %v2254 = vrot.slane %v2061, %v2253
      %v2255 = vlaneseq
      %v2256 = vshrl.u32 %v2255, 7
      %v2257 = vsub.s32 5, %v2256
      %v2258 = vrot.slane %v2062, %v2257
      %v2259 = vmul.f32 %v2245, %v2250
      %v2260 = vmul.f32 %v2245, %v2254
      %v2261 = vmul.f32 %v2245, %v2258
      %2265 = vrot.lane.b32.xlu0 %v2259, 126
      %v2266 = vpop.permute.xlu0 %2265
      %2267 = vrot.lane.b32.xlu0 %v2260, 126
      %v2268 = vpop.permute.xlu0 %2267
      %2269 = vrot.lane.b32.xlu0 %v2261, 126
      %v2270 = vpop.permute.xlu0 %2269
      %v2271 = vsel %vm580, %v2266, %v2268
      %v2272 = vsel %vm580, %v2268, %v2270
      %v2276 = vadd.f32 %v2240, %v2271
      %v2277 = vadd.f32 %v2241, %v2272
      %v2278 = vadd.f32 %v2242, %v2270
      %2279 = vset.pattern.permute.xlu0 22
      %2280 = vperm.xlu0 %2279, %v1581
      %v2281 = vpop.permute.xlu0 %2280
      %v2283 = vlaneseq
      %v2284 = vshrl.u32 %v2283, 7
      %v2285 = vsub.s32 6, %v2284
      %v2286 = vrot.slane %v2060, %v2285
      %v2287 = vlaneseq
      %v2288 = vshrl.u32 %v2287, 7
      %v2289 = vsub.s32 6, %v2288
      %v2290 = vrot.slane %v2061, %v2289
      %v2291 = vlaneseq
      %v2292 = vshrl.u32 %v2291, 7
      %v2293 = vsub.s32 6, %v2292
      %v2294 = vrot.slane %v2062, %v2293
      %v2295 = vmul.f32 %v2281, %v2286
      %v2296 = vmul.f32 %v2281, %v2290
      %v2297 = vmul.f32 %v2281, %v2294
      %2301 = vrot.lane.b32.xlu0 %v2295, 126
      %v2302 = vpop.permute.xlu0 %2301
      %2303 = vrot.lane.b32.xlu0 %v2296, 126
      %v2304 = vpop.permute.xlu0 %2303
      %2305 = vrot.lane.b32.xlu0 %v2297, 126
      %v2306 = vpop.permute.xlu0 %2305
      %v2307 = vsel %vm580, %v2302, %v2304
      %v2308 = vsel %vm580, %v2304, %v2306
      %v2312 = vadd.f32 %v2276, %v2307
      %v2313 = vadd.f32 %v2277, %v2308
      %v2314 = vadd.f32 %v2278, %v2306
      %2315 = vset.pattern.permute.xlu0 23
      %2316 = vperm.xlu0 %2315, %v1581
      %v2317 = vpop.permute.xlu0 %2316
      %v2319 = vlaneseq
      %v2320 = vshrl.u32 %v2319, 7
      %v2321 = vsub.s32 7, %v2320
      %v2322 = vrot.slane %v2060, %v2321
      %v2323 = vlaneseq
      %v2324 = vshrl.u32 %v2323, 7
      %v2325 = vsub.s32 7, %v2324
      %v2326 = vrot.slane %v2061, %v2325
      %v2327 = vlaneseq
      %v2328 = vshrl.u32 %v2327, 7
      %v2329 = vsub.s32 7, %v2328
      %v2330 = vrot.slane %v2062, %v2329
      %v2331 = vmul.f32 %v2317, %v2322
      %v2332 = vmul.f32 %v2317, %v2326
      %v2333 = vmul.f32 %v2317, %v2330
      %2337 = vrot.lane.b32.xlu0 %v2331, 126
      %v2338 = vpop.permute.xlu0 %2337
      %2339 = vrot.lane.b32.xlu0 %v2332, 126
      %v2340 = vpop.permute.xlu0 %2339
      %2341 = vrot.lane.b32.xlu0 %v2333, 126
      %v2342 = vpop.permute.xlu0 %2341
      %v2343 = vsel %vm580, %v2338, %v2340
      %v2344 = vsel %vm580, %v2340, %v2342
      %v2348 = vadd.f32 %v2312, %v2343
      %v2349 = vadd.f32 %v2313, %v2344
      %v2350 = vadd.f32 %v2314, %v2342
      %v2351 = vmul.f32 %v1589, %v698
      %v2352 = vmul.f32 %v1590, %v701
      %v2353 = vmul.f32 %v1591, %v700
      %2354 = vset.pattern.permute.xlu0 24
      %2355 = vperm.xlu0 %2354, %v1581
      %v2356 = vpop.permute.xlu0 %2355
      %v2358 = vlaneseq
      %v2359 = vshrl.u32 %v2358, 7
      %v2360 = vsub.s32 0, %v2359
      %v2361 = vrot.slane %v2351, %v2360
      %v2362 = vlaneseq
      %v2363 = vshrl.u32 %v2362, 7
      %v2364 = vsub.s32 0, %v2363
      %v2365 = vrot.slane %v2352, %v2364
      %v2366 = vlaneseq
      %v2367 = vshrl.u32 %v2366, 7
      %v2368 = vsub.s32 0, %v2367
      %v2369 = vrot.slane %v2353, %v2368
      %v2370 = vmul.f32 %v2356, %v2361
      %v2371 = vmul.f32 %v2356, %v2365
      %v2372 = vmul.f32 %v2356, %v2369
      %2376 = vrot.lane.b32.xlu0 %v2370, 112
      %v2377 = vpop.permute.xlu0 %2376
      %2378 = vrot.lane.b32.xlu0 %v2371, 112
      %v2379 = vpop.permute.xlu0 %2378
      %2380 = vrot.lane.b32.xlu0 %v2372, 112
      %v2381 = vpop.permute.xlu0 %2380
      %v2382 = vsel %vm736, %v2377, %v2379
      %v2383 = vsel %vm736, %v2379, %v2381
      %v2387 = vadd.f32 %v2348, %v2382
      %v2388 = vadd.f32 %v2349, %v2383
      %v2389 = vadd.f32 %v2350, %v2381
      %2390 = vset.pattern.permute.xlu0 25
      %2391 = vperm.xlu0 %2390, %v1581
      %v2392 = vpop.permute.xlu0 %2391
      %v2394 = vlaneseq
      %v2395 = vshrl.u32 %v2394, 7
      %v2396 = vsub.s32 1, %v2395
      %v2397 = vrot.slane %v2351, %v2396
      %v2398 = vlaneseq
      %v2399 = vshrl.u32 %v2398, 7
      %v2400 = vsub.s32 1, %v2399
      %v2401 = vrot.slane %v2352, %v2400
      %v2402 = vlaneseq
      %v2403 = vshrl.u32 %v2402, 7
      %v2404 = vsub.s32 1, %v2403
      %v2405 = vrot.slane %v2353, %v2404
      %v2406 = vmul.f32 %v2392, %v2397
      %v2407 = vmul.f32 %v2392, %v2401
      %v2408 = vmul.f32 %v2392, %v2405
      %2412 = vrot.lane.b32.xlu0 %v2406, 112
      %v2413 = vpop.permute.xlu0 %2412
      %2414 = vrot.lane.b32.xlu0 %v2407, 112
      %v2415 = vpop.permute.xlu0 %2414
      %2416 = vrot.lane.b32.xlu0 %v2408, 112
      %v2417 = vpop.permute.xlu0 %2416
      %v2418 = vsel %vm736, %v2413, %v2415
      %v2419 = vsel %vm736, %v2415, %v2417
      %v2423 = vadd.f32 %v2387, %v2418
      %v2424 = vadd.f32 %v2388, %v2419
      %v2425 = vadd.f32 %v2389, %v2417
      %2426 = vset.pattern.permute.xlu0 26
      %2427 = vperm.xlu0 %2426, %v1581
      %v2428 = vpop.permute.xlu0 %2427
      %v2430 = vlaneseq
      %v2431 = vshrl.u32 %v2430, 7
      %v2432 = vsub.s32 2, %v2431
      %v2433 = vrot.slane %v2351, %v2432
      %v2434 = vlaneseq
      %v2435 = vshrl.u32 %v2434, 7
      %v2436 = vsub.s32 2, %v2435
      %v2437 = vrot.slane %v2352, %v2436
      %v2438 = vlaneseq
      %v2439 = vshrl.u32 %v2438, 7
      %v2440 = vsub.s32 2, %v2439
      %v2441 = vrot.slane %v2353, %v2440
      %v2442 = vmul.f32 %v2428, %v2433
      %v2443 = vmul.f32 %v2428, %v2437
      %v2444 = vmul.f32 %v2428, %v2441
      %2448 = vrot.lane.b32.xlu0 %v2442, 112
      %v2449 = vpop.permute.xlu0 %2448
      %2450 = vrot.lane.b32.xlu0 %v2443, 112
      %v2451 = vpop.permute.xlu0 %2450
      %2452 = vrot.lane.b32.xlu0 %v2444, 112
      %v2453 = vpop.permute.xlu0 %2452
      %v2454 = vsel %vm736, %v2449, %v2451
      %v2455 = vsel %vm736, %v2451, %v2453
      %v2459 = vadd.f32 %v2423, %v2454
      %v2460 = vadd.f32 %v2424, %v2455
      %v2461 = vadd.f32 %v2425, %v2453
      %2462 = vset.pattern.permute.xlu0 27
      %2463 = vperm.xlu0 %2462, %v1581
      %v2464 = vpop.permute.xlu0 %2463
      %v2466 = vlaneseq
      %v2467 = vshrl.u32 %v2466, 7
      %v2468 = vsub.s32 3, %v2467
      %v2469 = vrot.slane %v2351, %v2468
      %v2470 = vlaneseq
      %v2471 = vshrl.u32 %v2470, 7
      %v2472 = vsub.s32 3, %v2471
      %v2473 = vrot.slane %v2352, %v2472
      %v2474 = vlaneseq
      %v2475 = vshrl.u32 %v2474, 7
      %v2476 = vsub.s32 3, %v2475
      %v2477 = vrot.slane %v2353, %v2476
      %v2478 = vmul.f32 %v2464, %v2469
      %v2479 = vmul.f32 %v2464, %v2473
      %v2480 = vmul.f32 %v2464, %v2477
      %2484 = vrot.lane.b32.xlu0 %v2478, 112
      %v2485 = vpop.permute.xlu0 %2484
      %2486 = vrot.lane.b32.xlu0 %v2479, 112
      %v2487 = vpop.permute.xlu0 %2486
      %2488 = vrot.lane.b32.xlu0 %v2480, 112
      %v2489 = vpop.permute.xlu0 %2488
      %v2490 = vsel %vm736, %v2485, %v2487
      %v2491 = vsel %vm736, %v2487, %v2489
      %v2495 = vadd.f32 %v2459, %v2490
      %v2496 = vadd.f32 %v2460, %v2491
      %v2497 = vadd.f32 %v2461, %v2489
      %2498 = vset.pattern.permute.xlu0 28
      %2499 = vperm.xlu0 %2498, %v1581
      %v2500 = vpop.permute.xlu0 %2499
      %v2502 = vlaneseq
      %v2503 = vshrl.u32 %v2502, 7
      %v2504 = vsub.s32 4, %v2503
      %v2505 = vrot.slane %v2351, %v2504
      %v2506 = vlaneseq
      %v2507 = vshrl.u32 %v2506, 7
      %v2508 = vsub.s32 4, %v2507
      %v2509 = vrot.slane %v2352, %v2508
      %v2510 = vlaneseq
      %v2511 = vshrl.u32 %v2510, 7
      %v2512 = vsub.s32 4, %v2511
      %v2513 = vrot.slane %v2353, %v2512
      %v2514 = vmul.f32 %v2500, %v2505
      %v2515 = vmul.f32 %v2500, %v2509
      %v2516 = vmul.f32 %v2500, %v2513
      %2520 = vrot.lane.b32.xlu0 %v2514, 112
      %v2521 = vpop.permute.xlu0 %2520
      %2522 = vrot.lane.b32.xlu0 %v2515, 112
      %v2523 = vpop.permute.xlu0 %2522
      %2524 = vrot.lane.b32.xlu0 %v2516, 112
      %v2525 = vpop.permute.xlu0 %2524
      %v2526 = vsel %vm736, %v2521, %v2523
      %v2527 = vsel %vm736, %v2523, %v2525
      %v2531 = vadd.f32 %v2495, %v2526
      %v2532 = vadd.f32 %v2496, %v2527
      %v2533 = vadd.f32 %v2497, %v2525
      %2534 = vset.pattern.permute.xlu0 29
      %2535 = vperm.xlu0 %2534, %v1581
      %v2536 = vpop.permute.xlu0 %2535
      %v2538 = vlaneseq
      %v2539 = vshrl.u32 %v2538, 7
      %v2540 = vsub.s32 5, %v2539
      %v2541 = vrot.slane %v2351, %v2540
      %v2542 = vlaneseq
      %v2543 = vshrl.u32 %v2542, 7
      %v2544 = vsub.s32 5, %v2543
      %v2545 = vrot.slane %v2352, %v2544
      %v2546 = vlaneseq
      %v2547 = vshrl.u32 %v2546, 7
      %v2548 = vsub.s32 5, %v2547
      %v2549 = vrot.slane %v2353, %v2548
      %v2550 = vmul.f32 %v2536, %v2541
      %v2551 = vmul.f32 %v2536, %v2545
      %v2552 = vmul.f32 %v2536, %v2549
      %2556 = vrot.lane.b32.xlu0 %v2550, 112
      %v2557 = vpop.permute.xlu0 %2556
      %2558 = vrot.lane.b32.xlu0 %v2551, 112
      %v2559 = vpop.permute.xlu0 %2558
      %2560 = vrot.lane.b32.xlu0 %v2552, 112
      %v2561 = vpop.permute.xlu0 %2560
      %v2562 = vsel %vm736, %v2557, %v2559
      %v2563 = vsel %vm736, %v2559, %v2561
      %v2567 = vadd.f32 %v2531, %v2562
      %v2568 = vadd.f32 %v2532, %v2563
      %v2569 = vadd.f32 %v2533, %v2561
      %2570 = vset.pattern.permute.xlu0 30
      %2571 = vperm.xlu0 %2570, %v1581
      %v2572 = vpop.permute.xlu0 %2571
      %v2574 = vlaneseq
      %v2575 = vshrl.u32 %v2574, 7
      %v2576 = vsub.s32 6, %v2575
      %v2577 = vrot.slane %v2351, %v2576
      %v2578 = vlaneseq
      %v2579 = vshrl.u32 %v2578, 7
      %v2580 = vsub.s32 6, %v2579
      %v2581 = vrot.slane %v2352, %v2580
      %v2582 = vlaneseq
      %v2583 = vshrl.u32 %v2582, 7
      %v2584 = vsub.s32 6, %v2583
      %v2585 = vrot.slane %v2353, %v2584
      %v2586 = vmul.f32 %v2572, %v2577
      %v2587 = vmul.f32 %v2572, %v2581
      %v2588 = vmul.f32 %v2572, %v2585
      %2592 = vrot.lane.b32.xlu0 %v2586, 112
      %v2593 = vpop.permute.xlu0 %2592
      %2594 = vrot.lane.b32.xlu0 %v2587, 112
      %v2595 = vpop.permute.xlu0 %2594
      %2596 = vrot.lane.b32.xlu0 %v2588, 112
      %v2597 = vpop.permute.xlu0 %2596
      %v2598 = vsel %vm736, %v2593, %v2595
      %v2599 = vsel %vm736, %v2595, %v2597
      %v2603 = vadd.f32 %v2567, %v2598
      %v2604 = vadd.f32 %v2568, %v2599
      %v2605 = vadd.f32 %v2569, %v2597
      %2606 = vset.pattern.permute.xlu0 31
      %2607 = vperm.xlu0 %2606, %v1581
      %v2608 = vpop.permute.xlu0 %2607
      %v2610 = vlaneseq
      %v2611 = vshrl.u32 %v2610, 7
      %v2612 = vsub.s32 7, %v2611
      %v2613 = vrot.slane %v2351, %v2612
      %v2614 = vlaneseq
      %v2615 = vshrl.u32 %v2614, 7
      %v2616 = vsub.s32 7, %v2615
      %v2617 = vrot.slane %v2352, %v2616
      %v2618 = vlaneseq
      %v2619 = vshrl.u32 %v2618, 7
      %v2620 = vsub.s32 7, %v2619
      %v2621 = vrot.slane %v2353, %v2620
      %v2622 = vmul.f32 %v2608, %v2613
      %v2623 = vmul.f32 %v2608, %v2617
      %v2624 = vmul.f32 %v2608, %v2621
      %2628 = vrot.lane.b32.xlu0 %v2622, 112
      %v2629 = vpop.permute.xlu0 %2628
      %2630 = vrot.lane.b32.xlu0 %v2623, 112
      %v2631 = vpop.permute.xlu0 %2630
      %2632 = vrot.lane.b32.xlu0 %v2624, 112
      %v2633 = vpop.permute.xlu0 %2632
      %v2634 = vsel %vm736, %v2629, %v2631
      %v2635 = vsel %vm736, %v2631, %v2633
      %v2639 = vadd.f32 %v2603, %v2634
      %v2640 = vadd.f32 %v2604, %v2635
      %v2641 = vadd.f32 %v2605, %v2633
      %2642 = vset.pattern.permute.xlu0 32
      %2643 = vperm.xlu0 %2642, %v1581
      %v2644 = vpop.permute.xlu0 %2643
      %v2646 = vmul.f32 %v2644, %v1783
      %v2647 = vmul.f32 %v2644, %v1787
      %2650 = vrot.lane.b32.xlu0 %v2646, 111
      %v2651 = vpop.permute.xlu0 %2650
      %2652 = vrot.lane.b32.xlu0 %v2647, 111
      %v2653 = vpop.permute.xlu0 %2652
      %v2654 = vsel %vm289, %v2651, %v2653
      %v2658 = vadd.f32 %v2639, %v2651
      %v2659 = vadd.f32 %v2640, %v2654
      %v2660 = vadd.f32 %v2641, %v2653
      %2661 = vset.pattern.permute.xlu0 33
      %2662 = vperm.xlu0 %2661, %v1581
      %v2663 = vpop.permute.xlu0 %2662
      %v2665 = vmul.f32 %v2663, %v1819
      %v2666 = vmul.f32 %v2663, %v1823
      %2669 = vrot.lane.b32.xlu0 %v2665, 111
      %v2670 = vpop.permute.xlu0 %2669
      %2671 = vrot.lane.b32.xlu0 %v2666, 111
      %v2672 = vpop.permute.xlu0 %2671
      %v2673 = vsel %vm289, %v2670, %v2672
      %v2677 = vadd.f32 %v2658, %v2670
      %v2678 = vadd.f32 %v2659, %v2673
      %v2679 = vadd.f32 %v2660, %v2672
      %2680 = vset.pattern.permute.xlu0 34
      %2681 = vperm.xlu0 %2680, %v1581
      %v2682 = vpop.permute.xlu0 %2681
      %v2684 = vmul.f32 %v2682, %v1855
      %v2685 = vmul.f32 %v2682, %v1859
      %2688 = vrot.lane.b32.xlu0 %v2684, 111
      %v2689 = vpop.permute.xlu0 %2688
      %2690 = vrot.lane.b32.xlu0 %v2685, 111
      %v2691 = vpop.permute.xlu0 %2690
      %v2692 = vsel %vm289, %v2689, %v2691
      %v2696 = vadd.f32 %v2677, %v2689
      %v2697 = vadd.f32 %v2678, %v2692
      %v2698 = vadd.f32 %v2679, %v2691
      %2699 = vset.pattern.permute.xlu0 35
      %2700 = vperm.xlu0 %2699, %v1581
      %v2701 = vpop.permute.xlu0 %2700
      %v2703 = vmul.f32 %v2701, %v1891
      %v2704 = vmul.f32 %v2701, %v1895
      %2707 = vrot.lane.b32.xlu0 %v2703, 111
      %v2708 = vpop.permute.xlu0 %2707
      %2709 = vrot.lane.b32.xlu0 %v2704, 111
      %v2710 = vpop.permute.xlu0 %2709
      %v2711 = vsel %vm289, %v2708, %v2710
      %v2715 = vadd.f32 %v2696, %v2708
      %v2716 = vadd.f32 %v2697, %v2711
      %v2717 = vadd.f32 %v2698, %v2710
      %2718 = vset.pattern.permute.xlu0 36
      %2719 = vperm.xlu0 %2718, %v1581
      %v2720 = vpop.permute.xlu0 %2719
      %v2722 = vmul.f32 %v2720, %v1927
      %v2723 = vmul.f32 %v2720, %v1931
      %2726 = vrot.lane.b32.xlu0 %v2722, 111
      %v2727 = vpop.permute.xlu0 %2726
      %2728 = vrot.lane.b32.xlu0 %v2723, 111
      %v2729 = vpop.permute.xlu0 %2728
      %v2730 = vsel %vm289, %v2727, %v2729
      %v2734 = vadd.f32 %v2715, %v2727
      %v2735 = vadd.f32 %v2716, %v2730
      %v2736 = vadd.f32 %v2717, %v2729
      %2737 = vset.pattern.permute.xlu0 37
      %2738 = vperm.xlu0 %2737, %v1581
      %v2739 = vpop.permute.xlu0 %2738
      %v2741 = vmul.f32 %v2739, %v1963
      %v2742 = vmul.f32 %v2739, %v1967
      %2745 = vrot.lane.b32.xlu0 %v2741, 111
      %v2746 = vpop.permute.xlu0 %2745
      %2747 = vrot.lane.b32.xlu0 %v2742, 111
      %v2748 = vpop.permute.xlu0 %2747
      %v2749 = vsel %vm289, %v2746, %v2748
      %v2753 = vadd.f32 %v2734, %v2746
      %v2754 = vadd.f32 %v2735, %v2749
      %v2755 = vadd.f32 %v2736, %v2748
      %2756 = vset.pattern.permute.xlu0 38
      %2757 = vperm.xlu0 %2756, %v1581
      %v2758 = vpop.permute.xlu0 %2757
      %v2760 = vmul.f32 %v2758, %v1999
      %v2761 = vmul.f32 %v2758, %v2003
      %2764 = vrot.lane.b32.xlu0 %v2760, 111
      %v2765 = vpop.permute.xlu0 %2764
      %2766 = vrot.lane.b32.xlu0 %v2761, 111
      %v2767 = vpop.permute.xlu0 %2766
      %v2768 = vsel %vm289, %v2765, %v2767
      %v2772 = vadd.f32 %v2753, %v2765
      %v2773 = vadd.f32 %v2754, %v2768
      %v2774 = vadd.f32 %v2755, %v2767
      %2775 = vset.pattern.permute.xlu0 39
      %2776 = vperm.xlu0 %2775, %v1581
      %v2777 = vpop.permute.xlu0 %2776
      %v2779 = vmul.f32 %v2777, %v2035
      %v2780 = vmul.f32 %v2777, %v2039
      %2783 = vrot.lane.b32.xlu0 %v2779, 111
      %v2784 = vpop.permute.xlu0 %2783
      %2785 = vrot.lane.b32.xlu0 %v2780, 111
      %v2786 = vpop.permute.xlu0 %2785
      %v2787 = vsel %vm289, %v2784, %v2786
      %v2791 = vadd.f32 %v2772, %v2784
      %v2792 = vadd.f32 %v2773, %v2787
      %v2793 = vadd.f32 %v2774, %v2786
      %v2794 = vld [vmem:[#allocation2 + $0x8] sm:$0xff]
      %v2795 = vld [vmem:[#allocation2 + $0x10] sm:$0xff]
      %v2796 = vld [vmem:[#allocation2 + $0x18] sm:$0xff]
      %v2797 = vmul.f32 %v2794, %v933
      %v2798 = vmul.f32 %v2795, %v937
      %v2799 = vmul.f32 %v2796, %v935
      %2800 = vset.pattern.permute.xlu0 40
      %2801 = vperm.xlu0 %2800, %v1581
      %v2802 = vpop.permute.xlu0 %2801
      %v2804 = vlaneseq
      %v2805 = vshrl.u32 %v2804, 7
      %v2806 = vsub.s32 0, %v2805
      %v2807 = vrot.slane %v2797, %v2806
      %v2808 = vlaneseq
      %v2809 = vshrl.u32 %v2808, 7
      %v2810 = vsub.s32 0, %v2809
      %v2811 = vrot.slane %v2798, %v2810
      %v2812 = vlaneseq
      %v2813 = vshrl.u32 %v2812, 7
      %v2814 = vsub.s32 0, %v2813
      %v2815 = vrot.slane %v2799, %v2814
      %v2816 = vmul.f32 %v2802, %v2807
      %v2817 = vmul.f32 %v2802, %v2811
      %v2818 = vmul.f32 %v2802, %v2815
      %2822 = vrot.lane.b32.xlu0 %v2816, 110
      %v2823 = vpop.permute.xlu0 %2822
      %2824 = vrot.lane.b32.xlu0 %v2817, 110
      %v2825 = vpop.permute.xlu0 %2824
      %2826 = vrot.lane.b32.xlu0 %v2818, 110
      %v2827 = vpop.permute.xlu0 %2826
      %v2828 = vsel %vm972, %v2823, %v2825
      %v2829 = vsel %vm972, %v2825, %v2827
      %v2833 = vadd.f32 %v2791, %v2823
      %v2834 = vadd.f32 %v2792, %v2828
      %v2835 = vadd.f32 %v2793, %v2829
      %2836 = vset.pattern.permute.xlu0 41
      %2837 = vperm.xlu0 %2836, %v1581
      %v2838 = vpop.permute.xlu0 %2837
      %v2840 = vlaneseq
      %v2841 = vshrl.u32 %v2840, 7
      %v2842 = vsub.s32 1, %v2841
      %v2843 = vrot.slane %v2797, %v2842
      %v2844 = vlaneseq
      %v2845 = vshrl.u32 %v2844, 7
      %v2846 = vsub.s32 1, %v2845
      %v2847 = vrot.slane %v2798, %v2846
      %v2848 = vlaneseq
      %v2849 = vshrl.u32 %v2848, 7
      %v2850 = vsub.s32 1, %v2849
      %v2851 = vrot.slane %v2799, %v2850
      %v2852 = vmul.f32 %v2838, %v2843
      %v2853 = vmul.f32 %v2838, %v2847
      %v2854 = vmul.f32 %v2838, %v2851
      %2858 = vrot.lane.b32.xlu0 %v2852, 110
      %v2859 = vpop.permute.xlu0 %2858
      %2860 = vrot.lane.b32.xlu0 %v2853, 110
      %v2861 = vpop.permute.xlu0 %2860
      %2862 = vrot.lane.b32.xlu0 %v2854, 110
      %v2863 = vpop.permute.xlu0 %2862
      %v2864 = vsel %vm972, %v2859, %v2861
      %v2865 = vsel %vm972, %v2861, %v2863
      %v2869 = vadd.f32 %v2833, %v2859
      %v2870 = vadd.f32 %v2834, %v2864
      %v2871 = vadd.f32 %v2835, %v2865
      %2872 = vset.pattern.permute.xlu0 42
      %2873 = vperm.xlu0 %2872, %v1581
      %v2874 = vpop.permute.xlu0 %2873
      %v2876 = vlaneseq
      %v2877 = vshrl.u32 %v2876, 7
      %v2878 = vsub.s32 2, %v2877
      %v2879 = vrot.slane %v2797, %v2878
      %v2880 = vlaneseq
      %v2881 = vshrl.u32 %v2880, 7
      %v2882 = vsub.s32 2, %v2881
      %v2883 = vrot.slane %v2798, %v2882
      %v2884 = vlaneseq
      %v2885 = vshrl.u32 %v2884, 7
      %v2886 = vsub.s32 2, %v2885
      %v2887 = vrot.slane %v2799, %v2886
      %v2888 = vmul.f32 %v2874, %v2879
      %v2889 = vmul.f32 %v2874, %v2883
      %v2890 = vmul.f32 %v2874, %v2887
      %2894 = vrot.lane.b32.xlu0 %v2888, 110
      %v2895 = vpop.permute.xlu0 %2894
      %2896 = vrot.lane.b32.xlu0 %v2889, 110
      %v2897 = vpop.permute.xlu0 %2896
      %2898 = vrot.lane.b32.xlu0 %v2890, 110
      %v2899 = vpop.permute.xlu0 %2898
      %v2900 = vsel %vm972, %v2895, %v2897
      %v2901 = vsel %vm972, %v2897, %v2899
      %v2905 = vadd.f32 %v2869, %v2895
      %v2906 = vadd.f32 %v2870, %v2900
      %v2907 = vadd.f32 %v2871, %v2901
      %2908 = vset.pattern.permute.xlu0 43
      %2909 = vperm.xlu0 %2908, %v1581
      %v2910 = vpop.permute.xlu0 %2909
      %v2912 = vlaneseq
      %v2913 = vshrl.u32 %v2912, 7
      %v2914 = vsub.s32 3, %v2913
      %v2915 = vrot.slane %v2797, %v2914
      %v2916 = vlaneseq
      %v2917 = vshrl.u32 %v2916, 7
      %v2918 = vsub.s32 3, %v2917
      %v2919 = vrot.slane %v2798, %v2918
      %v2920 = vlaneseq
      %v2921 = vshrl.u32 %v2920, 7
      %v2922 = vsub.s32 3, %v2921
      %v2923 = vrot.slane %v2799, %v2922
      %v2924 = vmul.f32 %v2910, %v2915
      %v2925 = vmul.f32 %v2910, %v2919
      %v2926 = vmul.f32 %v2910, %v2923
      %2930 = vrot.lane.b32.xlu0 %v2924, 110
      %v2931 = vpop.permute.xlu0 %2930
      %2932 = vrot.lane.b32.xlu0 %v2925, 110
      %v2933 = vpop.permute.xlu0 %2932
      %2934 = vrot.lane.b32.xlu0 %v2926, 110
      %v2935 = vpop.permute.xlu0 %2934
      %v2936 = vsel %vm972, %v2931, %v2933
      %v2937 = vsel %vm972, %v2933, %v2935
      %v2941 = vadd.f32 %v2905, %v2931
      %v2942 = vadd.f32 %v2906, %v2936
      %v2943 = vadd.f32 %v2907, %v2937
      %2944 = vset.pattern.permute.xlu0 44
      %2945 = vperm.xlu0 %2944, %v1581
      %v2946 = vpop.permute.xlu0 %2945
      %v2948 = vlaneseq
      %v2949 = vshrl.u32 %v2948, 7
      %v2950 = vsub.s32 4, %v2949
      %v2951 = vrot.slane %v2797, %v2950
      %v2952 = vlaneseq
      %v2953 = vshrl.u32 %v2952, 7
      %v2954 = vsub.s32 4, %v2953
      %v2955 = vrot.slane %v2798, %v2954
      %v2956 = vlaneseq
      %v2957 = vshrl.u32 %v2956, 7
      %v2958 = vsub.s32 4, %v2957
      %v2959 = vrot.slane %v2799, %v2958
      %v2960 = vmul.f32 %v2946, %v2951
      %v2961 = vmul.f32 %v2946, %v2955
      %v2962 = vmul.f32 %v2946, %v2959
      %2966 = vrot.lane.b32.xlu0 %v2960, 110
      %v2967 = vpop.permute.xlu0 %2966
      %2968 = vrot.lane.b32.xlu0 %v2961, 110
      %v2969 = vpop.permute.xlu0 %2968
      %2970 = vrot.lane.b32.xlu0 %v2962, 110
      %v2971 = vpop.permute.xlu0 %2970
      %v2972 = vsel %vm972, %v2967, %v2969
      %v2973 = vsel %vm972, %v2969, %v2971
      %v2977 = vadd.f32 %v2941, %v2967
      %v2978 = vadd.f32 %v2942, %v2972
      %v2979 = vadd.f32 %v2943, %v2973
      %2980 = vset.pattern.permute.xlu0 45
      %2981 = vperm.xlu0 %2980, %v1581
      %v2982 = vpop.permute.xlu0 %2981
      %v2984 = vlaneseq
      %v2985 = vshrl.u32 %v2984, 7
      %v2986 = vsub.s32 5, %v2985
      %v2987 = vrot.slane %v2797, %v2986
      %v2988 = vlaneseq
      %v2989 = vshrl.u32 %v2988, 7
      %v2990 = vsub.s32 5, %v2989
      %v2991 = vrot.slane %v2798, %v2990
      %v2992 = vlaneseq
      %v2993 = vshrl.u32 %v2992, 7
      %v2994 = vsub.s32 5, %v2993
      %v2995 = vrot.slane %v2799, %v2994
      %v2996 = vmul.f32 %v2982, %v2987
      %v2997 = vmul.f32 %v2982, %v2991
      %v2998 = vmul.f32 %v2982, %v2995
      %3002 = vrot.lane.b32.xlu0 %v2996, 110
      %v3003 = vpop.permute.xlu0 %3002
      %3004 = vrot.lane.b32.xlu0 %v2997, 110
      %v3005 = vpop.permute.xlu0 %3004
      %3006 = vrot.lane.b32.xlu0 %v2998, 110
      %v3007 = vpop.permute.xlu0 %3006
      %v3008 = vsel %vm972, %v3003, %v3005
      %v3009 = vsel %vm972, %v3005, %v3007
      %v3013 = vadd.f32 %v2977, %v3003
      %v3014 = vadd.f32 %v2978, %v3008
      %v3015 = vadd.f32 %v2979, %v3009
      %3016 = vset.pattern.permute.xlu0 46
      %3017 = vperm.xlu0 %3016, %v1581
      %v3018 = vpop.permute.xlu0 %3017
      %v3020 = vlaneseq
      %v3021 = vshrl.u32 %v3020, 7
      %v3022 = vsub.s32 6, %v3021
      %v3023 = vrot.slane %v2797, %v3022
      %v3024 = vlaneseq
      %v3025 = vshrl.u32 %v3024, 7
      %v3026 = vsub.s32 6, %v3025
      %v3027 = vrot.slane %v2798, %v3026
      %v3028 = vlaneseq
      %v3029 = vshrl.u32 %v3028, 7
      %v3030 = vsub.s32 6, %v3029
      %v3031 = vrot.slane %v2799, %v3030
      %v3032 = vmul.f32 %v3018, %v3023
      %v3033 = vmul.f32 %v3018, %v3027
      %v3034 = vmul.f32 %v3018, %v3031
      %3038 = vrot.lane.b32.xlu0 %v3032, 110
      %v3039 = vpop.permute.xlu0 %3038
      %3040 = vrot.lane.b32.xlu0 %v3033, 110
      %v3041 = vpop.permute.xlu0 %3040
      %3042 = vrot.lane.b32.xlu0 %v3034, 110
      %v3043 = vpop.permute.xlu0 %3042
      %v3044 = vsel %vm972, %v3039, %v3041
      %v3045 = vsel %vm972, %v3041, %v3043
      %v3049 = vadd.f32 %v3013, %v3039
      %v3050 = vadd.f32 %v3014, %v3044
      %v3051 = vadd.f32 %v3015, %v3045
      %3052 = vset.pattern.permute.xlu0 47
      %3053 = vperm.xlu0 %3052, %v1581
      %v3054 = vpop.permute.xlu0 %3053
      %v3056 = vlaneseq
      %v3057 = vshrl.u32 %v3056, 7
      %v3058 = vsub.s32 7, %v3057
      %v3059 = vrot.slane %v2797, %v3058
      %v3060 = vlaneseq
      %v3061 = vshrl.u32 %v3060, 7
      %v3062 = vsub.s32 7, %v3061
      %v3063 = vrot.slane %v2798, %v3062
      %v3064 = vlaneseq
      %v3065 = vshrl.u32 %v3064, 7
      %v3066 = vsub.s32 7, %v3065
      %v3067 = vrot.slane %v2799, %v3066
      %v3068 = vmul.f32 %v3054, %v3059
      %v3069 = vmul.f32 %v3054, %v3063
      %v3070 = vmul.f32 %v3054, %v3067
      %3074 = vrot.lane.b32.xlu0 %v3068, 110
      %v3075 = vpop.permute.xlu0 %3074
      %3076 = vrot.lane.b32.xlu0 %v3069, 110
      %v3077 = vpop.permute.xlu0 %3076
      %3078 = vrot.lane.b32.xlu0 %v3070, 110
      %v3079 = vpop.permute.xlu0 %3078
      %v3080 = vsel %vm972, %v3075, %v3077
      %v3081 = vsel %vm972, %v3077, %v3079
      %v3085 = vadd.f32 %v3049, %v3075
      %v3086 = vadd.f32 %v3050, %v3080
      %v3087 = vadd.f32 %v3051, %v3081
      %v3088 = vmul.f32 %v2794, %v1090
      %v3089 = vmul.f32 %v2795, %v1094
      %v3090 = vmul.f32 %v2796, %v1092
      %3091 = vset.pattern.permute.xlu0 48
      %3092 = vperm.xlu0 %3091, %v1581
      %v3093 = vpop.permute.xlu0 %3092
      %v3095 = vlaneseq
      %v3096 = vshrl.u32 %v3095, 7
      %v3097 = vsub.s32 0, %v3096
      %v3098 = vrot.slane %v3088, %v3097
      %v3099 = vlaneseq
      %v3100 = vshrl.u32 %v3099, 7
      %v3101 = vsub.s32 0, %v3100
      %v3102 = vrot.slane %v3089, %v3101
      %v3103 = vlaneseq
      %v3104 = vshrl.u32 %v3103, 7
      %v3105 = vsub.s32 0, %v3104
      %v3106 = vrot.slane %v3090, %v3105
      %v3107 = vmul.f32 %v3093, %v3098
      %v3108 = vmul.f32 %v3093, %v3102
      %v3109 = vmul.f32 %v3093, %v3106
      %3113 = vrot.lane.b32.xlu0 %v3107, 96
      %v3114 = vpop.permute.xlu0 %3113
      %3115 = vrot.lane.b32.xlu0 %v3108, 96
      %v3116 = vpop.permute.xlu0 %3115
      %3117 = vrot.lane.b32.xlu0 %v3109, 96
      %v3118 = vpop.permute.xlu0 %3117
      %v3119 = vsel %vm1129, %v3114, %v3116
      %v3120 = vsel %vm1129, %v3116, %v3118
      %v3124 = vadd.f32 %v3085, %v3114
      %v3125 = vadd.f32 %v3086, %v3119
      %v3126 = vadd.f32 %v3087, %v3120
      %3127 = vset.pattern.permute.xlu0 49
      %3128 = vperm.xlu0 %3127, %v1581
      %v3129 = vpop.permute.xlu0 %3128
      %v3131 = vlaneseq
      %v3132 = vshrl.u32 %v3131, 7
      %v3133 = vsub.s32 1, %v3132
      %v3134 = vrot.slane %v3088, %v3133
      %v3135 = vlaneseq
      %v3136 = vshrl.u32 %v3135, 7
      %v3137 = vsub.s32 1, %v3136
      %v3138 = vrot.slane %v3089, %v3137
      %v3139 = vlaneseq
      %v3140 = vshrl.u32 %v3139, 7
      %v3141 = vsub.s32 1, %v3140
      %v3142 = vrot.slane %v3090, %v3141
      %v3143 = vmul.f32 %v3129, %v3134
      %v3144 = vmul.f32 %v3129, %v3138
      %v3145 = vmul.f32 %v3129, %v3142
      %3149 = vrot.lane.b32.xlu0 %v3143, 96
      %v3150 = vpop.permute.xlu0 %3149
      %3151 = vrot.lane.b32.xlu0 %v3144, 96
      %v3152 = vpop.permute.xlu0 %3151
      %3153 = vrot.lane.b32.xlu0 %v3145, 96
      %v3154 = vpop.permute.xlu0 %3153
      %v3155 = vsel %vm1129, %v3150, %v3152
      %v3156 = vsel %vm1129, %v3152, %v3154
      %v3160 = vadd.f32 %v3124, %v3150
      %v3161 = vadd.f32 %v3125, %v3155
      %v3162 = vadd.f32 %v3126, %v3156
      %3163 = vset.pattern.permute.xlu0 50
      %3164 = vperm.xlu0 %3163, %v1581
      %v3165 = vpop.permute.xlu0 %3164
      %v3167 = vlaneseq
      %v3168 = vshrl.u32 %v3167, 7
      %v3169 = vsub.s32 2, %v3168
      %v3170 = vrot.slane %v3088, %v3169
      %v3171 = vlaneseq
      %v3172 = vshrl.u32 %v3171, 7
      %v3173 = vsub.s32 2, %v3172
      %v3174 = vrot.slane %v3089, %v3173
      %v3175 = vlaneseq
      %v3176 = vshrl.u32 %v3175, 7
      %v3177 = vsub.s32 2, %v3176
      %v3178 = vrot.slane %v3090, %v3177
      %v3179 = vmul.f32 %v3165, %v3170
      %v3180 = vmul.f32 %v3165, %v3174
      %v3181 = vmul.f32 %v3165, %v3178
      %3185 = vrot.lane.b32.xlu0 %v3179, 96
      %v3186 = vpop.permute.xlu0 %3185
      %3187 = vrot.lane.b32.xlu0 %v3180, 96
      %v3188 = vpop.permute.xlu0 %3187
      %3189 = vrot.lane.b32.xlu0 %v3181, 96
      %v3190 = vpop.permute.xlu0 %3189
      %v3191 = vsel %vm1129, %v3186, %v3188
      %v3192 = vsel %vm1129, %v3188, %v3190
      %v3196 = vadd.f32 %v3160, %v3186
      %v3197 = vadd.f32 %v3161, %v3191
      %v3198 = vadd.f32 %v3162, %v3192
      %3199 = vset.pattern.permute.xlu0 51
      %3200 = vperm.xlu0 %3199, %v1581
      %v3201 = vpop.permute.xlu0 %3200
      %v3203 = vlaneseq
      %v3204 = vshrl.u32 %v3203, 7
      %v3205 = vsub.s32 3, %v3204
      %v3206 = vrot.slane %v3088, %v3205
      %v3207 = vlaneseq
      %v3208 = vshrl.u32 %v3207, 7
      %v3209 = vsub.s32 3, %v3208
      %v3210 = vrot.slane %v3089, %v3209
      %v3211 = vlaneseq
      %v3212 = vshrl.u32 %v3211, 7
      %v3213 = vsub.s32 3, %v3212
      %v3214 = vrot.slane %v3090, %v3213
      %v3215 = vmul.f32 %v3201, %v3206
      %v3216 = vmul.f32 %v3201, %v3210
      %v3217 = vmul.f32 %v3201, %v3214
      %3221 = vrot.lane.b32.xlu0 %v3215, 96
      %v3222 = vpop.permute.xlu0 %3221
      %3223 = vrot.lane.b32.xlu0 %v3216, 96
      %v3224 = vpop.permute.xlu0 %3223
      %3225 = vrot.lane.b32.xlu0 %v3217, 96
      %v3226 = vpop.permute.xlu0 %3225
      %v3227 = vsel %vm1129, %v3222, %v3224
      %v3228 = vsel %vm1129, %v3224, %v3226
      %v3232 = vadd.f32 %v3196, %v3222
      %v3233 = vadd.f32 %v3197, %v3227
      %v3234 = vadd.f32 %v3198, %v3228
      %3235 = vset.pattern.permute.xlu0 52
      %3236 = vperm.xlu0 %3235, %v1581
      %v3237 = vpop.permute.xlu0 %3236
      %v3239 = vlaneseq
      %v3240 = vshrl.u32 %v3239, 7
      %v3241 = vsub.s32 4, %v3240
      %v3242 = vrot.slane %v3088, %v3241
      %v3243 = vlaneseq
      %v3244 = vshrl.u32 %v3243, 7
      %v3245 = vsub.s32 4, %v3244
      %v3246 = vrot.slane %v3089, %v3245
      %v3247 = vlaneseq
      %v3248 = vshrl.u32 %v3247, 7
      %v3249 = vsub.s32 4, %v3248
      %v3250 = vrot.slane %v3090, %v3249
      %v3251 = vmul.f32 %v3237, %v3242
      %v3252 = vmul.f32 %v3237, %v3246
      %v3253 = vmul.f32 %v3237, %v3250
      %3257 = vrot.lane.b32.xlu0 %v3251, 96
      %v3258 = vpop.permute.xlu0 %3257
      %3259 = vrot.lane.b32.xlu0 %v3252, 96
      %v3260 = vpop.permute.xlu0 %3259
      %3261 = vrot.lane.b32.xlu0 %v3253, 96
      %v3262 = vpop.permute.xlu0 %3261
      %v3263 = vsel %vm1129, %v3258, %v3260
      %v3264 = vsel %vm1129, %v3260, %v3262
      %v3268 = vadd.f32 %v3232, %v3258
      %v3269 = vadd.f32 %v3233, %v3263
      %v3270 = vadd.f32 %v3234, %v3264
      %3271 = vset.pattern.permute.xlu0 53
      %3272 = vperm.xlu0 %3271, %v1581
      %v3273 = vpop.permute.xlu0 %3272
      %v3275 = vlaneseq
      %v3276 = vshrl.u32 %v3275, 7
      %v3277 = vsub.s32 5, %v3276
      %v3278 = vrot.slane %v3088, %v3277
      %v3279 = vlaneseq
      %v3280 = vshrl.u32 %v3279, 7
      %v3281 = vsub.s32 5, %v3280
      %v3282 = vrot.slane %v3089, %v3281
      %v3283 = vlaneseq
      %v3284 = vshrl.u32 %v3283, 7
      %v3285 = vsub.s32 5, %v3284
      %v3286 = vrot.slane %v3090, %v3285
      %v3287 = vmul.f32 %v3273, %v3278
      %v3288 = vmul.f32 %v3273, %v3282
      %v3289 = vmul.f32 %v3273, %v3286
      %3293 = vrot.lane.b32.xlu0 %v3287, 96
      %v3294 = vpop.permute.xlu0 %3293
      %3295 = vrot.lane.b32.xlu0 %v3288, 96
      %v3296 = vpop.permute.xlu0 %3295
      %3297 = vrot.lane.b32.xlu0 %v3289, 96
      %v3298 = vpop.permute.xlu0 %3297
      %v3299 = vsel %vm1129, %v3294, %v3296
      %v3300 = vsel %vm1129, %v3296, %v3298
      %v3304 = vadd.f32 %v3268, %v3294
      %v3305 = vadd.f32 %v3269, %v3299
      %v3306 = vadd.f32 %v3270, %v3300
      %3307 = vset.pattern.permute.xlu0 54
      %3308 = vperm.xlu0 %3307, %v1581
      %v3309 = vpop.permute.xlu0 %3308
      %v3311 = vlaneseq
      %v3312 = vshrl.u32 %v3311, 7
      %v3313 = vsub.s32 6, %v3312
      %v3314 = vrot.slane %v3088, %v3313
      %v3315 = vlaneseq
      %v3316 = vshrl.u32 %v3315, 7
      %v3317 = vsub.s32 6, %v3316
      %v3318 = vrot.slane %v3089, %v3317
      %v3319 = vlaneseq
      %v3320 = vshrl.u32 %v3319, 7
      %v3321 = vsub.s32 6, %v3320
      %v3322 = vrot.slane %v3090, %v3321
      %v3323 = vmul.f32 %v3309, %v3314
      %v3324 = vmul.f32 %v3309, %v3318
      %v3325 = vmul.f32 %v3309, %v3322
      %3329 = vrot.lane.b32.xlu0 %v3323, 96
      %v3330 = vpop.permute.xlu0 %3329
      %3331 = vrot.lane.b32.xlu0 %v3324, 96
      %v3332 = vpop.permute.xlu0 %3331
      %3333 = vrot.lane.b32.xlu0 %v3325, 96
      %v3334 = vpop.permute.xlu0 %3333
      %v3335 = vsel %vm1129, %v3330, %v3332
      %v3336 = vsel %vm1129, %v3332, %v3334
      %v3340 = vadd.f32 %v3304, %v3330
      %v3341 = vadd.f32 %v3305, %v3335
      %v3342 = vadd.f32 %v3306, %v3336
      %3343 = vset.pattern.permute.xlu0 55
      %3344 = vperm.xlu0 %3343, %v1581
      %v3345 = vpop.permute.xlu0 %3344
      %v3347 = vlaneseq
      %v3348 = vshrl.u32 %v3347, 7
      %v3349 = vsub.s32 7, %v3348
      %v3350 = vrot.slane %v3088, %v3349
      %v3351 = vlaneseq
      %v3352 = vshrl.u32 %v3351, 7
      %v3353 = vsub.s32 7, %v3352
      %v3354 = vrot.slane %v3089, %v3353
      %v3355 = vlaneseq
      %v3356 = vshrl.u32 %v3355, 7
      %v3357 = vsub.s32 7, %v3356
      %v3358 = vrot.slane %v3090, %v3357
      %v3359 = vmul.f32 %v3345, %v3350
      %v3360 = vmul.f32 %v3345, %v3354
      %v3361 = vmul.f32 %v3345, %v3358
      %3365 = vrot.lane.b32.xlu0 %v3359, 96
      %v3366 = vpop.permute.xlu0 %3365
      %3367 = vrot.lane.b32.xlu0 %v3360, 96
      %v3368 = vpop.permute.xlu0 %3367
      %3369 = vrot.lane.b32.xlu0 %v3361, 96
      %v3370 = vpop.permute.xlu0 %3369
      %v3371 = vsel %vm1129, %v3366, %v3368
      %v3372 = vsel %vm1129, %v3368, %v3370
      %v3376 = vadd.f32 %v3340, %v3366
      %v3377 = vadd.f32 %v3341, %v3371
      %v3378 = vadd.f32 %v3342, %v3372
      %3379 = vset.pattern.permute.xlu0 56
      %3380 = vperm.xlu0 %3379, %v1581
      %v3381 = vpop.permute.xlu0 %3380
      %v3383 = vlaneseq
      %v3384 = vshrl.u32 %v3383, 7
      %v3385 = vsub.s32 0, %v3384
      %v3386 = vrot.slane %v2794, %v3385
      %v3387 = vlaneseq
      %v3388 = vshrl.u32 %v3387, 7
      %v3389 = vsub.s32 0, %v3388
      %v3390 = vrot.slane %v2795, %v3389
      %v3391 = vlaneseq
      %v3392 = vshrl.u32 %v3391, 7
      %v3393 = vsub.s32 0, %v3392
      %v3394 = vrot.slane %v2796, %v3393
      %v3395 = vmul.f32 %v3381, %v3386
      %v3396 = vmul.f32 %v3381, %v3390
      %v3397 = vmul.f32 %v3381, %v3394
      %3401 = vrot.lane.b32.xlu0 %v3395, 95
      %v3402 = vpop.permute.xlu0 %3401
      %3403 = vrot.lane.b32.xlu0 %v3396, 95
      %v3404 = vpop.permute.xlu0 %3403
      %3405 = vrot.lane.b32.xlu0 %v3397, 95
      %v3406 = vpop.permute.xlu0 %3405
      %v3407 = vsel %vm1274, %v3402, %v3404
      %v3408 = vsel %vm1274, %v3404, %v3406
      %v3412 = vadd.f32 %v3376, %v3402
      %v3413 = vadd.f32 %v3377, %v3407
      %v3414 = vadd.f32 %v3378, %v3408
      %3415 = vset.pattern.permute.xlu0 57
      %3416 = vperm.xlu0 %3415, %v1581
      %v3417 = vpop.permute.xlu0 %3416
      %v3419 = vlaneseq
      %v3420 = vshrl.u32 %v3419, 7
      %v3421 = vsub.s32 1, %v3420
      %v3422 = vrot.slane %v2794, %v3421
      %v3423 = vlaneseq
      %v3424 = vshrl.u32 %v3423, 7
      %v3425 = vsub.s32 1, %v3424
      %v3426 = vrot.slane %v2795, %v3425
      %v3427 = vlaneseq
      %v3428 = vshrl.u32 %v3427, 7
      %v3429 = vsub.s32 1, %v3428
      %v3430 = vrot.slane %v2796, %v3429
      %v3431 = vmul.f32 %v3417, %v3422
      %v3432 = vmul.f32 %v3417, %v3426
      %v3433 = vmul.f32 %v3417, %v3430
      %3437 = vrot.lane.b32.xlu0 %v3431, 95
      %v3438 = vpop.permute.xlu0 %3437
      %3439 = vrot.lane.b32.xlu0 %v3432, 95
      %v3440 = vpop.permute.xlu0 %3439
      %3441 = vrot.lane.b32.xlu0 %v3433, 95
      %v3442 = vpop.permute.xlu0 %3441
      %v3443 = vsel %vm1274, %v3438, %v3440
      %v3444 = vsel %vm1274, %v3440, %v3442
      %v3448 = vadd.f32 %v3412, %v3438
      %v3449 = vadd.f32 %v3413, %v3443
      %v3450 = vadd.f32 %v3414, %v3444
      %3451 = vset.pattern.permute.xlu0 58
      %3452 = vperm.xlu0 %3451, %v1581
      %v3453 = vpop.permute.xlu0 %3452
      %v3455 = vlaneseq
      %v3456 = vshrl.u32 %v3455, 7
      %v3457 = vsub.s32 2, %v3456
      %v3458 = vrot.slane %v2794, %v3457
      %v3459 = vlaneseq
      %v3460 = vshrl.u32 %v3459, 7
      %v3461 = vsub.s32 2, %v3460
      %v3462 = vrot.slane %v2795, %v3461
      %v3463 = vlaneseq
      %v3464 = vshrl.u32 %v3463, 7
      %v3465 = vsub.s32 2, %v3464
      %v3466 = vrot.slane %v2796, %v3465
      %v3467 = vmul.f32 %v3453, %v3458
      %v3468 = vmul.f32 %v3453, %v3462
      %v3469 = vmul.f32 %v3453, %v3466
      %3473 = vrot.lane.b32.xlu0 %v3467, 95
      %v3474 = vpop.permute.xlu0 %3473
      %3475 = vrot.lane.b32.xlu0 %v3468, 95
      %v3476 = vpop.permute.xlu0 %3475
      %3477 = vrot.lane.b32.xlu0 %v3469, 95
      %v3478 = vpop.permute.xlu0 %3477
      %v3479 = vsel %vm1274, %v3474, %v3476
      %v3480 = vsel %vm1274, %v3476, %v3478
      %v3484 = vadd.f32 %v3448, %v3474
      %v3485 = vadd.f32 %v3449, %v3479
      %v3486 = vadd.f32 %v3450, %v3480
      %3487 = vset.pattern.permute.xlu0 59
      %3488 = vperm.xlu0 %3487, %v1581
      %v3489 = vpop.permute.xlu0 %3488
      %v3491 = vlaneseq
      %v3492 = vshrl.u32 %v3491, 7
      %v3493 = vsub.s32 3, %v3492
      %v3494 = vrot.slane %v2794, %v3493
      %v3495 = vlaneseq
      %v3496 = vshrl.u32 %v3495, 7
      %v3497 = vsub.s32 3, %v3496
      %v3498 = vrot.slane %v2795, %v3497
      %v3499 = vlaneseq
      %v3500 = vshrl.u32 %v3499, 7
      %v3501 = vsub.s32 3, %v3500
      %v3502 = vrot.slane %v2796, %v3501
      %v3503 = vmul.f32 %v3489, %v3494
      %v3504 = vmul.f32 %v3489, %v3498
      %v3505 = vmul.f32 %v3489, %v3502
      %3509 = vrot.lane.b32.xlu0 %v3503, 95
      %v3510 = vpop.permute.xlu0 %3509
      %3511 = vrot.lane.b32.xlu0 %v3504, 95
      %v3512 = vpop.permute.xlu0 %3511
      %3513 = vrot.lane.b32.xlu0 %v3505, 95
      %v3514 = vpop.permute.xlu0 %3513
      %v3515 = vsel %vm1274, %v3510, %v3512
      %v3516 = vsel %vm1274, %v3512, %v3514
      %v3520 = vadd.f32 %v3484, %v3510
      %v3521 = vadd.f32 %v3485, %v3515
      %v3522 = vadd.f32 %v3486, %v3516
      %3523 = vset.pattern.permute.xlu0 60
      %3524 = vperm.xlu0 %3523, %v1581
      %v3525 = vpop.permute.xlu0 %3524
      %v3527 = vlaneseq
      %v3528 = vshrl.u32 %v3527, 7
      %v3529 = vsub.s32 4, %v3528
      %v3530 = vrot.slane %v2794, %v3529
      %v3531 = vlaneseq
      %v3532 = vshrl.u32 %v3531, 7
      %v3533 = vsub.s32 4, %v3532
      %v3534 = vrot.slane %v2795, %v3533
      %v3535 = vlaneseq
      %v3536 = vshrl.u32 %v3535, 7
      %v3537 = vsub.s32 4, %v3536
      %v3538 = vrot.slane %v2796, %v3537
      %v3539 = vmul.f32 %v3525, %v3530
      %v3540 = vmul.f32 %v3525, %v3534
      %v3541 = vmul.f32 %v3525, %v3538
      %3545 = vrot.lane.b32.xlu0 %v3539, 95
      %v3546 = vpop.permute.xlu0 %3545
      %3547 = vrot.lane.b32.xlu0 %v3540, 95
      %v3548 = vpop.permute.xlu0 %3547
      %3549 = vrot.lane.b32.xlu0 %v3541, 95
      %v3550 = vpop.permute.xlu0 %3549
      %v3551 = vsel %vm1274, %v3546, %v3548
      %v3552 = vsel %vm1274, %v3548, %v3550
      %v3556 = vadd.f32 %v3520, %v3546
      %v3557 = vadd.f32 %v3521, %v3551
      %v3558 = vadd.f32 %v3522, %v3552
      %3559 = vset.pattern.permute.xlu0 61
      %3560 = vperm.xlu0 %3559, %v1581
      %v3561 = vpop.permute.xlu0 %3560
      %v3563 = vlaneseq
      %v3564 = vshrl.u32 %v3563, 7
      %v3565 = vsub.s32 5, %v3564
      %v3566 = vrot.slane %v2794, %v3565
      %v3567 = vlaneseq
      %v3568 = vshrl.u32 %v3567, 7
      %v3569 = vsub.s32 5, %v3568
      %v3570 = vrot.slane %v2795, %v3569
      %v3571 = vlaneseq
      %v3572 = vshrl.u32 %v3571, 7
      %v3573 = vsub.s32 5, %v3572
      %v3574 = vrot.slane %v2796, %v3573
      %v3575 = vmul.f32 %v3561, %v3566
      %v3576 = vmul.f32 %v3561, %v3570
      %v3577 = vmul.f32 %v3561, %v3574
      %3581 = vrot.lane.b32.xlu0 %v3575, 95
      %v3582 = vpop.permute.xlu0 %3581
      %3583 = vrot.lane.b32.xlu0 %v3576, 95
      %v3584 = vpop.permute.xlu0 %3583
      %3585 = vrot.lane.b32.xlu0 %v3577, 95
      %v3586 = vpop.permute.xlu0 %3585
      %v3587 = vsel %vm1274, %v3582, %v3584
      %v3588 = vsel %vm1274, %v3584, %v3586
      %v3592 = vadd.f32 %v3556, %v3582
      %v3593 = vadd.f32 %v3557, %v3587
      %v3594 = vadd.f32 %v3558, %v3588
      %3595 = vset.pattern.permute.xlu0 62
      %3596 = vperm.xlu0 %3595, %v1581
      %v3597 = vpop.permute.xlu0 %3596
      %v3599 = vlaneseq
      %v3600 = vshrl.u32 %v3599, 7
      %v3601 = vsub.s32 6, %v3600
      %v3602 = vrot.slane %v2794, %v3601
      %v3603 = vlaneseq
      %v3604 = vshrl.u32 %v3603, 7
      %v3605 = vsub.s32 6, %v3604
      %v3606 = vrot.slane %v2795, %v3605
      %v3607 = vlaneseq
      %v3608 = vshrl.u32 %v3607, 7
      %v3609 = vsub.s32 6, %v3608
      %v3610 = vrot.slane %v2796, %v3609
      %v3611 = vmul.f32 %v3597, %v3602
      %v3612 = vmul.f32 %v3597, %v3606
      %v3613 = vmul.f32 %v3597, %v3610
      %3617 = vrot.lane.b32.xlu0 %v3611, 95
      %v3618 = vpop.permute.xlu0 %3617
      %3619 = vrot.lane.b32.xlu0 %v3612, 95
      %v3620 = vpop.permute.xlu0 %3619
      %3621 = vrot.lane.b32.xlu0 %v3613, 95
      %v3622 = vpop.permute.xlu0 %3621
      %v3623 = vsel %vm1274, %v3618, %v3620
      %v3624 = vsel %vm1274, %v3620, %v3622
      %v3628 = vadd.f32 %v3592, %v3618
      %v3629 = vadd.f32 %v3593, %v3623
      %v3630 = vadd.f32 %v3594, %v3624
      %3631 = vset.pattern.permute.xlu0 63
      %3632 = vperm.xlu0 %3631, %v1581
      %v3633 = vpop.permute.xlu0 %3632
      %v3635 = vlaneseq
      %v3636 = vshrl.u32 %v3635, 7
      %v3637 = vsub.s32 7, %v3636
      %v3638 = vrot.slane %v2794, %v3637
      %v3639 = vlaneseq
      %v3640 = vshrl.u32 %v3639, 7
      %v3641 = vsub.s32 7, %v3640
      %v3642 = vrot.slane %v2795, %v3641
      %v3643 = vlaneseq
      %v3644 = vshrl.u32 %v3643, 7
      %v3645 = vsub.s32 7, %v3644
      %v3646 = vrot.slane %v2796, %v3645
      %v3647 = vmul.f32 %v3633, %v3638
      %v3648 = vmul.f32 %v3633, %v3642
      %v3649 = vmul.f32 %v3633, %v3646
      %3653 = vrot.lane.b32.xlu0 %v3647, 95
      %v3654 = vpop.permute.xlu0 %3653
      %3655 = vrot.lane.b32.xlu0 %v3648, 95
      %v3656 = vpop.permute.xlu0 %3655
      %3657 = vrot.lane.b32.xlu0 %v3649, 95
      %v3658 = vpop.permute.xlu0 %3657
      %v3659 = vsel %vm1274, %v3654, %v3656
      %v3660 = vsel %vm1274, %v3656, %v3658
      %v3664 = vadd.f32 %v3628, %v3654
      %v3665 = vadd.f32 %v3629, %v3659
      %v3666 = vadd.f32 %v3630, %v3660
      %v3667 = vmul.f32 %v2794, %v1392
      %v3668 = vmul.f32 %v2795, %v1396
      %v3669 = vmul.f32 %v2796, %v1394
      %3670 = vset.pattern.permute.xlu0 64
      %3671 = vperm.xlu0 %3670, %v1581
      %v3672 = vpop.permute.xlu0 %3671
      %v3674 = vlaneseq
      %v3675 = vshrl.u32 %v3674, 7
      %v3676 = vsub.s32 0, %v3675
      %v3677 = vrot.slane %v3667, %v3676
      %v3678 = vlaneseq
      %v3679 = vshrl.u32 %v3678, 7
      %v3680 = vsub.s32 0, %v3679
      %v3681 = vrot.slane %v3668, %v3680
      %v3682 = vlaneseq
      %v3683 = vshrl.u32 %v3682, 7
      %v3684 = vsub.s32 0, %v3683
      %v3685 = vrot.slane %v3669, %v3684
      %v3686 = vmul.f32 %v3672, %v3677
      %v3687 = vmul.f32 %v3672, %v3681
      %v3688 = vmul.f32 %v3672, %v3685
      %3692 = vrot.lane.b32.xlu0 %v3686, 94
      %v3693 = vpop.permute.xlu0 %3692
      %3694 = vrot.lane.b32.xlu0 %v3687, 94
      %v3695 = vpop.permute.xlu0 %3694
      %3696 = vrot.lane.b32.xlu0 %v3688, 94
      %v3697 = vpop.permute.xlu0 %3696
      %v3698 = vsel %vm1431, %v3693, %v3695
      %v3699 = vsel %vm1431, %v3695, %v3697
      %v3703 = vadd.f32 %v3664, %v3693
      %v3704 = vadd.f32 %v3665, %v3698
      %v3705 = vadd.f32 %v3666, %v3699
      %3706 = vset.pattern.permute.xlu0 65
      %3707 = vperm.xlu0 %3706, %v1581
      %v3708 = vpop.permute.xlu0 %3707
      %v3710 = vlaneseq
      %v3711 = vshrl.u32 %v3710, 7
      %v3712 = vsub.s32 1, %v3711
      %v3713 = vrot.slane %v3667, %v3712
      %v3714 = vlaneseq
      %v3715 = vshrl.u32 %v3714, 7
      %v3716 = vsub.s32 1, %v3715
      %v3717 = vrot.slane %v3668, %v3716
      %v3718 = vlaneseq
      %v3719 = vshrl.u32 %v3718, 7
      %v3720 = vsub.s32 1, %v3719
      %v3721 = vrot.slane %v3669, %v3720
      %v3722 = vmul.f32 %v3708, %v3713
      %v3723 = vmul.f32 %v3708, %v3717
      %v3724 = vmul.f32 %v3708, %v3721
      %3728 = vrot.lane.b32.xlu0 %v3722, 94
      %v3729 = vpop.permute.xlu0 %3728
      %3730 = vrot.lane.b32.xlu0 %v3723, 94
      %v3731 = vpop.permute.xlu0 %3730
      %3732 = vrot.lane.b32.xlu0 %v3724, 94
      %v3733 = vpop.permute.xlu0 %3732
      %v3734 = vsel %vm1431, %v3729, %v3731
      %v3735 = vsel %vm1431, %v3731, %v3733
      %v3739 = vadd.f32 %v3703, %v3729
      %v3740 = vadd.f32 %v3704, %v3734
      %v3741 = vadd.f32 %v3705, %v3735
      %3742 = vset.pattern.permute.xlu0 66
      %3743 = vperm.xlu0 %3742, %v1581
      %v3744 = vpop.permute.xlu0 %3743
      %v3746 = vlaneseq
      %v3747 = vshrl.u32 %v3746, 7
      %v3748 = vsub.s32 2, %v3747
      %v3749 = vrot.slane %v3667, %v3748
      %v3750 = vlaneseq
      %v3751 = vshrl.u32 %v3750, 7
      %v3752 = vsub.s32 2, %v3751
      %v3753 = vrot.slane %v3668, %v3752
      %v3754 = vlaneseq
      %v3755 = vshrl.u32 %v3754, 7
      %v3756 = vsub.s32 2, %v3755
      %v3757 = vrot.slane %v3669, %v3756
      %v3758 = vmul.f32 %v3744, %v3749
      %v3759 = vmul.f32 %v3744, %v3753
      %v3760 = vmul.f32 %v3744, %v3757
      %3764 = vrot.lane.b32.xlu0 %v3758, 94
      %v3765 = vpop.permute.xlu0 %3764
      %3766 = vrot.lane.b32.xlu0 %v3759, 94
      %v3767 = vpop.permute.xlu0 %3766
      %3768 = vrot.lane.b32.xlu0 %v3760, 94
      %v3769 = vpop.permute.xlu0 %3768
      %v3770 = vsel %vm1431, %v3765, %v3767
      %v3771 = vsel %vm1431, %v3767, %v3769
      %v3775 = vadd.f32 %v3739, %v3765
      %v3776 = vadd.f32 %v3740, %v3770
      %v3777 = vadd.f32 %v3741, %v3771
      %3778 = vset.pattern.permute.xlu0 67
      %3779 = vperm.xlu0 %3778, %v1581
      %v3780 = vpop.permute.xlu0 %3779
      %v3782 = vlaneseq
      %v3783 = vshrl.u32 %v3782, 7
      %v3784 = vsub.s32 3, %v3783
      %v3785 = vrot.slane %v3667, %v3784
      %v3786 = vlaneseq
      %v3787 = vshrl.u32 %v3786, 7
      %v3788 = vsub.s32 3, %v3787
      %v3789 = vrot.slane %v3668, %v3788
      %v3790 = vlaneseq
      %v3791 = vshrl.u32 %v3790, 7
      %v3792 = vsub.s32 3, %v3791
      %v3793 = vrot.slane %v3669, %v3792
      %v3794 = vmul.f32 %v3780, %v3785
      %v3795 = vmul.f32 %v3780, %v3789
      %v3796 = vmul.f32 %v3780, %v3793
      %3800 = vrot.lane.b32.xlu0 %v3794, 94
      %v3801 = vpop.permute.xlu0 %3800
      %3802 = vrot.lane.b32.xlu0 %v3795, 94
      %v3803 = vpop.permute.xlu0 %3802
      %3804 = vrot.lane.b32.xlu0 %v3796, 94
      %v3805 = vpop.permute.xlu0 %3804
      %v3806 = vsel %vm1431, %v3801, %v3803
      %v3807 = vsel %vm1431, %v3803, %v3805
      %v3811 = vadd.f32 %v3775, %v3801
      %v3812 = vadd.f32 %v3776, %v3806
      %v3813 = vadd.f32 %v3777, %v3807
      %3814 = vset.pattern.permute.xlu0 68
      %3815 = vperm.xlu0 %3814, %v1581
      %v3816 = vpop.permute.xlu0 %3815
      %v3818 = vlaneseq
      %v3819 = vshrl.u32 %v3818, 7
      %v3820 = vsub.s32 4, %v3819
      %v3821 = vrot.slane %v3667, %v3820
      %v3822 = vlaneseq
      %v3823 = vshrl.u32 %v3822, 7
      %v3824 = vsub.s32 4, %v3823
      %v3825 = vrot.slane %v3668, %v3824
      %v3826 = vlaneseq
      %v3827 = vshrl.u32 %v3826, 7
      %v3828 = vsub.s32 4, %v3827
      %v3829 = vrot.slane %v3669, %v3828
      %v3830 = vmul.f32 %v3816, %v3821
      %v3831 = vmul.f32 %v3816, %v3825
      %v3832 = vmul.f32 %v3816, %v3829
      %3836 = vrot.lane.b32.xlu0 %v3830, 94
      %v3837 = vpop.permute.xlu0 %3836
      %3838 = vrot.lane.b32.xlu0 %v3831, 94
      %v3839 = vpop.permute.xlu0 %3838
      %3840 = vrot.lane.b32.xlu0 %v3832, 94
      %v3841 = vpop.permute.xlu0 %3840
      %v3842 = vsel %vm1431, %v3837, %v3839
      %v3843 = vsel %vm1431, %v3839, %v3841
      %v3847 = vadd.f32 %v3811, %v3837
      %v3848 = vadd.f32 %v3812, %v3842
      %v3849 = vadd.f32 %v3813, %v3843
      %3850 = vset.pattern.permute.xlu0 69
      %3851 = vperm.xlu0 %3850, %v1581
      %v3852 = vpop.permute.xlu0 %3851
      %v3854 = vlaneseq
      %v3855 = vshrl.u32 %v3854, 7
      %v3856 = vsub.s32 5, %v3855
      %v3857 = vrot.slane %v3667, %v3856
      %v3858 = vlaneseq
      %v3859 = vshrl.u32 %v3858, 7
      %v3860 = vsub.s32 5, %v3859
      %v3861 = vrot.slane %v3668, %v3860
      %v3862 = vlaneseq
      %v3863 = vshrl.u32 %v3862, 7
      %v3864 = vsub.s32 5, %v3863
      %v3865 = vrot.slane %v3669, %v3864
      %v3866 = vmul.f32 %v3852, %v3857
      %v3867 = vmul.f32 %v3852, %v3861
      %v3868 = vmul.f32 %v3852, %v3865
      %3872 = vrot.lane.b32.xlu0 %v3866, 94
      %v3873 = vpop.permute.xlu0 %3872
      %3874 = vrot.lane.b32.xlu0 %v3867, 94
      %v3875 = vpop.permute.xlu0 %3874
      %3876 = vrot.lane.b32.xlu0 %v3868, 94
      %v3877 = vpop.permute.xlu0 %3876
      %v3878 = vsel %vm1431, %v3873, %v3875
      %v3879 = vsel %vm1431, %v3875, %v3877
      %v3883 = vadd.f32 %v3847, %v3873
      %v3884 = vadd.f32 %v3848, %v3878
      %v3885 = vadd.f32 %v3849, %v3879
      %3886 = vset.pattern.permute.xlu0 70
      %3887 = vperm.xlu0 %3886, %v1581
      %v3888 = vpop.permute.xlu0 %3887
      %v3890 = vlaneseq
      %v3891 = vshrl.u32 %v3890, 7
      %v3892 = vsub.s32 6, %v3891
      %v3893 = vrot.slane %v3667, %v3892
      %v3894 = vlaneseq
      %v3895 = vshrl.u32 %v3894, 7
      %v3896 = vsub.s32 6, %v3895
      %v3897 = vrot.slane %v3668, %v3896
      %v3898 = vlaneseq
      %v3899 = vshrl.u32 %v3898, 7
      %v3900 = vsub.s32 6, %v3899
      %v3901 = vrot.slane %v3669, %v3900
      %v3902 = vmul.f32 %v3888, %v3893
      %v3903 = vmul.f32 %v3888, %v3897
      %v3904 = vmul.f32 %v3888, %v3901
      %3908 = vrot.lane.b32.xlu0 %v3902, 94
      %v3909 = vpop.permute.xlu0 %3908
      %3910 = vrot.lane.b32.xlu0 %v3903, 94
      %v3911 = vpop.permute.xlu0 %3910
      %3912 = vrot.lane.b32.xlu0 %v3904, 94
      %v3913 = vpop.permute.xlu0 %3912
      %v3914 = vsel %vm1431, %v3909, %v3911
      %v3915 = vsel %vm1431, %v3911, %v3913
      %v3919 = vadd.f32 %v3883, %v3909
      %v3920 = vadd.f32 %v3884, %v3914
      %v3921 = vadd.f32 %v3885, %v3915
      %3922 = vset.pattern.permute.xlu0 71
      %3923 = vperm.xlu0 %3922, %v1581
      %v3924 = vpop.permute.xlu0 %3923
      %v3926 = vlaneseq
      %v3927 = vshrl.u32 %v3926, 7
      %v3928 = vsub.s32 7, %v3927
      %v3929 = vrot.slane %v3667, %v3928
      %v3930 = vlaneseq
      %v3931 = vshrl.u32 %v3930, 7
      %v3932 = vsub.s32 7, %v3931
      %v3933 = vrot.slane %v3668, %v3932
      %v3934 = vlaneseq
      %v3935 = vshrl.u32 %v3934, 7
      %v3936 = vsub.s32 7, %v3935
      %v3937 = vrot.slane %v3669, %v3936
      %v3938 = vmul.f32 %v3924, %v3929
      %v3939 = vmul.f32 %v3924, %v3933
      %v3940 = vmul.f32 %v3924, %v3937
      %3944 = vrot.lane.b32.xlu0 %v3938, 94
      %v3945 = vpop.permute.xlu0 %3944
      %3946 = vrot.lane.b32.xlu0 %v3939, 94
      %v3947 = vpop.permute.xlu0 %3946
      %3948 = vrot.lane.b32.xlu0 %v3940, 94
      %v3949 = vpop.permute.xlu0 %3948
      %v3950 = vsel %vm1431, %v3945, %v3947
      %v3951 = vsel %vm1431, %v3947, %v3949
      %v3955 = vadd.f32 %v3919, %v3945
      %v3956 = vadd.f32 %v3920, %v3950
      %v3957 = vadd.f32 %v3921, %v3951
      %v3958 = vxor.u32 %v3955, 2147483648
      %v3959 = vxor.u32 %v3956, 2147483648
      %v3960 = vxor.u32 %v3957, 2147483648
      %v3961 = vmul.f32 %v3958, 1.442695
      %v3962 = vpow.pop %v3961
      %v3963 = vmul.f32 %v3959, 1.442695
      %v3964 = vpow.pop %v3963
      %v3965 = vmul.f32 %v3960, 1.442695
      %v3966 = vpow.pop %v3965
      %v3967 = vadd.f32 %v3962, 1.0
      %v3968 = vadd.f32 %v3964, 1.0
      %v3969 = vadd.f32 %v3966, 1.0
      %v3970 = vrcp.pop %v3967
      %v3971 = vmul.f32 1.0, %v3970
      %v3972 = vrcp.pop %v3968
      %v3973 = vmul.f32 1.0, %v3972
      %v3974 = vrcp.pop %v3969
      %v3975 = vmul.f32 1.0, %v3974
      %3979 = vrot.lane.b32.xlu0 %v3971, 17
      %v3980 = vpop.permute.xlu0 %3979
      %3981 = vrot.lane.b32.xlu0 %v3973, 17
      %v3982 = vpop.permute.xlu0 %3981
      %3983 = vrot.lane.b32.xlu0 %v3975, 17
      %v3984 = vpop.permute.xlu0 %3983
      %v3985 = vsel %vm1395, %v3980, %v3982
      %v3986 = vsel %vm1395, %v3982, %v3984
      %3989 = vst [vmem:[%s251] sm:$0xff] %v3985
      %3990 = vst [vmem:[%s251 + $0x8] sm:$0xff] %v3986
      %p3991 = scmp.lt.s32.totalorder %s17, 1
      %s3992 = scalar_select %p3991, %s17, 1
      %s3993 = smul.addr %s3992, 2
      %s3994 = smul.addr %s3993, 8
      %s3995 = scalar_lea.vmem %s6, %s3994
      // Predicated region
      $region45: #{conv_block.1} parent=43 // pred_check
        %p3996 = pneg %p166
      $region46: #{conv_block.1} parent=43 // pred_check_branch
        %3998 = sbr.rel (%p3996) target = $region48
      $region47: #{conv_block.1} parent=43 // pred_region
        _
      $region48: #{conv_block.1} parent=43 // pred_fallthru
        _
    $region44: #{conv_block.1} parent=5 // pred_fallthru
      _
    %p3999 = scmp.le.s32.totalorder 2, %s12
    // Predicated region
    $region49: #{conv_block.1} parent=5 // pred_check
      %p4000 = pneg %p3999
    $region50: #{conv_block.1} parent=5 // pred_check_branch
      %4002 = sbr.rel (%p4000) target = $region52
    $region51: #{conv_block.1} parent=5 // pred_region
      %s4003 = ssub.s32 %s12, 2
      // Predicated region
      $region53: #{conv_block.1} parent=51 // pred_check
        %p4004 = pneg %p172
      $region54: #{conv_block.1} parent=51 // pred_check_branch
        %4006 = sbr.rel (%p4004) target = $region56
      $region55: #{conv_block.1} parent=51 // pred_region
        %p4007 = scmp.lt.s32.totalorder %s18, 1
        %s4008 = scalar_select %p4007, %s18, 1
        %s4009 = smul.addr %s4008, 2
        %s4010 = smul.addr %s4009, 8
        %s4011 = scalar_lea.vmem %s6, %s4010
      $region56: #{conv_block.1} parent=51 // pred_fallthru
        _
    $region52: #{conv_block.1} parent=5 // pred_fallthru
      _
  $region6: #{conv_block.1} parent=0 // loop_footer
    %s16 = sadd.s32 1, %s12
  $region7: #{conv_block.1} parent=0 // loop_footer_branch
    %11 = sbr.rel target = $region3
  $region8: #{conv_block.1} parent=0 // loop_exit
    _

</llo_original>
